<compile_context>
chip_gen: v7x
topology: tpu7x:2x2x1
jax: 0.10.0
libtpu: 0.0.40
codegen_flags: <defaults>
</compile_context>

<pallas_src>
import functools
import math

import jax
import jax.numpy as jnp
from jax.experimental import pallas as pl
from jax.experimental.pallas import tpu as pltpu


# ----------------------------------------------------------------------------
# Fully fused forward kernel (single invocation, in-kernel layer loop)
# ----------------------------------------------------------------------------

def _fused_forward_kernel(
    # inputs
    emb_ref, mask_ref, emb_g_ref, emb_b_ref,
    wqkv_ref, bqkv_ref, wo_ref, bo_ref, ln1_g_ref, ln1_b_ref,
    w1_ref, b1_ref, w2_ref, b2_ref, ln2_g_ref, ln2_b_ref,
    out_w_ref, out_b_ref,
    # outputs (lane-dense slabs)
    enc_ref, att_ref, atto_ref, logits_ref,
    *, B, S, NH, Dh, L, eps, scale):
  H = NH * Dh
  f32 = jnp.float32
  bf16 = jnp.bfloat16

  def layernorm(x, g, b):
    mean = jnp.mean(x, axis=-1, keepdims=True)
    var = jnp.mean(jnp.square(x - mean), axis=-1, keepdims=True)
    return (x - mean) * jax.lax.rsqrt(var + eps) * g + b

  def mxu(a, b):
    # bf16 MXU operands, f32 accumulation.
    return jnp.dot(a.astype(bf16), b.astype(bf16), preferred_element_type=f32)

  def pack_rows(x):
    # (B*S, H) -> (S, B*H) lane-dense piece (static sublane slices + lane cat).
    return jnp.concatenate([x[b * S:(b + 1) * S, :] for b in range(B)], axis=1)

  # ---- hoisted layer-invariant broadcast: additive mask -> (NH*B, 1, S) -----
  mask_hb = jnp.concatenate([mask_ref[...]] * NH, axis=0)[:, None, :]

  # ---- embedding LayerNorm; hidden state carried in registers --------------
  h = layernorm(emb_ref[...].astype(f32), emb_g_ref[...], emb_b_ref[...])

  enc_pieces, att_pieces, atto_pieces = [], [], []

  for l in range(L):
    # ---- fused Q/K/V projection (one matmul) --------------------------------
    qkv = mxu(h, wqkv_ref[l]) + bqkv_ref[l]                   # (B*S, 3H) f32

    # ---- head-major batched layout (NH*B, S, Dh) ----------------------------
    def heads(base):
      return jnp.concatenate(
          [qkv[:, base + hh * Dh: base + (hh + 1) * Dh].reshape(B, S, Dh)
           for hh in range(NH)], axis=0)
    qh, kh, vh = heads(0), heads(H), heads(2 * H)

    # ---- batched attention ---------------------------------------------------
    scores = jnp.einsum('bqd,bkd->bqk', qh.astype(bf16), kh.astype(bf16),
                        preferred_element_type=f32)           # (NH*B, S, S)
    scores = scores * scale + mask_hb
    scores = scores - jnp.max(scores, axis=-1, keepdims=True)
    e = jnp.exp(scores)
    p = e * pl.reciprocal(jnp.sum(e, axis=-1, keepdims=True), approx=True)
    # TODO(synk): layer_atts stores post-softmax probabilities; verify the
    # reference Encoder returns post- (not pre-) softmax attention.
    att_pieces.append(
        jnp.concatenate([p[i] for i in range(NH * B)], axis=1))  # (S, NH*B*S)

    ctx_h = jnp.einsum('bqk,bkd->bqd', p.astype(bf16), vh.astype(bf16),
                       preferred_element_type=f32)             # (NH*B, S, Dh)
    ctx = jnp.concatenate(
        [ctx_h[hh * B:(hh + 1) * B].reshape(B * S, Dh) for hh in range(NH)],
        axis=1)                                                # (B*S, H)

    # ---- attention output projection + residual + LN ------------------------
    attn_out = mxu(ctx, wo_ref[l]) + bo_ref[l]
    atto_pieces.append(pack_rows(attn_out))
    h = layernorm(attn_out + h, ln1_g_ref[l], ln1_b_ref[l])

    # ---- FFN (GELU) + residual + LN ------------------------------------------
    ffn = mxu(h, w1_ref[l]) + b1_ref[l]
    # TODO(synk): PyTorch default nn.GELU is erf-exact; tanh approximation used.
    ffn = 0.5 * ffn * (1.0 + jnp.tanh(
        0.7978845608028654 * (ffn + 0.044715 * ffn * ffn * ffn)))
    ffn = mxu(ffn, w2_ref[l]) + b2_ref[l]
    h = layernorm(ffn + h, ln2_g_ref[l], ln2_b_ref[l])
    enc_pieces.append(pack_rows(h))

  # ---- single lane-dense (128-wide) stores for all reporting outputs --------
  enc_ref[...] = jnp.concatenate(enc_pieces, axis=1).astype(enc_ref.dtype)
  att_ref[...] = jnp.concatenate(att_pieces, axis=1).astype(att_ref.dtype)
  atto_ref[...] = jnp.concatenate(atto_pieces, axis=1).astype(atto_ref.dtype)

  # ---- output head (padded vocab, lane-dense) --------------------------------
  logits_ref[...] = (mxu(h, out_w_ref[...]) + out_b_ref[...]).astype(
      logits_ref.dtype)


# ----------------------------------------------------------------------------
# Model definition (params + forward)
# ----------------------------------------------------------------------------

class Config:
  def __init__(self, vocab_size=50, hidden_size=32, num_hidden_layers=2,
               num_attention_heads=4, intermediate_size=64,
               max_position_embeddings=16, initializer_range=0.02,
               layer_norm_eps=1e-12):
    self.vocab_size = vocab_size
    self.hidden_size = hidden_size
    self.num_hidden_layers = num_hidden_layers
    self.num_attention_heads = num_attention_heads
    self.intermediate_size = intermediate_size
    self.max_position_embeddings = max_position_embeddings
    self.initializer_range = initializer_range
    self.layer_norm_eps = layer_norm_eps


def sinusoidal_pe(max_len, d_model):
  position = jnp.arange(max_len, dtype=jnp.float32)[:, None]
  div_term = jnp.exp(jnp.arange(0, d_model, 2, dtype=jnp.float32)
                     * (-math.log(10000.0) / d_model))
  pe = jnp.zeros((max_len, d_model), dtype=jnp.float32)
  pe = pe.at[:, 0::2].set(jnp.sin(position * div_term))
  pe = pe.at[:, 1::2].set(jnp.cos(position * div_term))
  return pe


def init_params(config, key):
  std = config.initializer_range
  H, I, V = config.hidden_size, config.intermediate_size, config.vocab_size
  L = config.num_hidden_layers

  def normal(key, shape):
    return std * jax.random.normal(key, shape, dtype=jnp.float32)

  keys = jax.random.split(key, 6)
  return {
      "tok_emb": normal(keys[0], (V, H)),
      "pos_enc": sinusoidal_pe(config.max_position_embeddings, H),
      "emb_ln_g": jnp.ones((1, H), jnp.float32),
      "emb_ln_b": jnp.zeros((1, H), jnp.float32),
      # per-layer weights stacked along a leading layer axis (one DMA each)
      "wqkv": normal(keys[1], (L, H, 3 * H)),
      "bqkv": jnp.zeros((L, 1, 3 * H), jnp.float32),
      "wo": normal(keys[2], (L, H, H)),
      "bo": jnp.zeros((L, 1, H), jnp.float32),
      "ln1_g": jnp.ones((L, 1, H), jnp.float32),
      "ln1_b": jnp.zeros((L, 1, H), jnp.float32),
      "w1": normal(keys[3], (L, H, I)),
      "b1": jnp.zeros((L, 1, I), jnp.float32),
      "w2": normal(keys[4], (L, I, H)),
      "b2": jnp.zeros((L, 1, H), jnp.float32),
      "ln2_g": jnp.ones((L, 1, H), jnp.float32),
      "ln2_b": jnp.zeros((L, 1, H), jnp.float32),
      "out_w": normal(keys[5], (H, V)),
      "out_b": jnp.zeros((V,), jnp.float32),
  }


def model_forward(params, config, input_ids, attention_mask=None):
  B, S = input_ids.shape
  H = config.hidden_size
  NH = config.num_attention_heads
  Dh = H // NH
  V = config.vocab_size
  L = config.num_hidden_layers
  eps = config.layer_norm_eps

  if attention_mask is None:
    attention_mask = jnp.ones_like(input_ids)
  # extended_attention_mask = (1 - mask) * -10000 ; broadcast over heads & q.
  ext_mask = (1.0 - attention_mask.astype(jnp.float32)) * -10000.0   # (B, S)

  # --- PositionalEncoding glue: tok-emb gather + sinusoidal PE add ----------
  emb = (jnp.take(params["tok_emb"], input_ids, axis=0)
         + params["pos_enc"][:S][None])
  emb2d = emb.reshape(B * S, H)

  # --- lane-dense vocab head: pad V -> multiple of 128, slice afterwards ----
  Vp = int(pl.cdiv(V, 128)) * 128
  out_w = jnp.pad(params["out_w"], ((0, 0), (0, Vp - V)))
  out_b = jnp.pad(params["out_b"], (0, Vp - V)).reshape(1, Vp)

  # Lane-dense slab packing assumptions (hold for the default tiny config).
  assert (L * B * H) % 128 == 0 and (L * NH * B * S) % 128 == 0 and S % 8 == 0

  kernel = functools.partial(_fused_forward_kernel, B=B, S=S, NH=NH, Dh=Dh,
                             L=L, eps=eps, scale=1.0 / math.sqrt(Dh))

  # Whole-array blocks resident in VMEM (no grid: everything fits easily).
  vmem_spec = pl.BlockSpec(memory_space=pltpu.MemorySpace.VMEM)

  enc_slab, att_slab, atto_slab, logits = pl.pallas_call(
      kernel,
      out_shape=(
          jax.ShapeDtypeStruct((S, L * B * H), jnp.float32),       # hidden slab
          jax.ShapeDtypeStruct((S, L * NH * B * S), jnp.float32),  # probs slab
          jax.ShapeDtypeStruct((S, L * B * H), jnp.float32),       # attn-out slab
          jax.ShapeDtypeStruct((B * S, Vp), jnp.float32),          # padded logits
      ),
      in_specs=[vmem_spec] * 18,
      out_specs=(vmem_spec, vmem_spec, vmem_spec, vmem_spec),
  )(emb2d, ext_mask, params["emb_ln_g"], params["emb_ln_b"],
    params["wqkv"], params["bqkv"], params["wo"], params["bo"],
    params["ln1_g"], params["ln1_b"], params["w1"], params["b1"],
    params["w2"], params["b2"], params["ln2_g"], params["ln2_b"],
    out_w, out_b)

  # --- undo the lane-dense packing (cheap XLA glue) --------------------------
  enc = enc_slab.reshape(S, L, B, H).transpose(1, 2, 0, 3)            # (L,B,S,H)
  atto = atto_slab.reshape(S, L, B, H).transpose(1, 2, 0, 3)          # (L,B,S,H)
  probs = att_slab.reshape(S, L, NH, B, S).transpose(1, 3, 2, 0, 4)   # (L,B,NH,S,S)
  output = logits[:, :V].reshape(B, S, V)

  encoded_layers = [enc[l] for l in range(L)]
  layer_atts = [probs[l] for l in range(L)]
  layer_atto = [atto[l] for l in range(L)]
  return encoded_layers, layer_atts, output, layer_atto


# ----------------------------------------------------------------------------
# Main
# ----------------------------------------------------------------------------

if __name__ == "__main__":
  config = Config(vocab_size=50, hidden_size=32, num_hidden_layers=2,
                  num_attention_heads=4, intermediate_size=64,
                  max_position_embeddings=16)

  key = jax.random.PRNGKey(0)
  k_param, k_ids = jax.random.split(key)
  params = init_params(config, k_param)

  B, S = 2, 8
  input_ids = jax.random.randint(k_ids, (B, S), 0, config.vocab_size,
                                 dtype=jnp.int32)
  attention_mask = jnp.ones((B, S), dtype=jnp.int32)

  encoded_layers, layer_atts, output, layer_atto = model_forward(
      params, config, input_ids, attention_mask)

  jax.block_until_ready(output)
  jax.block_until_ready(encoded_layers[-1])
  jax.block_until_ready(layer_atts[-1])
  jax.block_until_ready(layer_atto[-1])

  assert output.shape == (B, S, config.vocab_size)
  assert encoded_layers[-1].shape == (B, S, config.hidden_size)
  assert layer_atts[-1].shape == (B, config.num_attention_heads, S, S)
  assert layer_atto[-1].shape == (B, S, config.hidden_size)
  # Light sanity checks: finite logits, softmax rows ~ 1 (approx reciprocal).
  assert bool(jnp.all(jnp.isfinite(output)))
  assert bool(jnp.allclose(jnp.sum(layer_atts[-1], axis=-1), 1.0, atol=5e-2))
  print("KERNEL_OK")
</pallas_src>

<mosaic_0001>
module attributes {stable_mosaic.version = 11 : i64} {
  func.func @_fused_forward_kernel(%arg0: memref<16x32xf32, #tpu.memory_space<vmem>>, %arg1: memref<2x8xf32, #tpu.memory_space<vmem>>, %arg2: memref<1x32xf32, #tpu.memory_space<vmem>>, %arg3: memref<1x32xf32, #tpu.memory_space<vmem>>, %arg4: memref<2x32x96xf32, #tpu.memory_space<vmem>>, %arg5: memref<2x1x96xf32, #tpu.memory_space<vmem>>, %arg6: memref<2x32x32xf32, #tpu.memory_space<vmem>>, %arg7: memref<2x1x32xf32, #tpu.memory_space<vmem>>, %arg8: memref<2x1x32xf32, #tpu.memory_space<vmem>>, %arg9: memref<2x1x32xf32, #tpu.memory_space<vmem>>, %arg10: memref<2x32x64xf32, #tpu.memory_space<vmem>>, %arg11: memref<2x1x64xf32, #tpu.memory_space<vmem>>, %arg12: memref<2x64x32xf32, #tpu.memory_space<vmem>>, %arg13: memref<2x1x32xf32, #tpu.memory_space<vmem>>, %arg14: memref<2x1x32xf32, #tpu.memory_space<vmem>>, %arg15: memref<2x1x32xf32, #tpu.memory_space<vmem>>, %arg16: memref<32x128xf32, #tpu.memory_space<vmem>>, %arg17: memref<1x128xf32, #tpu.memory_space<vmem>>, %arg18: memref<8x128xf32, #tpu.memory_space<vmem>>, %arg19: memref<8x128xf32, #tpu.memory_space<vmem>>, %arg20: memref<8x128xf32, #tpu.memory_space<vmem>>, %arg21: memref<16x128xf32, #tpu.memory_space<vmem>>) attributes {dimension_semantics = [], scalar_prefetch = 0 : i64, scratch_operands = 0 : i64, tpu.core_type = #tpu.core_type<tc>} {
    %c0 = arith.constant 0 : index
    %c0_0 = arith.constant 0 : index
    %0 = vector.load %arg1[%c0, %c0_0] : memref<2x8xf32, #tpu.memory_space<vmem>>, vector<2x8xf32>
    %1 = tpu.concatenate %0, %0, %0, %0 in 0 : vector<2x8xf32>, vector<2x8xf32>, vector<2x8xf32>, vector<2x8xf32> -> vector<8x8xf32>
    %2 = vector.shape_cast %1 : vector<8x8xf32> to vector<8x1x8xf32>
    %c0_1 = arith.constant 0 : index
    %c0_2 = arith.constant 0 : index
    %3 = vector.load %arg0[%c0_1, %c0_2] : memref<16x32xf32, #tpu.memory_space<vmem>>, vector<16x32xf32>
    %c0_3 = arith.constant 0 : index
    %c0_4 = arith.constant 0 : index
    %4 = vector.load %arg2[%c0_3, %c0_4] : memref<1x32xf32, #tpu.memory_space<vmem>>, vector<1x32xf32>
    %c0_5 = arith.constant 0 : index
    %c0_6 = arith.constant 0 : index
    %5 = vector.load %arg3[%c0_5, %c0_6] : memref<1x32xf32, #tpu.memory_space<vmem>>, vector<1x32xf32>
    %cst = arith.constant dense<0.000000e+00> : vector<16xf32>
    %6 = vector.multi_reduction <add>, %3, %cst [1] : vector<16x32xf32> to vector<16xf32>
    %7 = vector.shape_cast %6 : vector<16xf32> to vector<16x1xf32>
    %cst_7 = arith.constant 3.200000e+01 : f32
    %8 = vector.broadcast %cst_7 : f32 to vector<16x1xf32>
    %9 = arith.divf %7, %8 : vector<16x1xf32>
    %10 = vector.broadcast %9 : vector<16x1xf32> to vector<16x32xf32>
    %11 = arith.subf %3, %10 : vector<16x32xf32>
    %12 = arith.mulf %11, %11 : vector<16x32xf32>
    %cst_8 = arith.constant dense<0.000000e+00> : vector<16xf32>
    %13 = vector.multi_reduction <add>, %12, %cst_8 [1] : vector<16x32xf32> to vector<16xf32>
    %14 = vector.shape_cast %13 : vector<16xf32> to vector<16x1xf32>
    %cst_9 = arith.constant 3.200000e+01 : f32
    %15 = vector.broadcast %cst_9 : f32 to vector<16x1xf32>
    %16 = arith.divf %14, %15 : vector<16x1xf32>
    %17 = vector.broadcast %9 : vector<16x1xf32> to vector<16x32xf32>
    %18 = arith.subf %3, %17 : vector<16x32xf32>
    %cst_10 = arith.constant 9.99999996E-13 : f32
    %19 = vector.broadcast %cst_10 : f32 to vector<16x1xf32>
    %20 = arith.addf %16, %19 : vector<16x1xf32>
    %21 = math.rsqrt %20 : vector<16x1xf32>
    %22 = vector.broadcast %21 : vector<16x1xf32> to vector<16x32xf32>
    %23 = arith.mulf %18, %22 : vector<16x32xf32>
    %24 = vector.broadcast %4 : vector<1x32xf32> to vector<16x32xf32>
    %25 = arith.mulf %23, %24 : vector<16x32xf32>
    %26 = vector.broadcast %5 : vector<1x32xf32> to vector<16x32xf32>
    %27 = arith.addf %25, %26 : vector<16x32xf32>
    %c0_11 = arith.constant 0 : index
    %c0_12 = arith.constant 0 : index
    %c0_13 = arith.constant 0 : index
    %28 = vector.load %arg4[%c0_11, %c0_12, %c0_13] : memref<2x32x96xf32, #tpu.memory_space<vmem>>, vector<1x32x96xf32>
    %29 = vector.shape_cast %28 : vector<1x32x96xf32> to vector<32x96xf32>
    %30 = arith.truncf %27 : vector<16x32xf32> to vector<16x32xbf16>
    %31 = arith.truncf %29 : vector<32x96xf32> to vector<32x96xbf16>
    %cst_14 = arith.constant dense<0.000000e+00> : vector<16x96xf32>
    %32 = tpu.matmul %30, %31, %cst_14 {dimension_numbers = #tpu.dot_dimension_numbers<[1], [0], [0], [1], [0, 0, 1, 1], [], []>} : vector<16x32xbf16>, vector<32x96xbf16>, vector<16x96xf32> -> vector<16x96xf32>
    %c0_15 = arith.constant 0 : index
    %c0_16 = arith.constant 0 : index
    %c0_17 = arith.constant 0 : index
    %33 = vector.load %arg5[%c0_15, %c0_16, %c0_17] : memref<2x1x96xf32, #tpu.memory_space<vmem>>, vector<1x1x96xf32>
    %34 = vector.shape_cast %33 : vector<1x1x96xf32> to vector<1x96xf32>
    %35 = vector.broadcast %34 : vector<1x96xf32> to vector<16x96xf32>
    %36 = arith.addf %32, %35 : vector<16x96xf32>
    %37 = vector.extract_strided_slice %36 {offsets = [0, 0], sizes = [16, 8], strides = [1, 1]} : vector<16x96xf32> to vector<16x8xf32>
    %38 = vector.shape_cast %37 : vector<16x8xf32> to vector<2x8x8xf32>
    %39 = vector.extract_strided_slice %36 {offsets = [0, 8], sizes = [16, 8], strides = [1, 1]} : vector<16x96xf32> to vector<16x8xf32>
    %40 = vector.shape_cast %39 : vector<16x8xf32> to vector<2x8x8xf32>
    %41 = vector.extract_strided_slice %36 {offsets = [0, 16], sizes = [16, 8], strides = [1, 1]} : vector<16x96xf32> to vector<16x8xf32>
    %42 = vector.shape_cast %41 : vector<16x8xf32> to vector<2x8x8xf32>
    %43 = vector.extract_strided_slice %36 {offsets = [0, 24], sizes = [16, 8], strides = [1, 1]} : vector<16x96xf32> to vector<16x8xf32>
    %44 = vector.shape_cast %43 : vector<16x8xf32> to vector<2x8x8xf32>
    %45 = tpu.concatenate %38, %40, %42, %44 in 0 : vector<2x8x8xf32>, vector<2x8x8xf32>, vector<2x8x8xf32>, vector<2x8x8xf32> -> vector<8x8x8xf32>
    %46 = vector.extract_strided_slice %36 {offsets = [0, 32], sizes = [16, 8], strides = [1, 1]} : vector<16x96xf32> to vector<16x8xf32>
    %47 = vector.shape_cast %46 : vector<16x8xf32> to vector<2x8x8xf32>
    %48 = vector.extract_strided_slice %36 {offsets = [0, 40], sizes = [16, 8], strides = [1, 1]} : vector<16x96xf32> to vector<16x8xf32>
    %49 = vector.shape_cast %48 : vector<16x8xf32> to vector<2x8x8xf32>
    %50 = vector.extract_strided_slice %36 {offsets = [0, 48], sizes = [16, 8], strides = [1, 1]} : vector<16x96xf32> to vector<16x8xf32>
    %51 = vector.shape_cast %50 : vector<16x8xf32> to vector<2x8x8xf32>
    %52 = vector.extract_strided_slice %36 {offsets = [0, 56], sizes = [16, 8], strides = [1, 1]} : vector<16x96xf32> to vector<16x8xf32>
    %53 = vector.shape_cast %52 : vector<16x8xf32> to vector<2x8x8xf32>
    %54 = tpu.concatenate %47, %49, %51, %53 in 0 : vector<2x8x8xf32>, vector<2x8x8xf32>, vector<2x8x8xf32>, vector<2x8x8xf32> -> vector<8x8x8xf32>
    %55 = vector.extract_strided_slice %36 {offsets = [0, 64], sizes = [16, 8], strides = [1, 1]} : vector<16x96xf32> to vector<16x8xf32>
    %56 = vector.shape_cast %55 : vector<16x8xf32> to vector<2x8x8xf32>
    %57 = vector.extract_strided_slice %36 {offsets = [0, 72], sizes = [16, 8], strides = [1, 1]} : vector<16x96xf32> to vector<16x8xf32>
    %58 = vector.shape_cast %57 : vector<16x8xf32> to vector<2x8x8xf32>
    %59 = vector.extract_strided_slice %36 {offsets = [0, 80], sizes = [16, 8], strides = [1, 1]} : vector<16x96xf32> to vector<16x8xf32>
    %60 = vector.shape_cast %59 : vector<16x8xf32> to vector<2x8x8xf32>
    %61 = vector.extract_strided_slice %36 {offsets = [0, 88], sizes = [16, 8], strides = [1, 1]} : vector<16x96xf32> to vector<16x8xf32>
    %62 = vector.shape_cast %61 : vector<16x8xf32> to vector<2x8x8xf32>
    %63 = tpu.concatenate %56, %58, %60, %62 in 0 : vector<2x8x8xf32>, vector<2x8x8xf32>, vector<2x8x8xf32>, vector<2x8x8xf32> -> vector<8x8x8xf32>
    %64 = arith.truncf %45 : vector<8x8x8xf32> to vector<8x8x8xbf16>
    %65 = arith.truncf %54 : vector<8x8x8xf32> to vector<8x8x8xbf16>
    "tpu.trace_start"() <{level = 10 : i32, message = "bqd,bkd->bqk"}> : () -> ()
    %cst_18 = arith.constant dense<0.000000e+00> : vector<8x8x8xf32>
    %66 = tpu.matmul %64, %65, %cst_18 {dimension_numbers = #tpu.dot_dimension_numbers<[2], [2], [1], [1], [0, 0, 0, 1, 1, 1], [0], [0]>} : vector<8x8x8xbf16>, vector<8x8x8xbf16>, vector<8x8x8xf32> -> vector<8x8x8xf32>
    "tpu.trace_stop"() : () -> ()
    %cst_19 = arith.constant 0.353553385 : f32
    %67 = vector.broadcast %cst_19 : f32 to vector<8x8x8xf32>
    %68 = arith.mulf %66, %67 : vector<8x8x8xf32>
    %69 = vector.broadcast %2 : vector<8x1x8xf32> to vector<8x8x8xf32>
    %70 = arith.addf %68, %69 : vector<8x8x8xf32>
    %cst_20 = arith.constant dense<0xFF800000> : vector<8x8xf32>
    %71 = vector.multi_reduction <maximumf>, %70, %cst_20 [2] : vector<8x8x8xf32> to vector<8x8xf32>
    %72 = vector.shape_cast %71 : vector<8x8xf32> to vector<8x8x1xf32>
    %73 = vector.broadcast %72 : vector<8x8x1xf32> to vector<8x8x8xf32>
    %74 = arith.subf %70, %73 : vector<8x8x8xf32>
    %75 = math.exp %74 : vector<8x8x8xf32>
    %cst_21 = arith.constant dense<0.000000e+00> : vector<8x8xf32>
    %76 = vector.multi_reduction <add>, %75, %cst_21 [2] : vector<8x8x8xf32> to vector<8x8xf32>
    %77 = vector.shape_cast %76 : vector<8x8xf32> to vector<8x8x1xf32>
    %78 = tpu.reciprocal %77 {approx = true} : vector<8x8x1xf32> -> vector<8x8x1xf32>
    %79 = vector.broadcast %78 : vector<8x8x1xf32> to vector<8x8x8xf32>
    %80 = arith.mulf %75, %79 : vector<8x8x8xf32>
    %81 = vector.extract_strided_slice %80 {offsets = [0, 0, 0], sizes = [1, 8, 8], strides = [1, 1, 1]} : vector<8x8x8xf32> to vector<1x8x8xf32>
    %82 = vector.shape_cast %81 : vector<1x8x8xf32> to vector<8x8xf32>
    %83 = vector.extract_strided_slice %80 {offsets = [1, 0, 0], sizes = [1, 8, 8], strides = [1, 1, 1]} : vector<8x8x8xf32> to vector<1x8x8xf32>
    %84 = vector.shape_cast %83 : vector<1x8x8xf32> to vector<8x8xf32>
    %85 = vector.extract_strided_slice %80 {offsets = [2, 0, 0], sizes = [1, 8, 8], strides = [1, 1, 1]} : vector<8x8x8xf32> to vector<1x8x8xf32>
    %86 = vector.shape_cast %85 : vector<1x8x8xf32> to vector<8x8xf32>
    %87 = vector.extract_strided_slice %80 {offsets = [3, 0, 0], sizes = [1, 8, 8], strides = [1, 1, 1]} : vector<8x8x8xf32> to vector<1x8x8xf32>
    %88 = vector.shape_cast %87 : vector<1x8x8xf32> to vector<8x8xf32>
    %89 = vector.extract_strided_slice %80 {offsets = [4, 0, 0], sizes = [1, 8, 8], strides = [1, 1, 1]} : vector<8x8x8xf32> to vector<1x8x8xf32>
    %90 = vector.shape_cast %89 : vector<1x8x8xf32> to vector<8x8xf32>
    %91 = vector.extract_strided_slice %80 {offsets = [5, 0, 0], sizes = [1, 8, 8], strides = [1, 1, 1]} : vector<8x8x8xf32> to vector<1x8x8xf32>
    %92 = vector.shape_cast %91 : vector<1x8x8xf32> to vector<8x8xf32>
    %93 = vector.extract_strided_slice %80 {offsets = [6, 0, 0], sizes = [1, 8, 8], strides = [1, 1, 1]} : vector<8x8x8xf32> to vector<1x8x8xf32>
    %94 = vector.shape_cast %93 : vector<1x8x8xf32> to vector<8x8xf32>
    %95 = vector.extract_strided_slice %80 {offsets = [7, 0, 0], sizes = [1, 8, 8], strides = [1, 1, 1]} : vector<8x8x8xf32> to vector<1x8x8xf32>
    %96 = vector.shape_cast %95 : vector<1x8x8xf32> to vector<8x8xf32>
    %97 = tpu.concatenate %82, %84, %86, %88, %90, %92, %94, %96 in 1 : vector<8x8xf32>, vector<8x8xf32>, vector<8x8xf32>, vector<8x8xf32>, vector<8x8xf32>, vector<8x8xf32>, vector<8x8xf32>, vector<8x8xf32> -> vector<8x64xf32>
    %98 = arith.truncf %80 : vector<8x8x8xf32> to vector<8x8x8xbf16>
    %99 = arith.truncf %63 : vector<8x8x8xf32> to vector<8x8x8xbf16>
    "tpu.trace_start"() <{level = 10 : i32, message = "bqk,bkd->bqd"}> : () -> ()
    %cst_22 = arith.constant dense<0.000000e+00> : vector<8x8x8xf32>
    %100 = tpu.matmul %98, %99, %cst_22 {dimension_numbers = #tpu.dot_dimension_numbers<[2], [1], [1], [2], [0, 0, 0, 1, 1, 2], [0], [0]>} : vector<8x8x8xbf16>, vector<8x8x8xbf16>, vector<8x8x8xf32> -> vector<8x8x8xf32>
    "tpu.trace_stop"() : () -> ()
    %101 = vector.extract_strided_slice %100 {offsets = [0, 0, 0], sizes = [2, 8, 8], strides = [1, 1, 1]} : vector<8x8x8xf32> to vector<2x8x8xf32>
    %102 = vector.shape_cast %101 : vector<2x8x8xf32> to vector<16x8xf32>
    %103 = vector.extract_strided_slice %100 {offsets = [2, 0, 0], sizes = [2, 8, 8], strides = [1, 1, 1]} : vector<8x8x8xf32> to vector<2x8x8xf32>
    %104 = vector.shape_cast %103 : vector<2x8x8xf32> to vector<16x8xf32>
    %105 = vector.extract_strided_slice %100 {offsets = [4, 0, 0], sizes = [2, 8, 8], strides = [1, 1, 1]} : vector<8x8x8xf32> to vector<2x8x8xf32>
    %106 = vector.shape_cast %105 : vector<2x8x8xf32> to vector<16x8xf32>
    %107 = vector.extract_strided_slice %100 {offsets = [6, 0, 0], sizes = [2, 8, 8], strides = [1, 1, 1]} : vector<8x8x8xf32> to vector<2x8x8xf32>
    %108 = vector.shape_cast %107 : vector<2x8x8xf32> to vector<16x8xf32>
    %109 = tpu.concatenate %102, %104, %106, %108 in 1 : vector<16x8xf32>, vector<16x8xf32>, vector<16x8xf32>, vector<16x8xf32> -> vector<16x32xf32>
    %c0_23 = arith.constant 0 : index
    %c0_24 = arith.constant 0 : index
    %c0_25 = arith.constant 0 : index
    %110 = vector.load %arg6[%c0_23, %c0_24, %c0_25] : memref<2x32x32xf32, #tpu.memory_space<vmem>>, vector<1x32x32xf32>
    %111 = vector.shape_cast %110 : vector<1x32x32xf32> to vector<32x32xf32>
    %112 = arith.truncf %109 : vector<16x32xf32> to vector<16x32xbf16>
    %113 = arith.truncf %111 : vector<32x32xf32> to vector<32x32xbf16>
    %cst_26 = arith.constant dense<0.000000e+00> : vector<16x32xf32>
    %114 = tpu.matmul %112, %113, %cst_26 {dimension_numbers = #tpu.dot_dimension_numbers<[1], [0], [0], [1], [0, 0, 1, 1], [], []>} : vector<16x32xbf16>, vector<32x32xbf16>, vector<16x32xf32> -> vector<16x32xf32>
    %c0_27 = arith.constant 0 : index
    %c0_28 = arith.constant 0 : index
    %c0_29 = arith.constant 0 : index
    %115 = vector.load %arg7[%c0_27, %c0_28, %c0_29] : memref<2x1x32xf32, #tpu.memory_space<vmem>>, vector<1x1x32xf32>
    %116 = vector.shape_cast %115 : vector<1x1x32xf32> to vector<1x32xf32>
    %117 = vector.broadcast %116 : vector<1x32xf32> to vector<16x32xf32>
    %118 = arith.addf %114, %117 : vector<16x32xf32>
    %119 = vector.extract_strided_slice %118 {offsets = [0, 0], sizes = [8, 32], strides = [1, 1]} : vector<16x32xf32> to vector<8x32xf32>
    %120 = vector.extract_strided_slice %118 {offsets = [8, 0], sizes = [8, 32], strides = [1, 1]} : vector<16x32xf32> to vector<8x32xf32>
    %121 = tpu.concatenate %119, %120 in 1 : vector<8x32xf32>, vector<8x32xf32> -> vector<8x64xf32>
    %122 = arith.addf %118, %27 : vector<16x32xf32>
    %c0_30 = arith.constant 0 : index
    %c0_31 = arith.constant 0 : index
    %c0_32 = arith.constant 0 : index
    %123 = vector.load %arg8[%c0_30, %c0_31, %c0_32] : memref<2x1x32xf32, #tpu.memory_space<vmem>>, vector<1x1x32xf32>
    %124 = vector.shape_cast %123 : vector<1x1x32xf32> to vector<1x32xf32>
    %c0_33 = arith.constant 0 : index
    %c0_34 = arith.constant 0 : index
    %c0_35 = arith.constant 0 : index
    %125 = vector.load %arg9[%c0_33, %c0_34, %c0_35] : memref<2x1x32xf32, #tpu.memory_space<vmem>>, vector<1x1x32xf32>
    %126 = vector.shape_cast %125 : vector<1x1x32xf32> to vector<1x32xf32>
    %cst_36 = arith.constant dense<0.000000e+00> : vector<16xf32>
    %127 = vector.multi_reduction <add>, %122, %cst_36 [1] : vector<16x32xf32> to vector<16xf32>
    %128 = vector.shape_cast %127 : vector<16xf32> to vector<16x1xf32>
    %cst_37 = arith.constant 3.200000e+01 : f32
    %129 = vector.broadcast %cst_37 : f32 to vector<16x1xf32>
    %130 = arith.divf %128, %129 : vector<16x1xf32>
    %131 = vector.broadcast %130 : vector<16x1xf32> to vector<16x32xf32>
    %132 = arith.subf %122, %131 : vector<16x32xf32>
    %133 = arith.mulf %132, %132 : vector<16x32xf32>
    %cst_38 = arith.constant dense<0.000000e+00> : vector<16xf32>
    %134 = vector.multi_reduction <add>, %133, %cst_38 [1] : vector<16x32xf32> to vector<16xf32>
    %135 = vector.shape_cast %134 : vector<16xf32> to vector<16x1xf32>
    %cst_39 = arith.constant 3.200000e+01 : f32
    %136 = vector.broadcast %cst_39 : f32 to vector<16x1xf32>
    %137 = arith.divf %135, %136 : vector<16x1xf32>
    %138 = vector.broadcast %130 : vector<16x1xf32> to vector<16x32xf32>
    %139 = arith.subf %122, %138 : vector<16x32xf32>
    %cst_40 = arith.constant 9.99999996E-13 : f32
    %140 = vector.broadcast %cst_40 : f32 to vector<16x1xf32>
    %141 = arith.addf %137, %140 : vector<16x1xf32>
    %142 = math.rsqrt %141 : vector<16x1xf32>
    %143 = vector.broadcast %142 : vector<16x1xf32> to vector<16x32xf32>
    %144 = arith.mulf %139, %143 : vector<16x32xf32>
    %145 = vector.broadcast %124 : vector<1x32xf32> to vector<16x32xf32>
    %146 = arith.mulf %144, %145 : vector<16x32xf32>
    %147 = vector.broadcast %126 : vector<1x32xf32> to vector<16x32xf32>
    %148 = arith.addf %146, %147 : vector<16x32xf32>
    %c0_41 = arith.constant 0 : index
    %c0_42 = arith.constant 0 : index
    %c0_43 = arith.constant 0 : index
    %149 = vector.load %arg10[%c0_41, %c0_42, %c0_43] : memref<2x32x64xf32, #tpu.memory_space<vmem>>, vector<1x32x64xf32>
    %150 = vector.shape_cast %149 : vector<1x32x64xf32> to vector<32x64xf32>
    %151 = arith.truncf %148 : vector<16x32xf32> to vector<16x32xbf16>
    %152 = arith.truncf %150 : vector<32x64xf32> to vector<32x64xbf16>
    %cst_44 = arith.constant dense<0.000000e+00> : vector<16x64xf32>
    %153 = tpu.matmul %151, %152, %cst_44 {dimension_numbers = #tpu.dot_dimension_numbers<[1], [0], [0], [1], [0, 0, 1, 1], [], []>} : vector<16x32xbf16>, vector<32x64xbf16>, vector<16x64xf32> -> vector<16x64xf32>
    %c0_45 = arith.constant 0 : index
    %c0_46 = arith.constant 0 : index
    %c0_47 = arith.constant 0 : index
    %154 = vector.load %arg11[%c0_45, %c0_46, %c0_47] : memref<2x1x64xf32, #tpu.memory_space<vmem>>, vector<1x1x64xf32>
    %155 = vector.shape_cast %154 : vector<1x1x64xf32> to vector<1x64xf32>
    %156 = vector.broadcast %155 : vector<1x64xf32> to vector<16x64xf32>
    %157 = arith.addf %153, %156 : vector<16x64xf32>
    %cst_48 = arith.constant 5.000000e-01 : f32
    %158 = vector.broadcast %cst_48 : f32 to vector<16x64xf32>
    %159 = arith.mulf %158, %157 : vector<16x64xf32>
    %cst_49 = arith.constant 4.471500e-02 : f32
    %160 = vector.broadcast %cst_49 : f32 to vector<16x64xf32>
    %161 = arith.mulf %160, %157 : vector<16x64xf32>
    %162 = arith.mulf %161, %157 : vector<16x64xf32>
    %163 = arith.mulf %162, %157 : vector<16x64xf32>
    %164 = arith.addf %157, %163 : vector<16x64xf32>
    %cst_50 = arith.constant 0.797884583 : f32
    %165 = vector.broadcast %cst_50 : f32 to vector<16x64xf32>
    %166 = arith.mulf %165, %164 : vector<16x64xf32>
    %167 = math.tanh %166 : vector<16x64xf32>
    %cst_51 = arith.constant 1.000000e+00 : f32
    %168 = vector.broadcast %cst_51 : f32 to vector<16x64xf32>
    %169 = arith.addf %168, %167 : vector<16x64xf32>
    %170 = arith.mulf %159, %169 : vector<16x64xf32>
    %c0_52 = arith.constant 0 : index
    %c0_53 = arith.constant 0 : index
    %c0_54 = arith.constant 0 : index
    %171 = vector.load %arg12[%c0_52, %c0_53, %c0_54] : memref<2x64x32xf32, #tpu.memory_space<vmem>>, vector<1x64x32xf32>
    %172 = vector.shape_cast %171 : vector<1x64x32xf32> to vector<64x32xf32>
    %173 = arith.truncf %170 : vector<16x64xf32> to vector<16x64xbf16>
    %174 = arith.truncf %172 : vector<64x32xf32> to vector<64x32xbf16>
    %cst_55 = arith.constant dense<0.000000e+00> : vector<16x32xf32>
    %175 = tpu.matmul %173, %174, %cst_55 {dimension_numbers = #tpu.dot_dimension_numbers<[1], [0], [0], [1], [0, 0, 1, 1], [], []>} : vector<16x64xbf16>, vector<64x32xbf16>, vector<16x32xf32> -> vector<16x32xf32>
    %c0_56 = arith.constant 0 : index
    %c0_57 = arith.constant 0 : index
    %c0_58 = arith.constant 0 : index
    %176 = vector.load %arg13[%c0_56, %c0_57, %c0_58] : memref<2x1x32xf32, #tpu.memory_space<vmem>>, vector<1x1x32xf32>
    %177 = vector.shape_cast %176 : vector<1x1x32xf32> to vector<1x32xf32>
    %178 = vector.broadcast %177 : vector<1x32xf32> to vector<16x32xf32>
    %179 = arith.addf %175, %178 : vector<16x32xf32>
    %180 = arith.addf %179, %148 : vector<16x32xf32>
    %c0_59 = arith.constant 0 : index
    %c0_60 = arith.constant 0 : index
    %c0_61 = arith.constant 0 : index
    %181 = vector.load %arg14[%c0_59, %c0_60, %c0_61] : memref<2x1x32xf32, #tpu.memory_space<vmem>>, vector<1x1x32xf32>
    %182 = vector.shape_cast %181 : vector<1x1x32xf32> to vector<1x32xf32>
    %c0_62 = arith.constant 0 : index
    %c0_63 = arith.constant 0 : index
    %c0_64 = arith.constant 0 : index
    %183 = vector.load %arg15[%c0_62, %c0_63, %c0_64] : memref<2x1x32xf32, #tpu.memory_space<vmem>>, vector<1x1x32xf32>
    %184 = vector.shape_cast %183 : vector<1x1x32xf32> to vector<1x32xf32>
    %cst_65 = arith.constant dense<0.000000e+00> : vector<16xf32>
    %185 = vector.multi_reduction <add>, %180, %cst_65 [1] : vector<16x32xf32> to vector<16xf32>
    %186 = vector.shape_cast %185 : vector<16xf32> to vector<16x1xf32>
    %cst_66 = arith.constant 3.200000e+01 : f32
    %187 = vector.broadcast %cst_66 : f32 to vector<16x1xf32>
    %188 = arith.divf %186, %187 : vector<16x1xf32>
    %189 = vector.broadcast %188 : vector<16x1xf32> to vector<16x32xf32>
    %190 = arith.subf %180, %189 : vector<16x32xf32>
    %191 = arith.mulf %190, %190 : vector<16x32xf32>
    %cst_67 = arith.constant dense<0.000000e+00> : vector<16xf32>
    %192 = vector.multi_reduction <add>, %191, %cst_67 [1] : vector<16x32xf32> to vector<16xf32>
    %193 = vector.shape_cast %192 : vector<16xf32> to vector<16x1xf32>
    %cst_68 = arith.constant 3.200000e+01 : f32
    %194 = vector.broadcast %cst_68 : f32 to vector<16x1xf32>
    %195 = arith.divf %193, %194 : vector<16x1xf32>
    %196 = vector.broadcast %188 : vector<16x1xf32> to vector<16x32xf32>
    %197 = arith.subf %180, %196 : vector<16x32xf32>
    %cst_69 = arith.constant 9.99999996E-13 : f32
    %198 = vector.broadcast %cst_69 : f32 to vector<16x1xf32>
    %199 = arith.addf %195, %198 : vector<16x1xf32>
    %200 = math.rsqrt %199 : vector<16x1xf32>
    %201 = vector.broadcast %200 : vector<16x1xf32> to vector<16x32xf32>
    %202 = arith.mulf %197, %201 : vector<16x32xf32>
    %203 = vector.broadcast %182 : vector<1x32xf32> to vector<16x32xf32>
    %204 = arith.mulf %202, %203 : vector<16x32xf32>
    %205 = vector.broadcast %184 : vector<1x32xf32> to vector<16x32xf32>
    %206 = arith.addf %204, %205 : vector<16x32xf32>
    %207 = vector.extract_strided_slice %206 {offsets = [0, 0], sizes = [8, 32], strides = [1, 1]} : vector<16x32xf32> to vector<8x32xf32>
    %208 = vector.extract_strided_slice %206 {offsets = [8, 0], sizes = [8, 32], strides = [1, 1]} : vector<16x32xf32> to vector<8x32xf32>
    %209 = tpu.concatenate %207, %208 in 1 : vector<8x32xf32>, vector<8x32xf32> -> vector<8x64xf32>
    %c1 = arith.constant 1 : index
    %c0_70 = arith.constant 0 : index
    %c0_71 = arith.constant 0 : index
    %210 = vector.load %arg4[%c1, %c0_70, %c0_71] : memref<2x32x96xf32, #tpu.memory_space<vmem>>, vector<1x32x96xf32>
    %211 = vector.shape_cast %210 : vector<1x32x96xf32> to vector<32x96xf32>
    %212 = arith.truncf %206 : vector<16x32xf32> to vector<16x32xbf16>
    %213 = arith.truncf %211 : vector<32x96xf32> to vector<32x96xbf16>
    %cst_72 = arith.constant dense<0.000000e+00> : vector<16x96xf32>
    %214 = tpu.matmul %212, %213, %cst_72 {dimension_numbers = #tpu.dot_dimension_numbers<[1], [0], [0], [1], [0, 0, 1, 1], [], []>} : vector<16x32xbf16>, vector<32x96xbf16>, vector<16x96xf32> -> vector<16x96xf32>
    %c1_73 = arith.constant 1 : index
    %c0_74 = arith.constant 0 : index
    %c0_75 = arith.constant 0 : index
    %215 = vector.load %arg5[%c1_73, %c0_74, %c0_75] : memref<2x1x96xf32, #tpu.memory_space<vmem>>, vector<1x1x96xf32>
    %216 = vector.shape_cast %215 : vector<1x1x96xf32> to vector<1x96xf32>
    %217 = vector.broadcast %216 : vector<1x96xf32> to vector<16x96xf32>
    %218 = arith.addf %214, %217 : vector<16x96xf32>
    %219 = vector.extract_strided_slice %218 {offsets = [0, 0], sizes = [16, 8], strides = [1, 1]} : vector<16x96xf32> to vector<16x8xf32>
    %220 = vector.shape_cast %219 : vector<16x8xf32> to vector<2x8x8xf32>
    %221 = vector.extract_strided_slice %218 {offsets = [0, 8], sizes = [16, 8], strides = [1, 1]} : vector<16x96xf32> to vector<16x8xf32>
    %222 = vector.shape_cast %221 : vector<16x8xf32> to vector<2x8x8xf32>
    %223 = vector.extract_strided_slice %218 {offsets = [0, 16], sizes = [16, 8], strides = [1, 1]} : vector<16x96xf32> to vector<16x8xf32>
    %224 = vector.shape_cast %223 : vector<16x8xf32> to vector<2x8x8xf32>
    %225 = vector.extract_strided_slice %218 {offsets = [0, 24], sizes = [16, 8], strides = [1, 1]} : vector<16x96xf32> to vector<16x8xf32>
    %226 = vector.shape_cast %225 : vector<16x8xf32> to vector<2x8x8xf32>
    %227 = tpu.concatenate %220, %222, %224, %226 in 0 : vector<2x8x8xf32>, vector<2x8x8xf32>, vector<2x8x8xf32>, vector<2x8x8xf32> -> vector<8x8x8xf32>
    %228 = vector.extract_strided_slice %218 {offsets = [0, 32], sizes = [16, 8], strides = [1, 1]} : vector<16x96xf32> to vector<16x8xf32>
    %229 = vector.shape_cast %228 : vector<16x8xf32> to vector<2x8x8xf32>
    %230 = vector.extract_strided_slice %218 {offsets = [0, 40], sizes = [16, 8], strides = [1, 1]} : vector<16x96xf32> to vector<16x8xf32>
    %231 = vector.shape_cast %230 : vector<16x8xf32> to vector<2x8x8xf32>
    %232 = vector.extract_strided_slice %218 {offsets = [0, 48], sizes = [16, 8], strides = [1, 1]} : vector<16x96xf32> to vector<16x8xf32>
    %233 = vector.shape_cast %232 : vector<16x8xf32> to vector<2x8x8xf32>
    %234 = vector.extract_strided_slice %218 {offsets = [0, 56], sizes = [16, 8], strides = [1, 1]} : vector<16x96xf32> to vector<16x8xf32>
    %235 = vector.shape_cast %234 : vector<16x8xf32> to vector<2x8x8xf32>
    %236 = tpu.concatenate %229, %231, %233, %235 in 0 : vector<2x8x8xf32>, vector<2x8x8xf32>, vector<2x8x8xf32>, vector<2x8x8xf32> -> vector<8x8x8xf32>
    %237 = vector.extract_strided_slice %218 {offsets = [0, 64], sizes = [16, 8], strides = [1, 1]} : vector<16x96xf32> to vector<16x8xf32>
    %238 = vector.shape_cast %237 : vector<16x8xf32> to vector<2x8x8xf32>
    %239 = vector.extract_strided_slice %218 {offsets = [0, 72], sizes = [16, 8], strides = [1, 1]} : vector<16x96xf32> to vector<16x8xf32>
    %240 = vector.shape_cast %239 : vector<16x8xf32> to vector<2x8x8xf32>
    %241 = vector.extract_strided_slice %218 {offsets = [0, 80], sizes = [16, 8], strides = [1, 1]} : vector<16x96xf32> to vector<16x8xf32>
    %242 = vector.shape_cast %241 : vector<16x8xf32> to vector<2x8x8xf32>
    %243 = vector.extract_strided_slice %218 {offsets = [0, 88], sizes = [16, 8], strides = [1, 1]} : vector<16x96xf32> to vector<16x8xf32>
    %244 = vector.shape_cast %243 : vector<16x8xf32> to vector<2x8x8xf32>
    %245 = tpu.concatenate %238, %240, %242, %244 in 0 : vector<2x8x8xf32>, vector<2x8x8xf32>, vector<2x8x8xf32>, vector<2x8x8xf32> -> vector<8x8x8xf32>
    %246 = arith.truncf %227 : vector<8x8x8xf32> to vector<8x8x8xbf16>
    %247 = arith.truncf %236 : vector<8x8x8xf32> to vector<8x8x8xbf16>
    "tpu.trace_start"() <{level = 10 : i32, message = "bqd,bkd->bqk"}> : () -> ()
    %cst_76 = arith.constant dense<0.000000e+00> : vector<8x8x8xf32>
    %248 = tpu.matmul %246, %247, %cst_76 {dimension_numbers = #tpu.dot_dimension_numbers<[2], [2], [1], [1], [0, 0, 0, 1, 1, 1], [0], [0]>} : vector<8x8x8xbf16>, vector<8x8x8xbf16>, vector<8x8x8xf32> -> vector<8x8x8xf32>
    "tpu.trace_stop"() : () -> ()
    %cst_77 = arith.constant 0.353553385 : f32
    %249 = vector.broadcast %cst_77 : f32 to vector<8x8x8xf32>
    %250 = arith.mulf %248, %249 : vector<8x8x8xf32>
    %251 = vector.broadcast %2 : vector<8x1x8xf32> to vector<8x8x8xf32>
    %252 = arith.addf %250, %251 : vector<8x8x8xf32>
    %cst_78 = arith.constant dense<0xFF800000> : vector<8x8xf32>
    %253 = vector.multi_reduction <maximumf>, %252, %cst_78 [2] : vector<8x8x8xf32> to vector<8x8xf32>
    %254 = vector.shape_cast %253 : vector<8x8xf32> to vector<8x8x1xf32>
    %255 = vector.broadcast %254 : vector<8x8x1xf32> to vector<8x8x8xf32>
    %256 = arith.subf %252, %255 : vector<8x8x8xf32>
    %257 = math.exp %256 : vector<8x8x8xf32>
    %cst_79 = arith.constant dense<0.000000e+00> : vector<8x8xf32>
    %258 = vector.multi_reduction <add>, %257, %cst_79 [2] : vector<8x8x8xf32> to vector<8x8xf32>
    %259 = vector.shape_cast %258 : vector<8x8xf32> to vector<8x8x1xf32>
    %260 = tpu.reciprocal %259 {approx = true} : vector<8x8x1xf32> -> vector<8x8x1xf32>
    %261 = vector.broadcast %260 : vector<8x8x1xf32> to vector<8x8x8xf32>
    %262 = arith.mulf %257, %261 : vector<8x8x8xf32>
    %263 = vector.extract_strided_slice %262 {offsets = [0, 0, 0], sizes = [1, 8, 8], strides = [1, 1, 1]} : vector<8x8x8xf32> to vector<1x8x8xf32>
    %264 = vector.shape_cast %263 : vector<1x8x8xf32> to vector<8x8xf32>
    %265 = vector.extract_strided_slice %262 {offsets = [1, 0, 0], sizes = [1, 8, 8], strides = [1, 1, 1]} : vector<8x8x8xf32> to vector<1x8x8xf32>
    %266 = vector.shape_cast %265 : vector<1x8x8xf32> to vector<8x8xf32>
    %267 = vector.extract_strided_slice %262 {offsets = [2, 0, 0], sizes = [1, 8, 8], strides = [1, 1, 1]} : vector<8x8x8xf32> to vector<1x8x8xf32>
    %268 = vector.shape_cast %267 : vector<1x8x8xf32> to vector<8x8xf32>
    %269 = vector.extract_strided_slice %262 {offsets = [3, 0, 0], sizes = [1, 8, 8], strides = [1, 1, 1]} : vector<8x8x8xf32> to vector<1x8x8xf32>
    %270 = vector.shape_cast %269 : vector<1x8x8xf32> to vector<8x8xf32>
    %271 = vector.extract_strided_slice %262 {offsets = [4, 0, 0], sizes = [1, 8, 8], strides = [1, 1, 1]} : vector<8x8x8xf32> to vector<1x8x8xf32>
    %272 = vector.shape_cast %271 : vector<1x8x8xf32> to vector<8x8xf32>
    %273 = vector.extract_strided_slice %262 {offsets = [5, 0, 0], sizes = [1, 8, 8], strides = [1, 1, 1]} : vector<8x8x8xf32> to vector<1x8x8xf32>
    %274 = vector.shape_cast %273 : vector<1x8x8xf32> to vector<8x8xf32>
    %275 = vector.extract_strided_slice %262 {offsets = [6, 0, 0], sizes = [1, 8, 8], strides = [1, 1, 1]} : vector<8x8x8xf32> to vector<1x8x8xf32>
    %276 = vector.shape_cast %275 : vector<1x8x8xf32> to vector<8x8xf32>
    %277 = vector.extract_strided_slice %262 {offsets = [7, 0, 0], sizes = [1, 8, 8], strides = [1, 1, 1]} : vector<8x8x8xf32> to vector<1x8x8xf32>
    %278 = vector.shape_cast %277 : vector<1x8x8xf32> to vector<8x8xf32>
    %279 = tpu.concatenate %264, %266, %268, %270, %272, %274, %276, %278 in 1 : vector<8x8xf32>, vector<8x8xf32>, vector<8x8xf32>, vector<8x8xf32>, vector<8x8xf32>, vector<8x8xf32>, vector<8x8xf32>, vector<8x8xf32> -> vector<8x64xf32>
    %280 = arith.truncf %262 : vector<8x8x8xf32> to vector<8x8x8xbf16>
    %281 = arith.truncf %245 : vector<8x8x8xf32> to vector<8x8x8xbf16>
    "tpu.trace_start"() <{level = 10 : i32, message = "bqk,bkd->bqd"}> : () -> ()
    %cst_80 = arith.constant dense<0.000000e+00> : vector<8x8x8xf32>
    %282 = tpu.matmul %280, %281, %cst_80 {dimension_numbers = #tpu.dot_dimension_numbers<[2], [1], [1], [2], [0, 0, 0, 1, 1, 2], [0], [0]>} : vector<8x8x8xbf16>, vector<8x8x8xbf16>, vector<8x8x8xf32> -> vector<8x8x8xf32>
    "tpu.trace_stop"() : () -> ()
    %283 = vector.extract_strided_slice %282 {offsets = [0, 0, 0], sizes = [2, 8, 8], strides = [1, 1, 1]} : vector<8x8x8xf32> to vector<2x8x8xf32>
    %284 = vector.shape_cast %283 : vector<2x8x8xf32> to vector<16x8xf32>
    %285 = vector.extract_strided_slice %282 {offsets = [2, 0, 0], sizes = [2, 8, 8], strides = [1, 1, 1]} : vector<8x8x8xf32> to vector<2x8x8xf32>
    %286 = vector.shape_cast %285 : vector<2x8x8xf32> to vector<16x8xf32>
    %287 = vector.extract_strided_slice %282 {offsets = [4, 0, 0], sizes = [2, 8, 8], strides = [1, 1, 1]} : vector<8x8x8xf32> to vector<2x8x8xf32>
    %288 = vector.shape_cast %287 : vector<2x8x8xf32> to vector<16x8xf32>
    %289 = vector.extract_strided_slice %282 {offsets = [6, 0, 0], sizes = [2, 8, 8], strides = [1, 1, 1]} : vector<8x8x8xf32> to vector<2x8x8xf32>
    %290 = vector.shape_cast %289 : vector<2x8x8xf32> to vector<16x8xf32>
    %291 = tpu.concatenate %284, %286, %288, %290 in 1 : vector<16x8xf32>, vector<16x8xf32>, vector<16x8xf32>, vector<16x8xf32> -> vector<16x32xf32>
    %c1_81 = arith.constant 1 : index
    %c0_82 = arith.constant 0 : index
    %c0_83 = arith.constant 0 : index
    %292 = vector.load %arg6[%c1_81, %c0_82, %c0_83] : memref<2x32x32xf32, #tpu.memory_space<vmem>>, vector<1x32x32xf32>
    %293 = vector.shape_cast %292 : vector<1x32x32xf32> to vector<32x32xf32>
    %294 = arith.truncf %291 : vector<16x32xf32> to vector<16x32xbf16>
    %295 = arith.truncf %293 : vector<32x32xf32> to vector<32x32xbf16>
    %cst_84 = arith.constant dense<0.000000e+00> : vector<16x32xf32>
    %296 = tpu.matmul %294, %295, %cst_84 {dimension_numbers = #tpu.dot_dimension_numbers<[1], [0], [0], [1], [0, 0, 1, 1], [], []>} : vector<16x32xbf16>, vector<32x32xbf16>, vector<16x32xf32> -> vector<16x32xf32>
    %c1_85 = arith.constant 1 : index
    %c0_86 = arith.constant 0 : index
    %c0_87 = arith.constant 0 : index
    %297 = vector.load %arg7[%c1_85, %c0_86, %c0_87] : memref<2x1x32xf32, #tpu.memory_space<vmem>>, vector<1x1x32xf32>
    %298 = vector.shape_cast %297 : vector<1x1x32xf32> to vector<1x32xf32>
    %299 = vector.broadcast %298 : vector<1x32xf32> to vector<16x32xf32>
    %300 = arith.addf %296, %299 : vector<16x32xf32>
    %301 = vector.extract_strided_slice %300 {offsets = [0, 0], sizes = [8, 32], strides = [1, 1]} : vector<16x32xf32> to vector<8x32xf32>
    %302 = vector.extract_strided_slice %300 {offsets = [8, 0], sizes = [8, 32], strides = [1, 1]} : vector<16x32xf32> to vector<8x32xf32>
    %303 = tpu.concatenate %301, %302 in 1 : vector<8x32xf32>, vector<8x32xf32> -> vector<8x64xf32>
    %304 = arith.addf %300, %206 : vector<16x32xf32>
    %c1_88 = arith.constant 1 : index
    %c0_89 = arith.constant 0 : index
    %c0_90 = arith.constant 0 : index
    %305 = vector.load %arg8[%c1_88, %c0_89, %c0_90] : memref<2x1x32xf32, #tpu.memory_space<vmem>>, vector<1x1x32xf32>
    %306 = vector.shape_cast %305 : vector<1x1x32xf32> to vector<1x32xf32>
    %c1_91 = arith.constant 1 : index
    %c0_92 = arith.constant 0 : index
    %c0_93 = arith.constant 0 : index
    %307 = vector.load %arg9[%c1_91, %c0_92, %c0_93] : memref<2x1x32xf32, #tpu.memory_space<vmem>>, vector<1x1x32xf32>
    %308 = vector.shape_cast %307 : vector<1x1x32xf32> to vector<1x32xf32>
    %cst_94 = arith.constant dense<0.000000e+00> : vector<16xf32>
    %309 = vector.multi_reduction <add>, %304, %cst_94 [1] : vector<16x32xf32> to vector<16xf32>
    %310 = vector.shape_cast %309 : vector<16xf32> to vector<16x1xf32>
    %cst_95 = arith.constant 3.200000e+01 : f32
    %311 = vector.broadcast %cst_95 : f32 to vector<16x1xf32>
    %312 = arith.divf %310, %311 : vector<16x1xf32>
    %313 = vector.broadcast %312 : vector<16x1xf32> to vector<16x32xf32>
    %314 = arith.subf %304, %313 : vector<16x32xf32>
    %315 = arith.mulf %314, %314 : vector<16x32xf32>
    %cst_96 = arith.constant dense<0.000000e+00> : vector<16xf32>
    %316 = vector.multi_reduction <add>, %315, %cst_96 [1] : vector<16x32xf32> to vector<16xf32>
    %317 = vector.shape_cast %316 : vector<16xf32> to vector<16x1xf32>
    %cst_97 = arith.constant 3.200000e+01 : f32
    %318 = vector.broadcast %cst_97 : f32 to vector<16x1xf32>
    %319 = arith.divf %317, %318 : vector<16x1xf32>
    %320 = vector.broadcast %312 : vector<16x1xf32> to vector<16x32xf32>
    %321 = arith.subf %304, %320 : vector<16x32xf32>
    %cst_98 = arith.constant 9.99999996E-13 : f32
    %322 = vector.broadcast %cst_98 : f32 to vector<16x1xf32>
    %323 = arith.addf %319, %322 : vector<16x1xf32>
    %324 = math.rsqrt %323 : vector<16x1xf32>
    %325 = vector.broadcast %324 : vector<16x1xf32> to vector<16x32xf32>
    %326 = arith.mulf %321, %325 : vector<16x32xf32>
    %327 = vector.broadcast %306 : vector<1x32xf32> to vector<16x32xf32>
    %328 = arith.mulf %326, %327 : vector<16x32xf32>
    %329 = vector.broadcast %308 : vector<1x32xf32> to vector<16x32xf32>
    %330 = arith.addf %328, %329 : vector<16x32xf32>
    %c1_99 = arith.constant 1 : index
    %c0_100 = arith.constant 0 : index
    %c0_101 = arith.constant 0 : index
    %331 = vector.load %arg10[%c1_99, %c0_100, %c0_101] : memref<2x32x64xf32, #tpu.memory_space<vmem>>, vector<1x32x64xf32>
    %332 = vector.shape_cast %331 : vector<1x32x64xf32> to vector<32x64xf32>
    %333 = arith.truncf %330 : vector<16x32xf32> to vector<16x32xbf16>
    %334 = arith.truncf %332 : vector<32x64xf32> to vector<32x64xbf16>
    %cst_102 = arith.constant dense<0.000000e+00> : vector<16x64xf32>
    %335 = tpu.matmul %333, %334, %cst_102 {dimension_numbers = #tpu.dot_dimension_numbers<[1], [0], [0], [1], [0, 0, 1, 1], [], []>} : vector<16x32xbf16>, vector<32x64xbf16>, vector<16x64xf32> -> vector<16x64xf32>
    %c1_103 = arith.constant 1 : index
    %c0_104 = arith.constant 0 : index
    %c0_105 = arith.constant 0 : index
    %336 = vector.load %arg11[%c1_103, %c0_104, %c0_105] : memref<2x1x64xf32, #tpu.memory_space<vmem>>, vector<1x1x64xf32>
    %337 = vector.shape_cast %336 : vector<1x1x64xf32> to vector<1x64xf32>
    %338 = vector.broadcast %337 : vector<1x64xf32> to vector<16x64xf32>
    %339 = arith.addf %335, %338 : vector<16x64xf32>
    %cst_106 = arith.constant 5.000000e-01 : f32
    %340 = vector.broadcast %cst_106 : f32 to vector<16x64xf32>
    %341 = arith.mulf %340, %339 : vector<16x64xf32>
    %cst_107 = arith.constant 4.471500e-02 : f32
    %342 = vector.broadcast %cst_107 : f32 to vector<16x64xf32>
    %343 = arith.mulf %342, %339 : vector<16x64xf32>
    %344 = arith.mulf %343, %339 : vector<16x64xf32>
    %345 = arith.mulf %344, %339 : vector<16x64xf32>
    %346 = arith.addf %339, %345 : vector<16x64xf32>
    %cst_108 = arith.constant 0.797884583 : f32
    %347 = vector.broadcast %cst_108 : f32 to vector<16x64xf32>
    %348 = arith.mulf %347, %346 : vector<16x64xf32>
    %349 = math.tanh %348 : vector<16x64xf32>
    %cst_109 = arith.constant 1.000000e+00 : f32
    %350 = vector.broadcast %cst_109 : f32 to vector<16x64xf32>
    %351 = arith.addf %350, %349 : vector<16x64xf32>
    %352 = arith.mulf %341, %351 : vector<16x64xf32>
    %c1_110 = arith.constant 1 : index
    %c0_111 = arith.constant 0 : index
    %c0_112 = arith.constant 0 : index
    %353 = vector.load %arg12[%c1_110, %c0_111, %c0_112] : memref<2x64x32xf32, #tpu.memory_space<vmem>>, vector<1x64x32xf32>
    %354 = vector.shape_cast %353 : vector<1x64x32xf32> to vector<64x32xf32>
    %355 = arith.truncf %352 : vector<16x64xf32> to vector<16x64xbf16>
    %356 = arith.truncf %354 : vector<64x32xf32> to vector<64x32xbf16>
    %cst_113 = arith.constant dense<0.000000e+00> : vector<16x32xf32>
    %357 = tpu.matmul %355, %356, %cst_113 {dimension_numbers = #tpu.dot_dimension_numbers<[1], [0], [0], [1], [0, 0, 1, 1], [], []>} : vector<16x64xbf16>, vector<64x32xbf16>, vector<16x32xf32> -> vector<16x32xf32>
    %c1_114 = arith.constant 1 : index
    %c0_115 = arith.constant 0 : index
    %c0_116 = arith.constant 0 : index
    %358 = vector.load %arg13[%c1_114, %c0_115, %c0_116] : memref<2x1x32xf32, #tpu.memory_space<vmem>>, vector<1x1x32xf32>
    %359 = vector.shape_cast %358 : vector<1x1x32xf32> to vector<1x32xf32>
    %360 = vector.broadcast %359 : vector<1x32xf32> to vector<16x32xf32>
    %361 = arith.addf %357, %360 : vector<16x32xf32>
    %362 = arith.addf %361, %330 : vector<16x32xf32>
    %c1_117 = arith.constant 1 : index
    %c0_118 = arith.constant 0 : index
    %c0_119 = arith.constant 0 : index
    %363 = vector.load %arg14[%c1_117, %c0_118, %c0_119] : memref<2x1x32xf32, #tpu.memory_space<vmem>>, vector<1x1x32xf32>
    %364 = vector.shape_cast %363 : vector<1x1x32xf32> to vector<1x32xf32>
    %c1_120 = arith.constant 1 : index
    %c0_121 = arith.constant 0 : index
    %c0_122 = arith.constant 0 : index
    %365 = vector.load %arg15[%c1_120, %c0_121, %c0_122] : memref<2x1x32xf32, #tpu.memory_space<vmem>>, vector<1x1x32xf32>
    %366 = vector.shape_cast %365 : vector<1x1x32xf32> to vector<1x32xf32>
    %cst_123 = arith.constant dense<0.000000e+00> : vector<16xf32>
    %367 = vector.multi_reduction <add>, %362, %cst_123 [1] : vector<16x32xf32> to vector<16xf32>
    %368 = vector.shape_cast %367 : vector<16xf32> to vector<16x1xf32>
    %cst_124 = arith.constant 3.200000e+01 : f32
    %369 = vector.broadcast %cst_124 : f32 to vector<16x1xf32>
    %370 = arith.divf %368, %369 : vector<16x1xf32>
    %371 = vector.broadcast %370 : vector<16x1xf32> to vector<16x32xf32>
    %372 = arith.subf %362, %371 : vector<16x32xf32>
    %373 = arith.mulf %372, %372 : vector<16x32xf32>
    %cst_125 = arith.constant dense<0.000000e+00> : vector<16xf32>
    %374 = vector.multi_reduction <add>, %373, %cst_125 [1] : vector<16x32xf32> to vector<16xf32>
    %375 = vector.shape_cast %374 : vector<16xf32> to vector<16x1xf32>
    %cst_126 = arith.constant 3.200000e+01 : f32
    %376 = vector.broadcast %cst_126 : f32 to vector<16x1xf32>
    %377 = arith.divf %375, %376 : vector<16x1xf32>
    %378 = vector.broadcast %370 : vector<16x1xf32> to vector<16x32xf32>
    %379 = arith.subf %362, %378 : vector<16x32xf32>
    %cst_127 = arith.constant 9.99999996E-13 : f32
    %380 = vector.broadcast %cst_127 : f32 to vector<16x1xf32>
    %381 = arith.addf %377, %380 : vector<16x1xf32>
    %382 = math.rsqrt %381 : vector<16x1xf32>
    %383 = vector.broadcast %382 : vector<16x1xf32> to vector<16x32xf32>
    %384 = arith.mulf %379, %383 : vector<16x32xf32>
    %385 = vector.broadcast %364 : vector<1x32xf32> to vector<16x32xf32>
    %386 = arith.mulf %384, %385 : vector<16x32xf32>
    %387 = vector.broadcast %366 : vector<1x32xf32> to vector<16x32xf32>
    %388 = arith.addf %386, %387 : vector<16x32xf32>
    %389 = vector.extract_strided_slice %388 {offsets = [0, 0], sizes = [8, 32], strides = [1, 1]} : vector<16x32xf32> to vector<8x32xf32>
    %390 = vector.extract_strided_slice %388 {offsets = [8, 0], sizes = [8, 32], strides = [1, 1]} : vector<16x32xf32> to vector<8x32xf32>
    %391 = tpu.concatenate %389, %390 in 1 : vector<8x32xf32>, vector<8x32xf32> -> vector<8x64xf32>
    %392 = tpu.concatenate %209, %391 in 1 : vector<8x64xf32>, vector<8x64xf32> -> vector<8x128xf32>
    %c0_128 = arith.constant 0 : index
    %c0_129 = arith.constant 0 : index
    %393 = vector.load %arg18[%c0_128, %c0_129] : memref<8x128xf32, #tpu.memory_space<vmem>>, vector<8x128xf32>
    tpu.vector_store %arg18[%c0_128, %c0_129], %392 {strides = array<i32>} : memref<8x128xf32, #tpu.memory_space<vmem>>, vector<8x128xf32>,
    %394 = tpu.concatenate %97, %279 in 1 : vector<8x64xf32>, vector<8x64xf32> -> vector<8x128xf32>
    %c0_130 = arith.constant 0 : index
    %c0_131 = arith.constant 0 : index
    %395 = vector.load %arg19[%c0_130, %c0_131] : memref<8x128xf32, #tpu.memory_space<vmem>>, vector<8x128xf32>
    tpu.vector_store %arg19[%c0_130, %c0_131], %394 {strides = array<i32>} : memref<8x128xf32, #tpu.memory_space<vmem>>, vector<8x128xf32>,
    %396 = tpu.concatenate %121, %303 in 1 : vector<8x64xf32>, vector<8x64xf32> -> vector<8x128xf32>
    %c0_132 = arith.constant 0 : index
    %c0_133 = arith.constant 0 : index
    %397 = vector.load %arg20[%c0_132, %c0_133] : memref<8x128xf32, #tpu.memory_space<vmem>>, vector<8x128xf32>
    tpu.vector_store %arg20[%c0_132, %c0_133], %396 {strides = array<i32>} : memref<8x128xf32, #tpu.memory_space<vmem>>, vector<8x128xf32>,
    %c0_134 = arith.constant 0 : index
    %c0_135 = arith.constant 0 : index
    %398 = vector.load %arg16[%c0_134, %c0_135] : memref<32x128xf32, #tpu.memory_space<vmem>>, vector<32x128xf32>
    %399 = arith.truncf %388 : vector<16x32xf32> to vector<16x32xbf16>
    %400 = arith.truncf %398 : vector<32x128xf32> to vector<32x128xbf16>
    %cst_136 = arith.constant dense<0.000000e+00> : vector<16x128xf32>
    %401 = tpu.matmul %399, %400, %cst_136 {dimension_numbers = #tpu.dot_dimension_numbers<[1], [0], [0], [1], [0, 0, 1, 1], [], []>} : vector<16x32xbf16>, vector<32x128xbf16>, vector<16x128xf32> -> vector<16x128xf32>
    %c0_137 = arith.constant 0 : index
    %c0_138 = arith.constant 0 : index
    %402 = vector.load %arg17[%c0_137, %c0_138] : memref<1x128xf32, #tpu.memory_space<vmem>>, vector<1x128xf32>
    %403 = vector.broadcast %402 : vector<1x128xf32> to vector<16x128xf32>
    %404 = arith.addf %401, %403 : vector<16x128xf32>
    %c0_139 = arith.constant 0 : index
    %c0_140 = arith.constant 0 : index
    %405 = vector.load %arg21[%c0_139, %c0_140] : memref<16x128xf32, #tpu.memory_space<vmem>>, vector<16x128xf32>
    tpu.vector_store %arg21[%c0_139, %c0_140], %404 {strides = array<i32>} : memref<16x128xf32, #tpu.memory_space<vmem>>, vector<16x128xf32>,
    return
  }
}

</mosaic_0001>

<llo_original>
// kernel: tpu_custom_call.1
$region0: #{tpu_custom_call.1}
  #allocation0 [shape = 'u32[]', space=smem, size = 0x4, offset = 0x4, fixed_abs, tag = 'smem constant byte address 0x4 - core index']
  #allocation1 [shape = 'u32[144,128]{1,0:T(1,128)}', space=vmem, size = 0x12000, scoped, tag = 'internal scratch']
  %s0 = inlined_call_operand.hbm [shape: f32[16,32], index: 0, kind: input, shape index: {}]
  %s1 = inlined_call_operand.vmem [shape: f32[2,8], index: 1, kind: input, shape index: {}]
  %s2 = inlined_call_operand.hbm [shape: f32[1,32], index: 2, kind: input, shape index: {}]
  %s3 = inlined_call_operand.hbm [shape: f32[1,32], index: 3, kind: input, shape index: {}]
  %s4 = inlined_call_operand.vmem [shape: f32[2,32,96], index: 4, kind: input, shape index: {}]
  %s5 = inlined_call_operand.hbm [shape: f32[2,1,96], index: 5, kind: input, shape index: {}]
  %s6 = inlined_call_operand.vmem [shape: f32[2,32,32], index: 6, kind: input, shape index: {}]
  %s7 = inlined_call_operand.hbm [shape: f32[2,1,32], index: 7, kind: input, shape index: {}]
  %s8 = inlined_call_operand.hbm [shape: f32[2,1,32], index: 8, kind: input, shape index: {}]
  %s9 = inlined_call_operand.hbm [shape: f32[2,1,32], index: 9, kind: input, shape index: {}]
  %s10 = inlined_call_operand.vmem [shape: f32[2,32,64], index: 10, kind: input, shape index: {}]
  %s11 = inlined_call_operand.vmem [shape: f32[2,1,64], index: 11, kind: input, shape index: {}]
  %s12 = inlined_call_operand.vmem [shape: f32[2,64,32], index: 12, kind: input, shape index: {}]
  %s13 = inlined_call_operand.vmem [shape: f32[2,1,32], index: 13, kind: input, shape index: {}]
  %s14 = inlined_call_operand.vmem [shape: f32[2,1,32], index: 14, kind: input, shape index: {}]
  %s15 = inlined_call_operand.vmem [shape: f32[2,1,32], index: 15, kind: input, shape index: {}]
  %s16 = inlined_call_operand.vmem [shape: f32[32,128], index: 16, kind: input, shape index: {}]
  %s17 = inlined_call_operand.vmem [shape: f32[1,128], index: 17, kind: input, shape index: {}]
  %s18 = inlined_call_operand.hbm [shape: f32[8,128], index: 18, kind: output, shape index: {0}]
  %s19 = inlined_call_operand.hbm [shape: f32[8,128], index: 19, kind: output, shape index: {1}]
  %s20 = inlined_call_operand.hbm [shape: f32[8,128], index: 20, kind: output, shape index: {2}]
  %s21 = inlined_call_operand.hbm [shape: f32[16,128], index: 21, kind: output, shape index: {3}]
  %22 = xla_tuple %s18, %s19, %s20, %s21
  %s23 = sld [smem:[#allocation0]]
  $region134: #{tpu_custom_call.1} parent=0
    _
  %s25 = ssub.s32 1, %s23
  %s26 = scalar_select 0, %s25, %s23
  $region1: #{tpu_custom_call.1} parent=0
    #allocation2 [shape = 'u8[8192]{0}', space=vmem, size = 0x2000, scoped, tag = 'input window, operand 0, single buffered']
    #allocation3 [shape = 's32[1]{0}', space=sflag, size = 0x4, scoped, tag = 'scoped memory for tpu_custom_call.1']
    #allocation4 [shape = 's32[1]{0}', space=sflag, size = 0x4, scoped, tag = 'scoped memory for tpu_custom_call.1']
    #allocation5 [shape = 'u8[512]{0}', space=vmem, size = 0x400, scoped, tag = 'input window, operand 2, single buffered']
    #allocation6 [shape = 's32[1]{0}', space=sflag, size = 0x4, scoped, tag = 'scoped memory for tpu_custom_call.1']
    #allocation7 [shape = 'u8[512]{0}', space=vmem, size = 0x400, scoped, tag = 'input window, operand 3, single buffered']
    #allocation8 [shape = 'u8[1024]{0}', space=vmem, size = 0x400, scoped, tag = 'input window, operand 5, single buffered']
    #allocation9 [shape = 's32[1]{0}', space=sflag, size = 0x4, scoped, tag = 'scoped memory for tpu_custom_call.1']
    #allocation10 [shape = 'u8[1024]{0}', space=vmem, size = 0x400, scoped, tag = 'input window, operand 7, single buffered']
    #allocation11 [shape = 'u8[1024]{0}', space=vmem, size = 0x400, scoped, tag = 'input window, operand 8, single buffered']
    #allocation12 [shape = 's32[1]{0}', space=sflag, size = 0x4, scoped, tag = 'scoped memory for tpu_custom_call.1']
    #allocation13 [shape = 'u8[1024]{0}', space=vmem, size = 0x400, scoped, tag = 'input window, operand 9, single buffered']
    #allocation14 [shape = 'u8[4096]{0}', space=vmem, size = 0x1000, scoped, tag = 'output window, operand 0, single buffered']
    #allocation15 [shape = 'u8[4096]{0}', space=vmem, size = 0x1000, scoped, tag = 'output window, operand 1, single buffered']
    #allocation16 [shape = 's32[1]{0}', space=sflag, size = 0x4, scoped, tag = 'scoped memory for tpu_custom_call.1']
    #allocation17 [shape = 'u8[4096]{0}', space=vmem, size = 0x1000, scoped, tag = 'output window, operand 2, single buffered']
    #allocation18 [shape = 'u8[8192]{0}', space=vmem, size = 0x2000, scoped, tag = 'output window, operand 3, single buffered']
    #allocation19 [shape = 's32[1]{0}', space=sflag, size = 0x4, scoped, tag = 'scoped memory for tpu_custom_call.1']
    %27 = vsyncpa [#allocation3], 0
    %28 = vsyncpa [#allocation6], 0
    %29 = vsyncpa [#allocation9], 0
    %30 = vsyncpa [#allocation12], 0
    %31 = vsyncpa [#allocation4], 0
    %32 = vsyncpa [#allocation16], 0
    %33 = vsyncpa [#allocation19], 0
    // Predicated region
    $region2: #{tpu_custom_call.1} parent=1 // pred_check
      _
    $region3: #{tpu_custom_call.1} parent=1 // pred_check_branch
      %35 = sbr.rel (0) target = $region5
    $region4: #{tpu_custom_call.1} parent=1 // pred_region
      %s37 = ssub.s32 256, 256
      %38 = vsyncadd [#allocation3], %s37
      %s39 = sshll.u32 [#allocation2], 4
      %s40 = int_to_ptr.vmem [resolvable:$true] %s39
      %45 = dma.hbm_to_vmem [thread:$0]  %s0, 256, %s40, [#allocation3], 128, 128, 8
    $region5: #{tpu_custom_call.1} parent=1 // pred_fallthru
      _
    // Predicated region
    $region6: #{tpu_custom_call.1} parent=1 // pred_check
      _
    $region7: #{tpu_custom_call.1} parent=1 // pred_check_branch
      %47 = sbr.rel (0) target = $region9
    $region8: #{tpu_custom_call.1} parent=1 // pred_region
      _
    $region9: #{tpu_custom_call.1} parent=1 // pred_fallthru
      _
    // Predicated region
    $region10: #{tpu_custom_call.1} parent=1 // pred_check
      _
    $region11: #{tpu_custom_call.1} parent=1 // pred_check_branch
      %49 = sbr.rel (0) target = $region13
    $region12: #{tpu_custom_call.1} parent=1 // pred_region
      %s51 = ssub.s32 16, 16
      %52 = vsyncadd [#allocation6], %s51
      %s54 = sshll.u32 [#allocation5], 4
      %s55 = int_to_ptr.vmem [resolvable:$true] %s54
      %57 = dma.hbm_to_vmem [thread:$0]  %s2, 16, %s55, [#allocation6]
    $region13: #{tpu_custom_call.1} parent=1 // pred_fallthru
      _
    // Predicated region
    $region14: #{tpu_custom_call.1} parent=1 // pred_check
      _
    $region15: #{tpu_custom_call.1} parent=1 // pred_check_branch
      %59 = sbr.rel (0) target = $region17
    $region16: #{tpu_custom_call.1} parent=1 // pred_region
      %s61 = ssub.s32 16, 16
      %62 = vsyncadd [#allocation6], %s61
      %s64 = sshll.u32 [#allocation7], 4
      %s65 = int_to_ptr.vmem [resolvable:$true] %s64
      %67 = dma.hbm_to_vmem [thread:$0]  %s3, 16, %s65, [#allocation6]
    $region17: #{tpu_custom_call.1} parent=1 // pred_fallthru
      _
    // Predicated region
    $region18: #{tpu_custom_call.1} parent=1 // pred_check
      _
    $region19: #{tpu_custom_call.1} parent=1 // pred_check_branch
      %69 = sbr.rel (0) target = $region21
    $region20: #{tpu_custom_call.1} parent=1 // pred_region
      _
    $region21: #{tpu_custom_call.1} parent=1 // pred_fallthru
      _
    // Predicated region
    $region22: #{tpu_custom_call.1} parent=1 // pred_check
      _
    $region23: #{tpu_custom_call.1} parent=1 // pred_check_branch
      %71 = sbr.rel (0) target = $region25
    $region24: #{tpu_custom_call.1} parent=1 // pred_region
      %s73 = ssub.s32 32, 32
      %74 = vsyncadd [#allocation9], %s73
      %s75 = sshll.u32 [#allocation8], 4
      %s76 = int_to_ptr.vmem [resolvable:$true] %s75
      %81 = dma.hbm_to_vmem [thread:$0]  %s5, 32, %s76, [#allocation9], 16, 16, 1
    $region25: #{tpu_custom_call.1} parent=1 // pred_fallthru
      _
    // Predicated region
    $region26: #{tpu_custom_call.1} parent=1 // pred_check
      _
    $region27: #{tpu_custom_call.1} parent=1 // pred_check_branch
      %83 = sbr.rel (0) target = $region29
    $region28: #{tpu_custom_call.1} parent=1 // pred_region
      _
    $region29: #{tpu_custom_call.1} parent=1 // pred_fallthru
      _
    // Predicated region
    $region30: #{tpu_custom_call.1} parent=1 // pred_check
      _
    $region31: #{tpu_custom_call.1} parent=1 // pred_check_branch
      %85 = sbr.rel (0) target = $region33
    $region32: #{tpu_custom_call.1} parent=1 // pred_region
      %s87 = ssub.s32 32, 32
      %88 = vsyncadd [#allocation9], %s87
      %s89 = sshll.u32 [#allocation10], 4
      %s90 = int_to_ptr.vmem [resolvable:$true] %s89
      %95 = dma.hbm_to_vmem [thread:$0]  %s7, 32, %s90, [#allocation9], 16, 16, 1
    $region33: #{tpu_custom_call.1} parent=1 // pred_fallthru
      _
    // Predicated region
    $region34: #{tpu_custom_call.1} parent=1 // pred_check
      _
    $region35: #{tpu_custom_call.1} parent=1 // pred_check_branch
      %97 = sbr.rel (0) target = $region37
    $region36: #{tpu_custom_call.1} parent=1 // pred_region
      %s99 = ssub.s32 32, 32
      %100 = vsyncadd [#allocation12], %s99
      %s101 = sshll.u32 [#allocation11], 4
      %s102 = int_to_ptr.vmem [resolvable:$true] %s101
      %107 = dma.hbm_to_vmem [thread:$0]  %s8, 32, %s102, [#allocation12], 16, 16, 1
    $region37: #{tpu_custom_call.1} parent=1 // pred_fallthru
      _
    // Predicated region
    $region38: #{tpu_custom_call.1} parent=1 // pred_check
      _
    $region39: #{tpu_custom_call.1} parent=1 // pred_check_branch
      %109 = sbr.rel (0) target = $region41
    $region40: #{tpu_custom_call.1} parent=1 // pred_region
      %s111 = ssub.s32 32, 32
      %112 = vsyncadd [#allocation12], %s111
      %s113 = sshll.u32 [#allocation13], 4
      %s114 = int_to_ptr.vmem [resolvable:$true] %s113
      %119 = dma.hbm_to_vmem [thread:$0]  %s9, 32, %s114, [#allocation12], 16, 16, 1
    $region41: #{tpu_custom_call.1} parent=1 // pred_fallthru
      _
    // Predicated region
    $region42: #{tpu_custom_call.1} parent=1 // pred_check
      _
    $region43: #{tpu_custom_call.1} parent=1 // pred_check_branch
      %121 = sbr.rel (0) target = $region45
    $region44: #{tpu_custom_call.1} parent=1 // pred_region
      _
    $region45: #{tpu_custom_call.1} parent=1 // pred_fallthru
      _
    // Predicated region
    $region46: #{tpu_custom_call.1} parent=1 // pred_check
      _
    $region47: #{tpu_custom_call.1} parent=1 // pred_check_branch
      %123 = sbr.rel (0) target = $region49
    $region48: #{tpu_custom_call.1} parent=1 // pred_region
      _
    $region49: #{tpu_custom_call.1} parent=1 // pred_fallthru
      _
    // Predicated region
    $region50: #{tpu_custom_call.1} parent=1 // pred_check
      _
    $region51: #{tpu_custom_call.1} parent=1 // pred_check_branch
      %125 = sbr.rel (0) target = $region53
    $region52: #{tpu_custom_call.1} parent=1 // pred_region
      _
    $region53: #{tpu_custom_call.1} parent=1 // pred_fallthru
      _
    // Predicated region
    $region54: #{tpu_custom_call.1} parent=1 // pred_check
      _
    $region55: #{tpu_custom_call.1} parent=1 // pred_check_branch
      %127 = sbr.rel (0) target = $region57
    $region56: #{tpu_custom_call.1} parent=1 // pred_region
      _
    $region57: #{tpu_custom_call.1} parent=1 // pred_fallthru
      _
    // Predicated region
    $region58: #{tpu_custom_call.1} parent=1 // pred_check
      _
    $region59: #{tpu_custom_call.1} parent=1 // pred_check_branch
      %129 = sbr.rel (0) target = $region61
    $region60: #{tpu_custom_call.1} parent=1 // pred_region
      _
    $region61: #{tpu_custom_call.1} parent=1 // pred_fallthru
      _
    // Predicated region
    $region62: #{tpu_custom_call.1} parent=1 // pred_check
      _
    $region63: #{tpu_custom_call.1} parent=1 // pred_check_branch
      %131 = sbr.rel (0) target = $region65
    $region64: #{tpu_custom_call.1} parent=1 // pred_region
      _
    $region65: #{tpu_custom_call.1} parent=1 // pred_fallthru
      _
    // Predicated region
    $region66: #{tpu_custom_call.1} parent=1 // pred_check
      _
    $region67: #{tpu_custom_call.1} parent=1 // pred_check_branch
      %133 = sbr.rel (0) target = $region69
    $region68: #{tpu_custom_call.1} parent=1 // pred_region
      _
    $region69: #{tpu_custom_call.1} parent=1 // pred_fallthru
      _
    // Predicated region
    $region70: #{tpu_custom_call.1} parent=1 // pred_check
      _
    $region71: #{tpu_custom_call.1} parent=1 // pred_check_branch
      %135 = sbr.rel (0) target = $region73
    $region72: #{tpu_custom_call.1} parent=1 // pred_region
      _
    $region73: #{tpu_custom_call.1} parent=1 // pred_fallthru
      _
    // Predicated region
    $region74: #{tpu_custom_call.1} parent=1 // pred_check
      _
    $region75: #{tpu_custom_call.1} parent=1 // pred_check_branch
      %137 = sbr.rel (0) target = $region77
    $region76: #{tpu_custom_call.1} parent=1 // pred_region
      %138 = dma.done [#allocation3], 256
    $region77: #{tpu_custom_call.1} parent=1 // pred_fallthru
      _
    // Predicated region
    $region78: #{tpu_custom_call.1} parent=1 // pred_check
      _
    $region79: #{tpu_custom_call.1} parent=1 // pred_check_branch
      %140 = sbr.rel (0) target = $region81
    $region80: #{tpu_custom_call.1} parent=1 // pred_region
      %141 = dma.done [#allocation6], 16
    $region81: #{tpu_custom_call.1} parent=1 // pred_fallthru
      _
    // Predicated region
    $region82: #{tpu_custom_call.1} parent=1 // pred_check
      _
    $region83: #{tpu_custom_call.1} parent=1 // pred_check_branch
      %143 = sbr.rel (0) target = $region85
    $region84: #{tpu_custom_call.1} parent=1 // pred_region
      %144 = dma.done [#allocation6], 16
    $region85: #{tpu_custom_call.1} parent=1 // pred_fallthru
      _
    // Predicated region
    $region86: #{tpu_custom_call.1} parent=1 // pred_check
      _
    $region87: #{tpu_custom_call.1} parent=1 // pred_check_branch
      %146 = sbr.rel (0) target = $region89
    $region88: #{tpu_custom_call.1} parent=1 // pred_region
      %147 = dma.done [#allocation9], 32
    $region89: #{tpu_custom_call.1} parent=1 // pred_fallthru
      _
    // Predicated region
    $region90: #{tpu_custom_call.1} parent=1 // pred_check
      _
    $region91: #{tpu_custom_call.1} parent=1 // pred_check_branch
      %149 = sbr.rel (0) target = $region93
    $region92: #{tpu_custom_call.1} parent=1 // pred_region
      %150 = dma.done [#allocation9], 32
    $region93: #{tpu_custom_call.1} parent=1 // pred_fallthru
      _
    // Predicated region
    $region94: #{tpu_custom_call.1} parent=1 // pred_check
      _
    $region95: #{tpu_custom_call.1} parent=1 // pred_check_branch
      %152 = sbr.rel (0) target = $region97
    $region96: #{tpu_custom_call.1} parent=1 // pred_region
      %153 = dma.done [#allocation12], 32
    $region97: #{tpu_custom_call.1} parent=1 // pred_fallthru
      _
    // Predicated region
    $region98: #{tpu_custom_call.1} parent=1 // pred_check
      _
    $region99: #{tpu_custom_call.1} parent=1 // pred_check_branch
      %155 = sbr.rel (0) target = $region101
    $region100: #{tpu_custom_call.1} parent=1 // pred_region
      %156 = dma.done [#allocation12], 32
    $region101: #{tpu_custom_call.1} parent=1 // pred_fallthru
      _
    %v158 = vld [vmem:[%s1] sm:$0x3]
    %v160 = vrot.slane %v158, 6
    %v162 = vrot.slane %v158, 4
    %v164 = vrot.slane %v158, 2
    %vm166 = vcmask 1041408
    %v167 = vsel %vm166, %v158, %v160
    %vm168 = vcmask 1043456
    %v169 = vsel %vm168, %v167, %v162
    %vm170 = vcmask 1045504
    %v171 = vsel %vm170, %v169, %v164
    %v173 = vcombine.high %v171, %v171
    %v175 = vunpack.c.l.s4 1966171168
    %v176 = vunpack.c.0.s8 %v175
    %v177 = vlaneseq
    %v178 = vshrl.u32 %v177, 7
    %v179 = vsub.s32 %v176, %v178
    %v180 = vrot.slane %v171, %v179
    %v182 = vunpack.c.l.s4 1966171168
    %v183 = vunpack.c.0.s8 %v182
    %v184 = vlaneseq
    %v185 = vshrl.u32 %v184, 7
    %v186 = vsub.s32 %v183, %v185
    %v187 = vrot.slane %v173, %v186
    %v188 = vcombine.high %v180, %v180
    %v189 = vcombine.high %v187, %v187
    %v191 = vunpack.c.l.s4 1966171168
    %v192 = vunpack.c.0.s8 %v191
    %v193 = vlaneseq
    %v194 = vshrl.u32 %v193, 7
    %v195 = vsub.s32 %v192, %v194
    %v196 = vrot.slane %v180, %v195
    %v198 = vunpack.c.l.s4 1966171168
    %v199 = vunpack.c.0.s8 %v198
    %v200 = vlaneseq
    %v201 = vshrl.u32 %v200, 7
    %v202 = vsub.s32 %v199, %v201
    %v203 = vrot.slane %v187, %v202
    %v205 = vunpack.c.l.s4 1966171168
    %v206 = vunpack.c.0.s8 %v205
    %v207 = vlaneseq
    %v208 = vshrl.u32 %v207, 7
    %v209 = vsub.s32 %v206, %v208
    %v210 = vrot.slane %v188, %v209
    %v212 = vunpack.c.l.s4 1966171168
    %v213 = vunpack.c.0.s8 %v212
    %v214 = vlaneseq
    %v215 = vshrl.u32 %v214, 7
    %v216 = vsub.s32 %v213, %v215
    %v217 = vrot.slane %v189, %v216
    %v218 = vcombine.high %v196, %v196
    %v219 = vcombine.high %v203, %v203
    %v220 = vcombine.high %v210, %v210
    %v221 = vcombine.high %v217, %v217
    %v222 = vld [vmem:[#allocation2] sm:$0xff]
    %v223 = vld [vmem:[#allocation2 + $0x8] sm:$0xff]
    %v224 = vld [vmem:[#allocation5] sm:$0x1]
    %v225 = vld [vmem:[#allocation7] sm:$0x1]
    %vm226 = vcmask 261120
    %v227 = vsel %vm226, %v222, 0.0
    %228 = vadd.xlane.f32.xlu0 %v227
    %v229 = vpop.xlane.xlu0 %228
    %v230 = vsel %vm226, %v223, 0.0
    %231 = vadd.xlane.f32.xlu0 %v230
    %v232 = vpop.xlane.xlu0 %231
    %v233 = vrcp.pop 32.0
    %v234 = vmul.f32 %v229, %v233
    %v235 = vmul.f32 %v232, %v233
    %v236 = vsub.f32 %v222, %v234
    %v237 = vsub.f32 %v223, %v235
    %v238 = vmul.f32 %v236, %v236
    %v239 = vmul.f32 %v237, %v237
    %v240 = vsel %vm226, %v238, 0.0
    %241 = vadd.xlane.f32.xlu0 %v240
    %v242 = vpop.xlane.xlu0 %241
    %v243 = vsel %vm226, %v239, 0.0
    %244 = vadd.xlane.f32.xlu0 %v243
    %v245 = vpop.xlane.xlu0 %244
    %v246 = vmul.f32 %v242, %v233
    %v247 = vmul.f32 %v245, %v233
    %v248 = vadd.f32 %v246, 1e-12
    %v249 = vadd.f32 %v247, 1e-12
    %v250 = vrsqrt.pop %v248
    %v251 = vrsqrt.pop %v249
    %v252 = vmul.f32 %v236, %v250
    %v253 = vmul.f32 %v237, %v251
    %v255 = vlaneseq
    %v256 = vshrl.u32 %v255, 7
    %v257 = vsub.s32 0, %v256
    %v258 = vrot.slane %v224, %v257
    %v260 = vmul.f32 %v252, %v258
    %v261 = vmul.f32 %v253, %v258
    %v263 = vlaneseq
    %v264 = vshrl.u32 %v263, 7
    %v265 = vsub.s32 0, %v264
    %v266 = vrot.slane %v225, %v265
    %v268 = vadd.f32 %v260, %v266
    %v269 = vadd.f32 %v261, %v266
    %v270 = vld [vmem:[%s4] sm:$0xff]
    %v271 = vld [vmem:[%s4 + $0x8] sm:$0xff]
    %v272 = vld [vmem:[%s4 + $0x10] sm:$0xff]
    %v273 = vld [vmem:[%s4 + $0x18] sm:$0xff]
    %v274 = vpack.c.bf16 %v269, %v268
    %v275 = vpack.c.bf16 %v271, %v270
    %v276 = vpack.c.bf16 %v273, %v272
    %v277 = vld [vmem:[#allocation8] sm:$0x1]
    %v279 = vlaneseq
    %v280 = vshrl.u32 %v279, 7
    %v281 = vsub.s32 0, %v280
    %v282 = vrot.slane %v277, %v281
    %v285 = vsel %vm226, %v274, 0
    %287 = vmatprep.subr.bf16.mxu0 0
    %288 = vmatpush1.bf16.msra.mxu0 %v275
    %289 = vmatprep.subr.bf16.mxu0 0
    %290 = vmatpush1.bf16.msra.mxu0 %v276
    %291 = vmatprep.subr.bf16.mxu0 0
    %292 = vmatpush1.bf16.msra.mxu0 0
    %293 = vmatprep.subr.bf16.mxu0 0
    %294 = vmatpush1.bf16.msra.mxu0 0
    %295 = vmatprep.subr.bf16.mxu0 0
    %296 = vmatpush1.bf16.msra.mxu0 0
    %297 = vmatprep.subr.bf16.mxu0 0
    %298 = vmatpush1.bf16.msra.mxu0 0
    %299 = vmatprep.subr.bf16.mxu0 0
    %300 = vmatpush1.bf16.msra.mxu0 0
    %301 = vmatprep.subr.bf16.mxu0 0
    %302 = vmatpush1.bf16.msra.mxu0 0
    %303 = vmatprep.subr.bf16.mxu0 0
    %304 = vmatpush1.bf16.msra.mxu0 0
    %305 = vmatprep.subr.bf16.mxu0 0
    %306 = vmatpush1.bf16.msra.mxu0 0
    %307 = vmatprep.subr.bf16.mxu0 0
    %308 = vmatpush1.bf16.msra.mxu0 0
    %309 = vmatprep.subr.bf16.mxu0 0
    %310 = vmatpush1.bf16.msra.mxu0 0
    %311 = vmatprep.subr.bf16.mxu0 0
    %312 = vmatpush1.bf16.msra.mxu0 0
    %313 = vmatprep.subr.bf16.mxu0 0
    %314 = vmatpush1.bf16.msra.mxu0 0
    %315 = vmatprep.subr.bf16.mxu0 0
    %316 = vmatpush1.bf16.msra.mxu0 0
    %317 = vmatprep.subr.bf16.mxu0 0
    %318 = vmatpush1.bf16.msra.mxu0 0
    %319 = vmatprep.mubr.bf16.mxu0 0
    %320 = vmatmul.mubr.bf16.gmra.mrb[0].mxu0 %v285
    %v321 = vpop.f32.mrb[0].mxu0
    %v322 = vadd.f32 %v282, %v321
    %v323 = vpop.f32.mrb[0].mxu0
    %v324 = vpop.f32.mrb[0].mxu0
    %v325 = vadd.f32 %v282, %v324
    %v326 = vpop.f32.mrb[0].mxu0
    %327 = vdwg.mxu0
    %330 = vrot.lane.b32.xlu0 %v322, 120
    %v331 = vpop.permute.xlu0 %330
    %332 = vrot.lane.b32.xlu0 %v325, 120
    %v333 = vpop.permute.xlu0 %332
    %336 = vrot.lane.b32.xlu0 %v322, 112
    %v337 = vpop.permute.xlu0 %336
    %338 = vrot.lane.b32.xlu0 %v325, 112
    %v339 = vpop.permute.xlu0 %338
    %342 = vrot.lane.b32.xlu0 %v322, 104
    %v343 = vpop.permute.xlu0 %342
    %344 = vrot.lane.b32.xlu0 %v325, 104
    %v345 = vpop.permute.xlu0 %344
    %v348 = vpack.c.bf16 %v322, %v322
    %v349 = vpack.c.bf16 %v325, %v325
    %v350 = vpack.c.bf16 %v331, %v331
    %v351 = vpack.c.bf16 %v333, %v333
    %v352 = vpack.c.bf16 %v337, %v337
    %v353 = vpack.c.bf16 %v339, %v339
    %v354 = vpack.c.bf16 %v343, %v343
    %v355 = vpack.c.bf16 %v345, %v345
    %357 = vrot.lane.b32.xlu0 %v348, 96
    %v358 = vpop.permute.xlu0 %357
    %vm359 = vcmask 64512
    %v361 = vsel %vm359, %v348, 0
    %v364 = vsel %vm359, %v358, 0
    %366 = vmatprep.subr.bf16.mxu0 0
    %367 = vmatpush1.bf16.xpose.msra.mxu0 %v364
    %368 = vmatprep.subr.bf16.mxu0 0
    %369 = vmatpush1.bf16.xpose.msra.mxu0 0
    %370 = vmatprep.subr.bf16.mxu0 0
    %371 = vmatpush1.bf16.xpose.msra.mxu0 0
    %372 = vmatprep.subr.bf16.mxu0 0
    %373 = vmatpush1.bf16.xpose.msra.mxu0 0
    %374 = vmatprep.subr.bf16.mxu0 0
    %375 = vmatpush1.bf16.xpose.msra.mxu0 0
    %376 = vmatprep.subr.bf16.mxu0 0
    %377 = vmatpush1.bf16.xpose.msra.mxu0 0
    %378 = vmatprep.subr.bf16.mxu0 0
    %379 = vmatpush1.bf16.xpose.msra.mxu0 0
    %380 = vmatprep.subr.bf16.mxu0 0
    %381 = vmatpush1.bf16.xpose.msra.mxu0 0
    %382 = vmatprep.subr.bf16.mxu0 0
    %383 = vmatpush1.bf16.xpose.msra.mxu0 0
    %384 = vmatprep.subr.bf16.mxu0 0
    %385 = vmatpush1.bf16.xpose.msra.mxu0 0
    %386 = vmatprep.subr.bf16.mxu0 0
    %387 = vmatpush1.bf16.xpose.msra.mxu0 0
    %388 = vmatprep.subr.bf16.mxu0 0
    %389 = vmatpush1.bf16.xpose.msra.mxu0 0
    %390 = vmatprep.subr.bf16.mxu0 0
    %391 = vmatpush1.bf16.xpose.msra.mxu0 0
    %392 = vmatprep.subr.bf16.mxu0 0
    %393 = vmatpush1.bf16.xpose.msra.mxu0 0
    %394 = vmatprep.subr.bf16.mxu0 0
    %395 = vmatpush1.bf16.xpose.msra.mxu0 0
    %396 = vmatprep.subr.bf16.mxu0 0
    %397 = vmatpush1.bf16.xpose.msra.mxu0 0
    %398 = vmatprep.mubr.bf16.mxu0 0
    %399 = vmatmul.mubr.bf16.gmra.mrb[0].mxu0 %v361
    %v400 = vpop.f32.mrb[0].mxu0
    %v401 = vadd.f32 0.0, %v400
    %v402 = vpop.f32.mrb[0].mxu0
    %v403 = vpop.f32.mrb[0].mxu0
    %v404 = vpop.f32.mrb[0].mxu0
    %405 = vdwg.mxu0
    %407 = vrot.lane.b32.xlu0 %v349, 96
    %v408 = vpop.permute.xlu0 %407
    %v410 = vsel %vm359, %v349, 0
    %v413 = vsel %vm359, %v408, 0
    %415 = vmatprep.subr.bf16.mxu0 0
    %416 = vmatpush1.bf16.xpose.msra.mxu0 %v413
    %417 = vmatprep.subr.bf16.mxu0 0
    %418 = vmatpush1.bf16.xpose.msra.mxu0 0
    %419 = vmatprep.subr.bf16.mxu0 0
    %420 = vmatpush1.bf16.xpose.msra.mxu0 0
    %421 = vmatprep.subr.bf16.mxu0 0
    %422 = vmatpush1.bf16.xpose.msra.mxu0 0
    %423 = vmatprep.subr.bf16.mxu0 0
    %424 = vmatpush1.bf16.xpose.msra.mxu0 0
    %425 = vmatprep.subr.bf16.mxu0 0
    %426 = vmatpush1.bf16.xpose.msra.mxu0 0
    %427 = vmatprep.subr.bf16.mxu0 0
    %428 = vmatpush1.bf16.xpose.msra.mxu0 0
    %429 = vmatprep.subr.bf16.mxu0 0
    %430 = vmatpush1.bf16.xpose.msra.mxu0 0
    %431 = vmatprep.subr.bf16.mxu0 0
    %432 = vmatpush1.bf16.xpose.msra.mxu0 0
    %433 = vmatprep.subr.bf16.mxu0 0
    %434 = vmatpush1.bf16.xpose.msra.mxu0 0
    %435 = vmatprep.subr.bf16.mxu0 0
    %436 = vmatpush1.bf16.xpose.msra.mxu0 0
    %437 = vmatprep.subr.bf16.mxu0 0
    %438 = vmatpush1.bf16.xpose.msra.mxu0 0
    %439 = vmatprep.subr.bf16.mxu0 0
    %440 = vmatpush1.bf16.xpose.msra.mxu0 0
    %441 = vmatprep.subr.bf16.mxu0 0
    %442 = vmatpush1.bf16.xpose.msra.mxu0 0
    %443 = vmatprep.subr.bf16.mxu0 0
    %444 = vmatpush1.bf16.xpose.msra.mxu0 0
    %445 = vmatprep.subr.bf16.mxu0 0
    %446 = vmatpush1.bf16.xpose.msra.mxu0 0
    %447 = vmatprep.mubr.bf16.mxu0 0
    %448 = vmatmul.mubr.bf16.gmra.mrb[0].mxu0 %v410
    %v449 = vpop.f32.mrb[0].mxu0
    %v450 = vadd.f32 0.0, %v449
    %v451 = vpop.f32.mrb[0].mxu0
    %v452 = vpop.f32.mrb[0].mxu0
    %v453 = vpop.f32.mrb[0].mxu0
    %454 = vdwg.mxu0
    %456 = vrot.lane.b32.xlu0 %v350, 96
    %v457 = vpop.permute.xlu0 %456
    %v459 = vsel %vm359, %v350, 0
    %v462 = vsel %vm359, %v457, 0
    %464 = vmatprep.subr.bf16.mxu0 0
    %465 = vmatpush1.bf16.xpose.msra.mxu0 %v462
    %466 = vmatprep.subr.bf16.mxu0 0
    %467 = vmatpush1.bf16.xpose.msra.mxu0 0
    %468 = vmatprep.subr.bf16.mxu0 0
    %469 = vmatpush1.bf16.xpose.msra.mxu0 0
    %470 = vmatprep.subr.bf16.mxu0 0
    %471 = vmatpush1.bf16.xpose.msra.mxu0 0
    %472 = vmatprep.subr.bf16.mxu0 0
    %473 = vmatpush1.bf16.xpose.msra.mxu0 0
    %474 = vmatprep.subr.bf16.mxu0 0
    %475 = vmatpush1.bf16.xpose.msra.mxu0 0
    %476 = vmatprep.subr.bf16.mxu0 0
    %477 = vmatpush1.bf16.xpose.msra.mxu0 0
    %478 = vmatprep.subr.bf16.mxu0 0
    %479 = vmatpush1.bf16.xpose.msra.mxu0 0
    %480 = vmatprep.subr.bf16.mxu0 0
    %481 = vmatpush1.bf16.xpose.msra.mxu0 0
    %482 = vmatprep.subr.bf16.mxu0 0
    %483 = vmatpush1.bf16.xpose.msra.mxu0 0
    %484 = vmatprep.subr.bf16.mxu0 0
    %485 = vmatpush1.bf16.xpose.msra.mxu0 0
    %486 = vmatprep.subr.bf16.mxu0 0
    %487 = vmatpush1.bf16.xpose.msra.mxu0 0
    %488 = vmatprep.subr.bf16.mxu0 0
    %489 = vmatpush1.bf16.xpose.msra.mxu0 0
    %490 = vmatprep.subr.bf16.mxu0 0
    %491 = vmatpush1.bf16.xpose.msra.mxu0 0
    %492 = vmatprep.subr.bf16.mxu0 0
    %493 = vmatpush1.bf16.xpose.msra.mxu0 0
    %494 = vmatprep.subr.bf16.mxu0 0
    %495 = vmatpush1.bf16.xpose.msra.mxu0 0
    %496 = vmatprep.mubr.bf16.mxu0 0
    %497 = vmatmul.mubr.bf16.gmra.mrb[0].mxu0 %v459
    %v498 = vpop.f32.mrb[0].mxu0
    %v499 = vadd.f32 0.0, %v498
    %v500 = vpop.f32.mrb[0].mxu0
    %v501 = vpop.f32.mrb[0].mxu0
    %v502 = vpop.f32.mrb[0].mxu0
    %503 = vdwg.mxu0
    %505 = vrot.lane.b32.xlu0 %v351, 96
    %v506 = vpop.permute.xlu0 %505
    %v508 = vsel %vm359, %v351, 0
    %v511 = vsel %vm359, %v506, 0
    %513 = vmatprep.subr.bf16.mxu0 0
    %514 = vmatpush1.bf16.xpose.msra.mxu0 %v511
    %515 = vmatprep.subr.bf16.mxu0 0
    %516 = vmatpush1.bf16.xpose.msra.mxu0 0
    %517 = vmatprep.subr.bf16.mxu0 0
    %518 = vmatpush1.bf16.xpose.msra.mxu0 0
    %519 = vmatprep.subr.bf16.mxu0 0
    %520 = vmatpush1.bf16.xpose.msra.mxu0 0
    %521 = vmatprep.subr.bf16.mxu0 0
    %522 = vmatpush1.bf16.xpose.msra.mxu0 0
    %523 = vmatprep.subr.bf16.mxu0 0
    %524 = vmatpush1.bf16.xpose.msra.mxu0 0
    %525 = vmatprep.subr.bf16.mxu0 0
    %526 = vmatpush1.bf16.xpose.msra.mxu0 0
    %527 = vmatprep.subr.bf16.mxu0 0
    %528 = vmatpush1.bf16.xpose.msra.mxu0 0
    %529 = vmatprep.subr.bf16.mxu0 0
    %530 = vmatpush1.bf16.xpose.msra.mxu0 0
    %531 = vmatprep.subr.bf16.mxu0 0
    %532 = vmatpush1.bf16.xpose.msra.mxu0 0
    %533 = vmatprep.subr.bf16.mxu0 0
    %534 = vmatpush1.bf16.xpose.msra.mxu0 0
    %535 = vmatprep.subr.bf16.mxu0 0
    %536 = vmatpush1.bf16.xpose.msra.mxu0 0
    %537 = vmatprep.subr.bf16.mxu0 0
    %538 = vmatpush1.bf16.xpose.msra.mxu0 0
    %539 = vmatprep.subr.bf16.mxu0 0
    %540 = vmatpush1.bf16.xpose.msra.mxu0 0
    %541 = vmatprep.subr.bf16.mxu0 0
    %542 = vmatpush1.bf16.xpose.msra.mxu0 0
    %543 = vmatprep.subr.bf16.mxu0 0
    %544 = vmatpush1.bf16.xpose.msra.mxu0 0
    %545 = vmatprep.mubr.bf16.mxu0 0
    %546 = vmatmul.mubr.bf16.gmra.mrb[0].mxu0 %v508
    %v547 = vpop.f32.mrb[0].mxu0
    %v548 = vadd.f32 0.0, %v547
    %v549 = vpop.f32.mrb[0].mxu0
    %v550 = vpop.f32.mrb[0].mxu0
    %v551 = vpop.f32.mrb[0].mxu0
    %552 = vdwg.mxu0
    %554 = vrot.lane.b32.xlu0 %v352, 96
    %v555 = vpop.permute.xlu0 %554
    %v557 = vsel %vm359, %v352, 0
    %v560 = vsel %vm359, %v555, 0
    %562 = vmatprep.subr.bf16.mxu0 0
    %563 = vmatpush1.bf16.xpose.msra.mxu0 %v560
    %564 = vmatprep.subr.bf16.mxu0 0
    %565 = vmatpush1.bf16.xpose.msra.mxu0 0
    %566 = vmatprep.subr.bf16.mxu0 0
    %567 = vmatpush1.bf16.xpose.msra.mxu0 0
    %568 = vmatprep.subr.bf16.mxu0 0
    %569 = vmatpush1.bf16.xpose.msra.mxu0 0
    %570 = vmatprep.subr.bf16.mxu0 0
    %571 = vmatpush1.bf16.xpose.msra.mxu0 0
    %572 = vmatprep.subr.bf16.mxu0 0
    %573 = vmatpush1.bf16.xpose.msra.mxu0 0
    %574 = vmatprep.subr.bf16.mxu0 0
    %575 = vmatpush1.bf16.xpose.msra.mxu0 0
    %576 = vmatprep.subr.bf16.mxu0 0
    %577 = vmatpush1.bf16.xpose.msra.mxu0 0
    %578 = vmatprep.subr.bf16.mxu0 0
    %579 = vmatpush1.bf16.xpose.msra.mxu0 0
    %580 = vmatprep.subr.bf16.mxu0 0
    %581 = vmatpush1.bf16.xpose.msra.mxu0 0
    %582 = vmatprep.subr.bf16.mxu0 0
    %583 = vmatpush1.bf16.xpose.msra.mxu0 0
    %584 = vmatprep.subr.bf16.mxu0 0
    %585 = vmatpush1.bf16.xpose.msra.mxu0 0
    %586 = vmatprep.subr.bf16.mxu0 0
    %587 = vmatpush1.bf16.xpose.msra.mxu0 0
    %588 = vmatprep.subr.bf16.mxu0 0
    %589 = vmatpush1.bf16.xpose.msra.mxu0 0
    %590 = vmatprep.subr.bf16.mxu0 0
    %591 = vmatpush1.bf16.xpose.msra.mxu0 0
    %592 = vmatprep.subr.bf16.mxu0 0
    %593 = vmatpush1.bf16.xpose.msra.mxu0 0
    %594 = vmatprep.mubr.bf16.mxu0 0
    %595 = vmatmul.mubr.bf16.gmra.mrb[0].mxu0 %v557
    %v596 = vpop.f32.mrb[0].mxu0
    %v597 = vadd.f32 0.0, %v596
    %v598 = vpop.f32.mrb[0].mxu0
    %v599 = vpop.f32.mrb[0].mxu0
    %v600 = vpop.f32.mrb[0].mxu0
    %601 = vdwg.mxu0
    %603 = vrot.lane.b32.xlu0 %v353, 96
    %v604 = vpop.permute.xlu0 %603
    %v606 = vsel %vm359, %v353, 0
    %v609 = vsel %vm359, %v604, 0
    %611 = vmatprep.subr.bf16.mxu0 0
    %612 = vmatpush1.bf16.xpose.msra.mxu0 %v609
    %613 = vmatprep.subr.bf16.mxu0 0
    %614 = vmatpush1.bf16.xpose.msra.mxu0 0
    %615 = vmatprep.subr.bf16.mxu0 0
    %616 = vmatpush1.bf16.xpose.msra.mxu0 0
    %617 = vmatprep.subr.bf16.mxu0 0
    %618 = vmatpush1.bf16.xpose.msra.mxu0 0
    %619 = vmatprep.subr.bf16.mxu0 0
    %620 = vmatpush1.bf16.xpose.msra.mxu0 0
    %621 = vmatprep.subr.bf16.mxu0 0
    %622 = vmatpush1.bf16.xpose.msra.mxu0 0
    %623 = vmatprep.subr.bf16.mxu0 0
    %624 = vmatpush1.bf16.xpose.msra.mxu0 0
    %625 = vmatprep.subr.bf16.mxu0 0
    %626 = vmatpush1.bf16.xpose.msra.mxu0 0
    %627 = vmatprep.subr.bf16.mxu0 0
    %628 = vmatpush1.bf16.xpose.msra.mxu0 0
    %629 = vmatprep.subr.bf16.mxu0 0
    %630 = vmatpush1.bf16.xpose.msra.mxu0 0
    %631 = vmatprep.subr.bf16.mxu0 0
    %632 = vmatpush1.bf16.xpose.msra.mxu0 0
    %633 = vmatprep.subr.bf16.mxu0 0
    %634 = vmatpush1.bf16.xpose.msra.mxu0 0
    %635 = vmatprep.subr.bf16.mxu0 0
    %636 = vmatpush1.bf16.xpose.msra.mxu0 0
    %637 = vmatprep.subr.bf16.mxu0 0
    %638 = vmatpush1.bf16.xpose.msra.mxu0 0
    %639 = vmatprep.subr.bf16.mxu0 0
    %640 = vmatpush1.bf16.xpose.msra.mxu0 0
    %641 = vmatprep.subr.bf16.mxu0 0
    %642 = vmatpush1.bf16.xpose.msra.mxu0 0
    %643 = vmatprep.mubr.bf16.mxu0 0
    %644 = vmatmul.mubr.bf16.gmra.mrb[0].mxu0 %v606
    %v645 = vpop.f32.mrb[0].mxu0
    %v646 = vadd.f32 0.0, %v645
    %v647 = vpop.f32.mrb[0].mxu0
    %v648 = vpop.f32.mrb[0].mxu0
    %v649 = vpop.f32.mrb[0].mxu0
    %650 = vdwg.mxu0
    %652 = vrot.lane.b32.xlu0 %v354, 96
    %v653 = vpop.permute.xlu0 %652
    %v655 = vsel %vm359, %v354, 0
    %v658 = vsel %vm359, %v653, 0
    %660 = vmatprep.subr.bf16.mxu0 0
    %661 = vmatpush1.bf16.xpose.msra.mxu0 %v658
    %662 = vmatprep.subr.bf16.mxu0 0
    %663 = vmatpush1.bf16.xpose.msra.mxu0 0
    %664 = vmatprep.subr.bf16.mxu0 0
    %665 = vmatpush1.bf16.xpose.msra.mxu0 0
    %666 = vmatprep.subr.bf16.mxu0 0
    %667 = vmatpush1.bf16.xpose.msra.mxu0 0
    %668 = vmatprep.subr.bf16.mxu0 0
    %669 = vmatpush1.bf16.xpose.msra.mxu0 0
    %670 = vmatprep.subr.bf16.mxu0 0
    %671 = vmatpush1.bf16.xpose.msra.mxu0 0
    %672 = vmatprep.subr.bf16.mxu0 0
    %673 = vmatpush1.bf16.xpose.msra.mxu0 0
    %674 = vmatprep.subr.bf16.mxu0 0
    %675 = vmatpush1.bf16.xpose.msra.mxu0 0
    %676 = vmatprep.subr.bf16.mxu0 0
    %677 = vmatpush1.bf16.xpose.msra.mxu0 0
    %678 = vmatprep.subr.bf16.mxu0 0
    %679 = vmatpush1.bf16.xpose.msra.mxu0 0
    %680 = vmatprep.subr.bf16.mxu0 0
    %681 = vmatpush1.bf16.xpose.msra.mxu0 0
    %682 = vmatprep.subr.bf16.mxu0 0
    %683 = vmatpush1.bf16.xpose.msra.mxu0 0
    %684 = vmatprep.subr.bf16.mxu0 0
    %685 = vmatpush1.bf16.xpose.msra.mxu0 0
    %686 = vmatprep.subr.bf16.mxu0 0
    %687 = vmatpush1.bf16.xpose.msra.mxu0 0
    %688 = vmatprep.subr.bf16.mxu0 0
    %689 = vmatpush1.bf16.xpose.msra.mxu0 0
    %690 = vmatprep.subr.bf16.mxu0 0
    %691 = vmatpush1.bf16.xpose.msra.mxu0 0
    %692 = vmatprep.mubr.bf16.mxu0 0
    %693 = vmatmul.mubr.bf16.gmra.mrb[0].mxu0 %v655
    %v694 = vpop.f32.mrb[0].mxu0
    %v695 = vadd.f32 0.0, %v694
    %v696 = vpop.f32.mrb[0].mxu0
    %v697 = vpop.f32.mrb[0].mxu0
    %v698 = vpop.f32.mrb[0].mxu0
    %699 = vdwg.mxu0
    %701 = vrot.lane.b32.xlu0 %v355, 96
    %v702 = vpop.permute.xlu0 %701
    %v704 = vsel %vm359, %v355, 0
    %v707 = vsel %vm359, %v702, 0
    %709 = vmatprep.subr.bf16.mxu0 0
    %710 = vmatpush1.bf16.xpose.msra.mxu0 %v707
    %711 = vmatprep.subr.bf16.mxu0 0
    %712 = vmatpush1.bf16.xpose.msra.mxu0 0
    %713 = vmatprep.subr.bf16.mxu0 0
    %714 = vmatpush1.bf16.xpose.msra.mxu0 0
    %715 = vmatprep.subr.bf16.mxu0 0
    %716 = vmatpush1.bf16.xpose.msra.mxu0 0
    %717 = vmatprep.subr.bf16.mxu0 0
    %718 = vmatpush1.bf16.xpose.msra.mxu0 0
    %719 = vmatprep.subr.bf16.mxu0 0
    %720 = vmatpush1.bf16.xpose.msra.mxu0 0
    %721 = vmatprep.subr.bf16.mxu0 0
    %722 = vmatpush1.bf16.xpose.msra.mxu0 0
    %723 = vmatprep.subr.bf16.mxu0 0
    %724 = vmatpush1.bf16.xpose.msra.mxu0 0
    %725 = vmatprep.subr.bf16.mxu0 0
    %726 = vmatpush1.bf16.xpose.msra.mxu0 0
    %727 = vmatprep.subr.bf16.mxu0 0
    %728 = vmatpush1.bf16.xpose.msra.mxu0 0
    %729 = vmatprep.subr.bf16.mxu0 0
    %730 = vmatpush1.bf16.xpose.msra.mxu0 0
    %731 = vmatprep.subr.bf16.mxu0 0
    %732 = vmatpush1.bf16.xpose.msra.mxu0 0
    %733 = vmatprep.subr.bf16.mxu0 0
    %734 = vmatpush1.bf16.xpose.msra.mxu0 0
    %735 = vmatprep.subr.bf16.mxu0 0
    %736 = vmatpush1.bf16.xpose.msra.mxu0 0
    %737 = vmatprep.subr.bf16.mxu0 0
    %738 = vmatpush1.bf16.xpose.msra.mxu0 0
    %739 = vmatprep.subr.bf16.mxu0 0
    %740 = vmatpush1.bf16.xpose.msra.mxu0 0
    %741 = vmatprep.mubr.bf16.mxu0 0
    %742 = vmatmul.mubr.bf16.gmra.mrb[0].mxu0 %v704
    %v743 = vpop.f32.mrb[0].mxu0
    %v744 = vadd.f32 0.0, %v743
    %v745 = vpop.f32.mrb[0].mxu0
    %v746 = vpop.f32.mrb[0].mxu0
    %v747 = vpop.f32.mrb[0].mxu0
    %748 = vdwg.mxu0
    %v749 = vmul.f32 %v401, 0.35355338
    %v750 = vmul.f32 %v450, 0.35355338
    %v751 = vmul.f32 %v499, 0.35355338
    %v752 = vmul.f32 %v548, 0.35355338
    %v753 = vmul.f32 %v597, 0.35355338
    %v754 = vmul.f32 %v646, 0.35355338
    %v755 = vmul.f32 %v695, 0.35355338
    %v756 = vmul.f32 %v744, 0.35355338
    %v757 = vlaneseq
    %v758 = vshrl.u32 %v757, 7
    %v759 = vsub.s32 0, %v758
    %v760 = vrot.slane %v196, %v759
    %v761 = vlaneseq
    %v762 = vshrl.u32 %v761, 7
    %v763 = vsub.s32 0, %v762
    %v764 = vrot.slane %v210, %v763
    %v765 = vlaneseq
    %v766 = vshrl.u32 %v765, 7
    %v767 = vsub.s32 0, %v766
    %v768 = vrot.slane %v218, %v767
    %v769 = vlaneseq
    %v770 = vshrl.u32 %v769, 7
    %v771 = vsub.s32 0, %v770
    %v772 = vrot.slane %v220, %v771
    %v773 = vlaneseq
    %v774 = vshrl.u32 %v773, 7
    %v775 = vsub.s32 0, %v774
    %v776 = vrot.slane %v203, %v775
    %v777 = vlaneseq
    %v778 = vshrl.u32 %v777, 7
    %v779 = vsub.s32 0, %v778
    %v780 = vrot.slane %v217, %v779
    %v781 = vlaneseq
    %v782 = vshrl.u32 %v781, 7
    %v783 = vsub.s32 0, %v782
    %v784 = vrot.slane %v219, %v783
    %v785 = vlaneseq
    %v786 = vshrl.u32 %v785, 7
    %v787 = vsub.s32 0, %v786
    %v788 = vrot.slane %v221, %v787
    %v797 = vadd.f32 %v749, %v760
    %v798 = vadd.f32 %v750, %v764
    %v799 = vadd.f32 %v751, %v768
    %v800 = vadd.f32 %v752, %v772
    %v801 = vadd.f32 %v753, %v776
    %v802 = vadd.f32 %v754, %v780
    %v803 = vadd.f32 %v755, %v784
    %v804 = vadd.f32 %v756, %v788
    %v805 = vsel %vm359, %v797, -inf
    %806 = vmax.xlane.f32.xlu0 %v805
    %v807 = vpop.xlane.xlu0 %806
    %v808 = vsel %vm359, %v798, -inf
    %809 = vmax.xlane.f32.xlu0 %v808
    %v810 = vpop.xlane.xlu0 %809
    %v811 = vsel %vm359, %v799, -inf
    %812 = vmax.xlane.f32.xlu0 %v811
    %v813 = vpop.xlane.xlu0 %812
    %v814 = vsel %vm359, %v800, -inf
    %815 = vmax.xlane.f32.xlu0 %v814
    %v816 = vpop.xlane.xlu0 %815
    %v817 = vsel %vm359, %v801, -inf
    %818 = vmax.xlane.f32.xlu0 %v817
    %v819 = vpop.xlane.xlu0 %818
    %v820 = vsel %vm359, %v802, -inf
    %821 = vmax.xlane.f32.xlu0 %v820
    %v822 = vpop.xlane.xlu0 %821
    %v823 = vsel %vm359, %v803, -inf
    %824 = vmax.xlane.f32.xlu0 %v823
    %v825 = vpop.xlane.xlu0 %824
    %v826 = vsel %vm359, %v804, -inf
    %827 = vmax.xlane.f32.xlu0 %v826
    %v828 = vpop.xlane.xlu0 %827
    %v829 = vsub.f32 %v797, %v807
    %v830 = vsub.f32 %v798, %v810
    %v831 = vsub.f32 %v799, %v813
    %v832 = vsub.f32 %v800, %v816
    %v833 = vsub.f32 %v801, %v819
    %v834 = vsub.f32 %v802, %v822
    %v835 = vsub.f32 %v803, %v825
    %v836 = vsub.f32 %v804, %v828
    %v837 = vmul.f32 %v829, 1.442695
    %v838 = vpow.pop %v837
    %v839 = vmul.f32 %v830, 1.442695
    %v840 = vpow.pop %v839
    %v841 = vmul.f32 %v831, 1.442695
    %v842 = vpow.pop %v841
    %v843 = vmul.f32 %v832, 1.442695
    %v844 = vpow.pop %v843
    %v845 = vmul.f32 %v833, 1.442695
    %v846 = vpow.pop %v845
    %v847 = vmul.f32 %v834, 1.442695
    %v848 = vpow.pop %v847
    %v849 = vmul.f32 %v835, 1.442695
    %v850 = vpow.pop %v849
    %v851 = vmul.f32 %v836, 1.442695
    %v852 = vpow.pop %v851
    %v853 = vsel %vm359, %v838, 0.0
    %854 = vadd.xlane.f32.xlu0 %v853
    %v855 = vpop.xlane.xlu0 %854
    %v856 = vsel %vm359, %v840, 0.0
    %857 = vadd.xlane.f32.xlu0 %v856
    %v858 = vpop.xlane.xlu0 %857
    %v859 = vsel %vm359, %v842, 0.0
    %860 = vadd.xlane.f32.xlu0 %v859
    %v861 = vpop.xlane.xlu0 %860
    %v862 = vsel %vm359, %v844, 0.0
    %863 = vadd.xlane.f32.xlu0 %v862
    %v864 = vpop.xlane.xlu0 %863
    %v865 = vsel %vm359, %v846, 0.0
    %866 = vadd.xlane.f32.xlu0 %v865
    %v867 = vpop.xlane.xlu0 %866
    %v868 = vsel %vm359, %v848, 0.0
    %869 = vadd.xlane.f32.xlu0 %v868
    %v870 = vpop.xlane.xlu0 %869
    %v871 = vsel %vm359, %v850, 0.0
    %872 = vadd.xlane.f32.xlu0 %v871
    %v873 = vpop.xlane.xlu0 %872
    %v874 = vsel %vm359, %v852, 0.0
    %875 = vadd.xlane.f32.xlu0 %v874
    %v876 = vpop.xlane.xlu0 %875
    %v877 = vrcp.pop %v855
    %v878 = vrcp.pop %v858
    %v879 = vrcp.pop %v861
    %v880 = vrcp.pop %v864
    %v881 = vrcp.pop %v867
    %v882 = vrcp.pop %v870
    %v883 = vrcp.pop %v873
    %v884 = vrcp.pop %v876
    %v885 = vmul.f32 %v838, %v877
    %v886 = vmul.f32 %v840, %v878
    %v887 = vmul.f32 %v842, %v879
    %v888 = vmul.f32 %v844, %v880
    %v889 = vmul.f32 %v846, %v881
    %v890 = vmul.f32 %v848, %v882
    %v891 = vmul.f32 %v850, %v883
    %v892 = vmul.f32 %v852, %v884
    %894 = vrot.lane.b32.xlu0 %v886, 8
    %v895 = vpop.permute.xlu0 %894
    %898 = vrot.lane.b32.xlu0 %v887, 16
    %v899 = vpop.permute.xlu0 %898
    %902 = vrot.lane.b32.xlu0 %v888, 24
    %v903 = vpop.permute.xlu0 %902
    %906 = vrot.lane.b32.xlu0 %v889, 32
    %v907 = vpop.permute.xlu0 %906
    %910 = vrot.lane.b32.xlu0 %v890, 40
    %v911 = vpop.permute.xlu0 %910
    %914 = vrot.lane.b32.xlu0 %v891, 48
    %v915 = vpop.permute.xlu0 %914
    %918 = vrot.lane.b32.xlu0 %v892, 56
    %v919 = vpop.permute.xlu0 %918
    %v921 = vsel %vm359, %v885, %v895
    %vm922 = vcmask 130048
    %v923 = vsel %vm922, %v921, %v899
    %vm924 = vcmask 195584
    %v925 = vsel %vm924, %v923, %v903
    %v926 = vsel %vm226, %v925, %v907
    %vm927 = vcmask 326656
    %v928 = vsel %vm927, %v926, %v911
    %vm929 = vcmask 392192
    %v930 = vsel %vm929, %v928, %v915
    %vm931 = vcmask 457728
    %v932 = vsel %vm931, %v930, %v919
    %v933 = vpack.c.bf16 %v885, %v885
    %v934 = vpack.c.bf16 %v886, %v886
    %v935 = vpack.c.bf16 %v887, %v887
    %v936 = vpack.c.bf16 %v888, %v888
    %v937 = vpack.c.bf16 %v889, %v889
    %v938 = vpack.c.bf16 %v890, %v890
    %v939 = vpack.c.bf16 %v891, %v891
    %v940 = vpack.c.bf16 %v892, %v892
    %941 = vrot.lane.b32.xlu0 %v348, 64
    %v942 = vpop.permute.xlu0 %941
    %v944 = vsel %vm359, %v933, 0
    %v947 = vsel %vm168, %v942, 0
    %949 = vmatprep.subr.bf16.mxu0 0
    %950 = vmatpush1.bf16.msra.mxu0 %v947
    %951 = vmatprep.subr.bf16.mxu0 0
    %952 = vmatpush1.bf16.msra.mxu0 0
    %953 = vmatprep.subr.bf16.mxu0 0
    %954 = vmatpush1.bf16.msra.mxu0 0
    %955 = vmatprep.subr.bf16.mxu0 0
    %956 = vmatpush1.bf16.msra.mxu0 0
    %957 = vmatprep.subr.bf16.mxu0 0
    %958 = vmatpush1.bf16.msra.mxu0 0
    %959 = vmatprep.subr.bf16.mxu0 0
    %960 = vmatpush1.bf16.msra.mxu0 0
    %961 = vmatprep.subr.bf16.mxu0 0
    %962 = vmatpush1.bf16.msra.mxu0 0
    %963 = vmatprep.subr.bf16.mxu0 0
    %964 = vmatpush1.bf16.msra.mxu0 0
    %965 = vmatprep.subr.bf16.mxu0 0
    %966 = vmatpush1.bf16.msra.mxu0 0
    %967 = vmatprep.subr.bf16.mxu0 0
    %968 = vmatpush1.bf16.msra.mxu0 0
    %969 = vmatprep.subr.bf16.mxu0 0
    %970 = vmatpush1.bf16.msra.mxu0 0
    %971 = vmatprep.subr.bf16.mxu0 0
    %972 = vmatpush1.bf16.msra.mxu0 0
    %973 = vmatprep.subr.bf16.mxu0 0
    %974 = vmatpush1.bf16.msra.mxu0 0
    %975 = vmatprep.subr.bf16.mxu0 0
    %976 = vmatpush1.bf16.msra.mxu0 0
    %977 = vmatprep.subr.bf16.mxu0 0
    %978 = vmatpush1.bf16.msra.mxu0 0
    %979 = vmatprep.subr.bf16.mxu0 0
    %980 = vmatpush1.bf16.msra.mxu0 0
    %981 = vmatprep.mubr.bf16.mxu0 0
    %982 = vmatmul.mubr.bf16.gmra.mrb[0].mxu0 %v944
    %v983 = vpop.f32.mrb[0].mxu0
    %v984 = vadd.f32 0.0, %v983
    %v985 = vpop.f32.mrb[0].mxu0
    %v986 = vpop.f32.mrb[0].mxu0
    %v987 = vpop.f32.mrb[0].mxu0
    %988 = vdwg.mxu0
    %989 = vrot.lane.b32.xlu0 %v349, 64
    %v990 = vpop.permute.xlu0 %989
    %v992 = vsel %vm359, %v934, 0
    %v995 = vsel %vm168, %v990, 0
    %997 = vmatprep.subr.bf16.mxu0 0
    %998 = vmatpush1.bf16.msra.mxu0 %v995
    %999 = vmatprep.subr.bf16.mxu0 0
    %1000 = vmatpush1.bf16.msra.mxu0 0
    %1001 = vmatprep.subr.bf16.mxu0 0
    %1002 = vmatpush1.bf16.msra.mxu0 0
    %1003 = vmatprep.subr.bf16.mxu0 0
    %1004 = vmatpush1.bf16.msra.mxu0 0
    %1005 = vmatprep.subr.bf16.mxu0 0
    %1006 = vmatpush1.bf16.msra.mxu0 0
    %1007 = vmatprep.subr.bf16.mxu0 0
    %1008 = vmatpush1.bf16.msra.mxu0 0
    %1009 = vmatprep.subr.bf16.mxu0 0
    %1010 = vmatpush1.bf16.msra.mxu0 0
    %1011 = vmatprep.subr.bf16.mxu0 0
    %1012 = vmatpush1.bf16.msra.mxu0 0
    %1013 = vmatprep.subr.bf16.mxu0 0
    %1014 = vmatpush1.bf16.msra.mxu0 0
    %1015 = vmatprep.subr.bf16.mxu0 0
    %1016 = vmatpush1.bf16.msra.mxu0 0
    %1017 = vmatprep.subr.bf16.mxu0 0
    %1018 = vmatpush1.bf16.msra.mxu0 0
    %1019 = vmatprep.subr.bf16.mxu0 0
    %1020 = vmatpush1.bf16.msra.mxu0 0
    %1021 = vmatprep.subr.bf16.mxu0 0
    %1022 = vmatpush1.bf16.msra.mxu0 0
    %1023 = vmatprep.subr.bf16.mxu0 0
    %1024 = vmatpush1.bf16.msra.mxu0 0
    %1025 = vmatprep.subr.bf16.mxu0 0
    %1026 = vmatpush1.bf16.msra.mxu0 0
    %1027 = vmatprep.subr.bf16.mxu0 0
    %1028 = vmatpush1.bf16.msra.mxu0 0
    %1029 = vmatprep.mubr.bf16.mxu0 0
    %1030 = vmatmul.mubr.bf16.gmra.mrb[0].mxu0 %v992
    %v1031 = vpop.f32.mrb[0].mxu0
    %v1032 = vadd.f32 0.0, %v1031
    %v1033 = vpop.f32.mrb[0].mxu0
    %v1034 = vpop.f32.mrb[0].mxu0
    %v1035 = vpop.f32.mrb[0].mxu0
    %1036 = vdwg.mxu0
    %1037 = vrot.lane.b32.xlu0 %v350, 64
    %v1038 = vpop.permute.xlu0 %1037
    %v1040 = vsel %vm359, %v935, 0
    %v1043 = vsel %vm168, %v1038, 0
    %1045 = vmatprep.subr.bf16.mxu0 0
    %1046 = vmatpush1.bf16.msra.mxu0 %v1043
    %1047 = vmatprep.subr.bf16.mxu0 0
    %1048 = vmatpush1.bf16.msra.mxu0 0
    %1049 = vmatprep.subr.bf16.mxu0 0
    %1050 = vmatpush1.bf16.msra.mxu0 0
    %1051 = vmatprep.subr.bf16.mxu0 0
    %1052 = vmatpush1.bf16.msra.mxu0 0
    %1053 = vmatprep.subr.bf16.mxu0 0
    %1054 = vmatpush1.bf16.msra.mxu0 0
    %1055 = vmatprep.subr.bf16.mxu0 0
    %1056 = vmatpush1.bf16.msra.mxu0 0
    %1057 = vmatprep.subr.bf16.mxu0 0
    %1058 = vmatpush1.bf16.msra.mxu0 0
    %1059 = vmatprep.subr.bf16.mxu0 0
    %1060 = vmatpush1.bf16.msra.mxu0 0
    %1061 = vmatprep.subr.bf16.mxu0 0
    %1062 = vmatpush1.bf16.msra.mxu0 0
    %1063 = vmatprep.subr.bf16.mxu0 0
    %1064 = vmatpush1.bf16.msra.mxu0 0
    %1065 = vmatprep.subr.bf16.mxu0 0
    %1066 = vmatpush1.bf16.msra.mxu0 0
    %1067 = vmatprep.subr.bf16.mxu0 0
    %1068 = vmatpush1.bf16.msra.mxu0 0
    %1069 = vmatprep.subr.bf16.mxu0 0
    %1070 = vmatpush1.bf16.msra.mxu0 0
    %1071 = vmatprep.subr.bf16.mxu0 0
    %1072 = vmatpush1.bf16.msra.mxu0 0
    %1073 = vmatprep.subr.bf16.mxu0 0
    %1074 = vmatpush1.bf16.msra.mxu0 0
    %1075 = vmatprep.subr.bf16.mxu0 0
    %1076 = vmatpush1.bf16.msra.mxu0 0
    %1077 = vmatprep.mubr.bf16.mxu0 0
    %1078 = vmatmul.mubr.bf16.gmra.mrb[0].mxu0 %v1040
    %v1079 = vpop.f32.mrb[0].mxu0
    %v1080 = vadd.f32 0.0, %v1079
    %v1081 = vpop.f32.mrb[0].mxu0
    %v1082 = vpop.f32.mrb[0].mxu0
    %v1083 = vpop.f32.mrb[0].mxu0
    %1084 = vdwg.mxu0
    %1085 = vrot.lane.b32.xlu0 %v351, 64
    %v1086 = vpop.permute.xlu0 %1085
    %v1088 = vsel %vm359, %v936, 0
    %v1091 = vsel %vm168, %v1086, 0
    %1093 = vmatprep.subr.bf16.mxu0 0
    %1094 = vmatpush1.bf16.msra.mxu0 %v1091
    %1095 = vmatprep.subr.bf16.mxu0 0
    %1096 = vmatpush1.bf16.msra.mxu0 0
    %1097 = vmatprep.subr.bf16.mxu0 0
    %1098 = vmatpush1.bf16.msra.mxu0 0
    %1099 = vmatprep.subr.bf16.mxu0 0
    %1100 = vmatpush1.bf16.msra.mxu0 0
    %1101 = vmatprep.subr.bf16.mxu0 0
    %1102 = vmatpush1.bf16.msra.mxu0 0
    %1103 = vmatprep.subr.bf16.mxu0 0
    %1104 = vmatpush1.bf16.msra.mxu0 0
    %1105 = vmatprep.subr.bf16.mxu0 0
    %1106 = vmatpush1.bf16.msra.mxu0 0
    %1107 = vmatprep.subr.bf16.mxu0 0
    %1108 = vmatpush1.bf16.msra.mxu0 0
    %1109 = vmatprep.subr.bf16.mxu0 0
    %1110 = vmatpush1.bf16.msra.mxu0 0
    %1111 = vmatprep.subr.bf16.mxu0 0
    %1112 = vmatpush1.bf16.msra.mxu0 0
    %1113 = vmatprep.subr.bf16.mxu0 0
    %1114 = vmatpush1.bf16.msra.mxu0 0
    %1115 = vmatprep.subr.bf16.mxu0 0
    %1116 = vmatpush1.bf16.msra.mxu0 0
    %1117 = vmatprep.subr.bf16.mxu0 0
    %1118 = vmatpush1.bf16.msra.mxu0 0
    %1119 = vmatprep.subr.bf16.mxu0 0
    %1120 = vmatpush1.bf16.msra.mxu0 0
    %1121 = vmatprep.subr.bf16.mxu0 0
    %1122 = vmatpush1.bf16.msra.mxu0 0
    %1123 = vmatprep.subr.bf16.mxu0 0
    %1124 = vmatpush1.bf16.msra.mxu0 0
    %1125 = vmatprep.mubr.bf16.mxu0 0
    %1126 = vmatmul.mubr.bf16.gmra.mrb[0].mxu0 %v1088
    %v1127 = vpop.f32.mrb[0].mxu0
    %v1128 = vadd.f32 0.0, %v1127
    %v1129 = vpop.f32.mrb[0].mxu0
    %v1130 = vpop.f32.mrb[0].mxu0
    %v1131 = vpop.f32.mrb[0].mxu0
    %1132 = vdwg.mxu0
    %1133 = vrot.lane.b32.xlu0 %v352, 64
    %v1134 = vpop.permute.xlu0 %1133
    %v1136 = vsel %vm359, %v937, 0
    %v1139 = vsel %vm168, %v1134, 0
    %1141 = vmatprep.subr.bf16.mxu0 0
    %1142 = vmatpush1.bf16.msra.mxu0 %v1139
    %1143 = vmatprep.subr.bf16.mxu0 0
    %1144 = vmatpush1.bf16.msra.mxu0 0
    %1145 = vmatprep.subr.bf16.mxu0 0
    %1146 = vmatpush1.bf16.msra.mxu0 0
    %1147 = vmatprep.subr.bf16.mxu0 0
    %1148 = vmatpush1.bf16.msra.mxu0 0
    %1149 = vmatprep.subr.bf16.mxu0 0
    %1150 = vmatpush1.bf16.msra.mxu0 0
    %1151 = vmatprep.subr.bf16.mxu0 0
    %1152 = vmatpush1.bf16.msra.mxu0 0
    %1153 = vmatprep.subr.bf16.mxu0 0
    %1154 = vmatpush1.bf16.msra.mxu0 0
    %1155 = vmatprep.subr.bf16.mxu0 0
    %1156 = vmatpush1.bf16.msra.mxu0 0
    %1157 = vmatprep.subr.bf16.mxu0 0
    %1158 = vmatpush1.bf16.msra.mxu0 0
    %1159 = vmatprep.subr.bf16.mxu0 0
    %1160 = vmatpush1.bf16.msra.mxu0 0
    %1161 = vmatprep.subr.bf16.mxu0 0
    %1162 = vmatpush1.bf16.msra.mxu0 0
    %1163 = vmatprep.subr.bf16.mxu0 0
    %1164 = vmatpush1.bf16.msra.mxu0 0
    %1165 = vmatprep.subr.bf16.mxu0 0
    %1166 = vmatpush1.bf16.msra.mxu0 0
    %1167 = vmatprep.subr.bf16.mxu0 0
    %1168 = vmatpush1.bf16.msra.mxu0 0
    %1169 = vmatprep.subr.bf16.mxu0 0
    %1170 = vmatpush1.bf16.msra.mxu0 0
    %1171 = vmatprep.subr.bf16.mxu0 0
    %1172 = vmatpush1.bf16.msra.mxu0 0
    %1173 = vmatprep.mubr.bf16.mxu0 0
    %1174 = vmatmul.mubr.bf16.gmra.mrb[0].mxu0 %v1136
    %v1175 = vpop.f32.mrb[0].mxu0
    %v1176 = vadd.f32 0.0, %v1175
    %v1177 = vpop.f32.mrb[0].mxu0
    %v1178 = vpop.f32.mrb[0].mxu0
    %v1179 = vpop.f32.mrb[0].mxu0
    %1180 = vdwg.mxu0
    %1181 = vrot.lane.b32.xlu0 %v353, 64
    %v1182 = vpop.permute.xlu0 %1181
    %v1184 = vsel %vm359, %v938, 0
    %v1187 = vsel %vm168, %v1182, 0
    %1189 = vmatprep.subr.bf16.mxu0 0
    %1190 = vmatpush1.bf16.msra.mxu0 %v1187
    %1191 = vmatprep.subr.bf16.mxu0 0
    %1192 = vmatpush1.bf16.msra.mxu0 0
    %1193 = vmatprep.subr.bf16.mxu0 0
    %1194 = vmatpush1.bf16.msra.mxu0 0
    %1195 = vmatprep.subr.bf16.mxu0 0
    %1196 = vmatpush1.bf16.msra.mxu0 0
    %1197 = vmatprep.subr.bf16.mxu0 0
    %1198 = vmatpush1.bf16.msra.mxu0 0
    %1199 = vmatprep.subr.bf16.mxu0 0
    %1200 = vmatpush1.bf16.msra.mxu0 0
    %1201 = vmatprep.subr.bf16.mxu0 0
    %1202 = vmatpush1.bf16.msra.mxu0 0
    %1203 = vmatprep.subr.bf16.mxu0 0
    %1204 = vmatpush1.bf16.msra.mxu0 0
    %1205 = vmatprep.subr.bf16.mxu0 0
    %1206 = vmatpush1.bf16.msra.mxu0 0
    %1207 = vmatprep.subr.bf16.mxu0 0
    %1208 = vmatpush1.bf16.msra.mxu0 0
    %1209 = vmatprep.subr.bf16.mxu0 0
    %1210 = vmatpush1.bf16.msra.mxu0 0
    %1211 = vmatprep.subr.bf16.mxu0 0
    %1212 = vmatpush1.bf16.msra.mxu0 0
    %1213 = vmatprep.subr.bf16.mxu0 0
    %1214 = vmatpush1.bf16.msra.mxu0 0
    %1215 = vmatprep.subr.bf16.mxu0 0
    %1216 = vmatpush1.bf16.msra.mxu0 0
    %1217 = vmatprep.subr.bf16.mxu0 0
    %1218 = vmatpush1.bf16.msra.mxu0 0
    %1219 = vmatprep.subr.bf16.mxu0 0
    %1220 = vmatpush1.bf16.msra.mxu0 0
    %1221 = vmatprep.mubr.bf16.mxu0 0
    %1222 = vmatmul.mubr.bf16.gmra.mrb[0].mxu0 %v1184
    %v1223 = vpop.f32.mrb[0].mxu0
    %v1224 = vadd.f32 0.0, %v1223
    %v1225 = vpop.f32.mrb[0].mxu0
    %v1226 = vpop.f32.mrb[0].mxu0
    %v1227 = vpop.f32.mrb[0].mxu0
    %1228 = vdwg.mxu0
    %1229 = vrot.lane.b32.xlu0 %v354, 64
    %v1230 = vpop.permute.xlu0 %1229
    %v1232 = vsel %vm359, %v939, 0
    %v1235 = vsel %vm168, %v1230, 0
    %1237 = vmatprep.subr.bf16.mxu0 0
    %1238 = vmatpush1.bf16.msra.mxu0 %v1235
    %1239 = vmatprep.subr.bf16.mxu0 0
    %1240 = vmatpush1.bf16.msra.mxu0 0
    %1241 = vmatprep.subr.bf16.mxu0 0
    %1242 = vmatpush1.bf16.msra.mxu0 0
    %1243 = vmatprep.subr.bf16.mxu0 0
    %1244 = vmatpush1.bf16.msra.mxu0 0
    %1245 = vmatprep.subr.bf16.mxu0 0
    %1246 = vmatpush1.bf16.msra.mxu0 0
    %1247 = vmatprep.subr.bf16.mxu0 0
    %1248 = vmatpush1.bf16.msra.mxu0 0
    %1249 = vmatprep.subr.bf16.mxu0 0
    %1250 = vmatpush1.bf16.msra.mxu0 0
    %1251 = vmatprep.subr.bf16.mxu0 0
    %1252 = vmatpush1.bf16.msra.mxu0 0
    %1253 = vmatprep.subr.bf16.mxu0 0
    %1254 = vmatpush1.bf16.msra.mxu0 0
    %1255 = vmatprep.subr.bf16.mxu0 0
    %1256 = vmatpush1.bf16.msra.mxu0 0
    %1257 = vmatprep.subr.bf16.mxu0 0
    %1258 = vmatpush1.bf16.msra.mxu0 0
    %1259 = vmatprep.subr.bf16.mxu0 0
    %1260 = vmatpush1.bf16.msra.mxu0 0
    %1261 = vmatprep.subr.bf16.mxu0 0
    %1262 = vmatpush1.bf16.msra.mxu0 0
    %1263 = vmatprep.subr.bf16.mxu0 0
    %1264 = vmatpush1.bf16.msra.mxu0 0
    %1265 = vmatprep.subr.bf16.mxu0 0
    %1266 = vmatpush1.bf16.msra.mxu0 0
    %1267 = vmatprep.subr.bf16.mxu0 0
    %1268 = vmatpush1.bf16.msra.mxu0 0
    %1269 = vmatprep.mubr.bf16.mxu0 0
    %1270 = vmatmul.mubr.bf16.gmra.mrb[0].mxu0 %v1232
    %v1271 = vpop.f32.mrb[0].mxu0
    %v1272 = vadd.f32 0.0, %v1271
    %v1273 = vpop.f32.mrb[0].mxu0
    %v1274 = vpop.f32.mrb[0].mxu0
    %v1275 = vpop.f32.mrb[0].mxu0
    %1276 = vdwg.mxu0
    %1277 = vrot.lane.b32.xlu0 %v355, 64
    %v1278 = vpop.permute.xlu0 %1277
    %v1280 = vsel %vm359, %v940, 0
    %v1283 = vsel %vm168, %v1278, 0
    %1285 = vmatprep.subr.bf16.mxu0 0
    %1286 = vmatpush1.bf16.msra.mxu0 %v1283
    %1287 = vmatprep.subr.bf16.mxu0 0
    %1288 = vmatpush1.bf16.msra.mxu0 0
    %1289 = vmatprep.subr.bf16.mxu0 0
    %1290 = vmatpush1.bf16.msra.mxu0 0
    %1291 = vmatprep.subr.bf16.mxu0 0
    %1292 = vmatpush1.bf16.msra.mxu0 0
    %1293 = vmatprep.subr.bf16.mxu0 0
    %1294 = vmatpush1.bf16.msra.mxu0 0
    %1295 = vmatprep.subr.bf16.mxu0 0
    %1296 = vmatpush1.bf16.msra.mxu0 0
    %1297 = vmatprep.subr.bf16.mxu0 0
    %1298 = vmatpush1.bf16.msra.mxu0 0
    %1299 = vmatprep.subr.bf16.mxu0 0
    %1300 = vmatpush1.bf16.msra.mxu0 0
    %1301 = vmatprep.subr.bf16.mxu0 0
    %1302 = vmatpush1.bf16.msra.mxu0 0
    %1303 = vmatprep.subr.bf16.mxu0 0
    %1304 = vmatpush1.bf16.msra.mxu0 0
    %1305 = vmatprep.subr.bf16.mxu0 0
    %1306 = vmatpush1.bf16.msra.mxu0 0
    %1307 = vmatprep.subr.bf16.mxu0 0
    %1308 = vmatpush1.bf16.msra.mxu0 0
    %1309 = vmatprep.subr.bf16.mxu0 0
    %1310 = vmatpush1.bf16.msra.mxu0 0
    %1311 = vmatprep.subr.bf16.mxu0 0
    %1312 = vmatpush1.bf16.msra.mxu0 0
    %1313 = vmatprep.subr.bf16.mxu0 0
    %1314 = vmatpush1.bf16.msra.mxu0 0
    %1315 = vmatprep.subr.bf16.mxu0 0
    %1316 = vmatpush1.bf16.msra.mxu0 0
    %1317 = vmatprep.mubr.bf16.mxu0 0
    %1318 = vmatmul.mubr.bf16.gmra.mrb[0].mxu0 %v1280
    %v1319 = vpop.f32.mrb[0].mxu0
    %v1320 = vadd.f32 0.0, %v1319
    %v1321 = vpop.f32.mrb[0].mxu0
    %v1322 = vpop.f32.mrb[0].mxu0
    %v1323 = vpop.f32.mrb[0].mxu0
    %1324 = vdwg.mxu0
    %1327 = vrot.lane.b32.xlu0 %v1080, 8
    %v1328 = vpop.permute.xlu0 %1327
    %1329 = vrot.lane.b32.xlu0 %v1128, 8
    %v1330 = vpop.permute.xlu0 %1329
    %1335 = vrot.lane.b32.xlu0 %v1176, 16
    %v1336 = vpop.permute.xlu0 %1335
    %1337 = vrot.lane.b32.xlu0 %v1224, 16
    %v1338 = vpop.permute.xlu0 %1337
    %1343 = vrot.lane.b32.xlu0 %v1272, 24
    %v1344 = vpop.permute.xlu0 %1343
    %1345 = vrot.lane.b32.xlu0 %v1320, 24
    %v1346 = vpop.permute.xlu0 %1345
    %v1349 = vsel %vm359, %v984, %v1328
    %v1350 = vsel %vm359, %v1032, %v1330
    %v1351 = vsel %vm922, %v1349, %v1336
    %v1352 = vsel %vm922, %v1350, %v1338
    %v1353 = vsel %vm924, %v1351, %v1344
    %v1354 = vsel %vm924, %v1352, %v1346
    %v1355 = vld [vmem:[%s6] sm:$0xff]
    %v1356 = vld [vmem:[%s6 + $0x8] sm:$0xff]
    %v1357 = vld [vmem:[%s6 + $0x10] sm:$0xff]
    %v1358 = vld [vmem:[%s6 + $0x18] sm:$0xff]
    %v1359 = vpack.c.bf16 %v1354, %v1353
    %v1360 = vpack.c.bf16 %v1356, %v1355
    %v1361 = vpack.c.bf16 %v1358, %v1357
    %v1362 = vld [vmem:[#allocation10] sm:$0x1]
    %v1364 = vlaneseq
    %v1365 = vshrl.u32 %v1364, 7
    %v1366 = vsub.s32 0, %v1365
    %v1367 = vrot.slane %v1362, %v1366
    %v1370 = vsel %vm226, %v1359, 0
    %1372 = vmatprep.subr.bf16.mxu0 0
    %1373 = vmatpush1.bf16.msra.mxu0 %v1360
    %1374 = vmatprep.subr.bf16.mxu0 0
    %1375 = vmatpush1.bf16.msra.mxu0 %v1361
    %1376 = vmatprep.subr.bf16.mxu0 0
    %1377 = vmatpush1.bf16.msra.mxu0 0
    %1378 = vmatprep.subr.bf16.mxu0 0
    %1379 = vmatpush1.bf16.msra.mxu0 0
    %1380 = vmatprep.subr.bf16.mxu0 0
    %1381 = vmatpush1.bf16.msra.mxu0 0
    %1382 = vmatprep.subr.bf16.mxu0 0
    %1383 = vmatpush1.bf16.msra.mxu0 0
    %1384 = vmatprep.subr.bf16.mxu0 0
    %1385 = vmatpush1.bf16.msra.mxu0 0
    %1386 = vmatprep.subr.bf16.mxu0 0
    %1387 = vmatpush1.bf16.msra.mxu0 0
    %1388 = vmatprep.subr.bf16.mxu0 0
    %1389 = vmatpush1.bf16.msra.mxu0 0
    %1390 = vmatprep.subr.bf16.mxu0 0
    %1391 = vmatpush1.bf16.msra.mxu0 0
    %1392 = vmatprep.subr.bf16.mxu0 0
    %1393 = vmatpush1.bf16.msra.mxu0 0
    %1394 = vmatprep.subr.bf16.mxu0 0
    %1395 = vmatpush1.bf16.msra.mxu0 0
    %1396 = vmatprep.subr.bf16.mxu0 0
    %1397 = vmatpush1.bf16.msra.mxu0 0
    %1398 = vmatprep.subr.bf16.mxu0 0
    %1399 = vmatpush1.bf16.msra.mxu0 0
    %1400 = vmatprep.subr.bf16.mxu0 0
    %1401 = vmatpush1.bf16.msra.mxu0 0
    %1402 = vmatprep.subr.bf16.mxu0 0
    %1403 = vmatpush1.bf16.msra.mxu0 0
    %1404 = vmatprep.mubr.bf16.mxu0 0
    %1405 = vmatmul.mubr.bf16.gmra.mrb[0].mxu0 %v1370
    %v1406 = vpop.f32.mrb[0].mxu0
    %v1407 = vadd.f32 %v1367, %v1406
    %v1408 = vpop.f32.mrb[0].mxu0
    %v1409 = vpop.f32.mrb[0].mxu0
    %v1410 = vadd.f32 %v1367, %v1409
    %v1411 = vpop.f32.mrb[0].mxu0
    %1412 = vdwg.mxu0
    %1414 = vrot.lane.b32.xlu0 %v1410, 32
    %v1415 = vpop.permute.xlu0 %1414
    %v1417 = vsel %vm226, %v1407, %v1415
    %v1418 = vadd.f32 %v1407, %v268
    %v1419 = vadd.f32 %v1410, %v269
    %v1420 = vld [vmem:[#allocation11] sm:$0x1]
    %v1421 = vld [vmem:[#allocation13] sm:$0x1]
    %v1422 = vsel %vm226, %v1418, 0.0
    %1423 = vadd.xlane.f32.xlu0 %v1422
    %v1424 = vpop.xlane.xlu0 %1423
    %v1425 = vsel %vm226, %v1419, 0.0
    %1426 = vadd.xlane.f32.xlu0 %v1425
    %v1427 = vpop.xlane.xlu0 %1426
    %v1428 = vmul.f32 %v1424, %v233
    %v1429 = vmul.f32 %v1427, %v233
    %v1430 = vsub.f32 %v1418, %v1428
    %v1431 = vsub.f32 %v1419, %v1429
    %v1432 = vmul.f32 %v1430, %v1430
    %v1433 = vmul.f32 %v1431, %v1431
    %v1434 = vsel %vm226, %v1432, 0.0
    %1435 = vadd.xlane.f32.xlu0 %v1434
    %v1436 = vpop.xlane.xlu0 %1435
    %v1437 = vsel %vm226, %v1433, 0.0
    %1438 = vadd.xlane.f32.xlu0 %v1437
    %v1439 = vpop.xlane.xlu0 %1438
    %v1440 = vmul.f32 %v1436, %v233
    %v1441 = vmul.f32 %v1439, %v233
    %v1442 = vadd.f32 %v1440, 1e-12
    %v1443 = vadd.f32 %v1441, 1e-12
    %v1444 = vrsqrt.pop %v1442
    %v1445 = vrsqrt.pop %v1443
    %v1446 = vmul.f32 %v1430, %v1444
    %v1447 = vmul.f32 %v1431, %v1445
    %v1449 = vlaneseq
    %v1450 = vshrl.u32 %v1449, 7
    %v1451 = vsub.s32 0, %v1450
    %v1452 = vrot.slane %v1420, %v1451
    %v1454 = vmul.f32 %v1446, %v1452
    %v1455 = vmul.f32 %v1447, %v1452
    %v1457 = vlaneseq
    %v1458 = vshrl.u32 %v1457, 7
    %v1459 = vsub.s32 0, %v1458
    %v1460 = vrot.slane %v1421, %v1459
    %v1462 = vadd.f32 %v1454, %v1460
    %v1463 = vadd.f32 %v1455, %v1460
    %v1464 = vld [vmem:[%s10] sm:$0xff]
    %v1465 = vld [vmem:[%s10 + $0x8] sm:$0xff]
    %v1466 = vld [vmem:[%s10 + $0x10] sm:$0xff]
    %v1467 = vld [vmem:[%s10 + $0x18] sm:$0xff]
    %v1468 = vpack.c.bf16 %v1463, %v1462
    %v1469 = vpack.c.bf16 %v1465, %v1464
    %v1470 = vpack.c.bf16 %v1467, %v1466
    %v1471 = vld [vmem:[%s11] sm:$0x1]
    %v1473 = vlaneseq
    %v1474 = vshrl.u32 %v1473, 7
    %v1475 = vsub.s32 0, %v1474
    %v1476 = vrot.slane %v1471, %v1475
    %v1479 = vsel %vm226, %v1468, 0
    %1481 = vmatprep.subr.bf16.mxu0 0
    %1482 = vmatpush1.bf16.msra.mxu0 %v1469
    %1483 = vmatprep.subr.bf16.mxu0 0
    %1484 = vmatpush1.bf16.msra.mxu0 %v1470
    %1485 = vmatprep.subr.bf16.mxu0 0
    %1486 = vmatpush1.bf16.msra.mxu0 0
    %1487 = vmatprep.subr.bf16.mxu0 0
    %1488 = vmatpush1.bf16.msra.mxu0 0
    %1489 = vmatprep.subr.bf16.mxu0 0
    %1490 = vmatpush1.bf16.msra.mxu0 0
    %1491 = vmatprep.subr.bf16.mxu0 0
    %1492 = vmatpush1.bf16.msra.mxu0 0
    %1493 = vmatprep.subr.bf16.mxu0 0
    %1494 = vmatpush1.bf16.msra.mxu0 0
    %1495 = vmatprep.subr.bf16.mxu0 0
    %1496 = vmatpush1.bf16.msra.mxu0 0
    %1497 = vmatprep.subr.bf16.mxu0 0
    %1498 = vmatpush1.bf16.msra.mxu0 0
    %1499 = vmatprep.subr.bf16.mxu0 0
    %1500 = vmatpush1.bf16.msra.mxu0 0
    %1501 = vmatprep.subr.bf16.mxu0 0
    %1502 = vmatpush1.bf16.msra.mxu0 0
    %1503 = vmatprep.subr.bf16.mxu0 0
    %1504 = vmatpush1.bf16.msra.mxu0 0
    %1505 = vmatprep.subr.bf16.mxu0 0
    %1506 = vmatpush1.bf16.msra.mxu0 0
    %1507 = vmatprep.subr.bf16.mxu0 0
    %1508 = vmatpush1.bf16.msra.mxu0 0
    %1509 = vmatprep.subr.bf16.mxu0 0
    %1510 = vmatpush1.bf16.msra.mxu0 0
    %1511 = vmatprep.subr.bf16.mxu0 0
    %1512 = vmatpush1.bf16.msra.mxu0 0
    %1513 = vmatprep.mubr.bf16.mxu0 0
    %1514 = vmatmul.mubr.bf16.gmra.mrb[0].mxu0 %v1479
    %v1515 = vpop.f32.mrb[0].mxu0
    %v1516 = vadd.f32 %v1476, %v1515
    %v1517 = vpop.f32.mrb[0].mxu0
    %v1518 = vpop.f32.mrb[0].mxu0
    %v1519 = vadd.f32 %v1476, %v1518
    %v1520 = vpop.f32.mrb[0].mxu0
    %1521 = vdwg.mxu0
    %v1522 = vmul.f32 %v1516, 0.5
    %v1523 = vmul.f32 %v1519, 0.5
    %v1524 = vmul.f32 %v1516, 0.044715
    %v1525 = vmul.f32 %v1519, 0.044715
    %v1526 = vmul.f32 %v1524, %v1516
    %v1527 = vmul.f32 %v1525, %v1519
    %v1528 = vmul.f32 %v1526, %v1516
    %v1529 = vmul.f32 %v1527, %v1519
    %v1530 = vadd.f32 %v1516, %v1528
    %v1531 = vadd.f32 %v1519, %v1529
    %v1532 = vmul.f32 %v1530, 0.7978846
    %v1533 = vmul.f32 %v1531, 0.7978846
    %v1534 = vtanh.pop %v1532
    %v1535 = vtanh.pop %v1533
    %v1536 = vadd.f32 %v1534, 1.0
    %v1537 = vadd.f32 %v1535, 1.0
    %v1538 = vmul.f32 %v1522, %v1536
    %v1539 = vmul.f32 %v1523, %v1537
    %v1540 = vld [vmem:[%s12] sm:$0xff]
    %v1541 = vld [vmem:[%s12 + $0x8] sm:$0xff]
    %v1542 = vld [vmem:[%s12 + $0x10] sm:$0xff]
    %v1543 = vld [vmem:[%s12 + $0x18] sm:$0xff]
    %v1544 = vld [vmem:[%s12 + $0x20] sm:$0xff]
    %v1545 = vld [vmem:[%s12 + $0x28] sm:$0xff]
    %v1546 = vld [vmem:[%s12 + $0x30] sm:$0xff]
    %v1547 = vld [vmem:[%s12 + $0x38] sm:$0xff]
    %v1548 = vpack.c.bf16 %v1539, %v1538
    %v1549 = vpack.c.bf16 %v1541, %v1540
    %v1550 = vpack.c.bf16 %v1543, %v1542
    %v1551 = vpack.c.bf16 %v1545, %v1544
    %v1552 = vpack.c.bf16 %v1547, %v1546
    %v1553 = vld [vmem:[%s13] sm:$0x1]
    %v1555 = vlaneseq
    %v1556 = vshrl.u32 %v1555, 7
    %v1557 = vsub.s32 0, %v1556
    %v1558 = vrot.slane %v1553, %v1557
    %vm1560 = vcmask 523264
    %v1562 = vsel %vm1560, %v1548, 0
    %1564 = vmatprep.subr.bf16.mxu0 0
    %1565 = vmatpush1.bf16.msra.mxu0 %v1549
    %1566 = vmatprep.subr.bf16.mxu0 0
    %1567 = vmatpush1.bf16.msra.mxu0 %v1550
    %1568 = vmatprep.subr.bf16.mxu0 0
    %1569 = vmatpush1.bf16.msra.mxu0 %v1551
    %1570 = vmatprep.subr.bf16.mxu0 0
    %1571 = vmatpush1.bf16.msra.mxu0 %v1552
    %1572 = vmatprep.subr.bf16.mxu0 0
    %1573 = vmatpush1.bf16.msra.mxu0 0
    %1574 = vmatprep.subr.bf16.mxu0 0
    %1575 = vmatpush1.bf16.msra.mxu0 0
    %1576 = vmatprep.subr.bf16.mxu0 0
    %1577 = vmatpush1.bf16.msra.mxu0 0
    %1578 = vmatprep.subr.bf16.mxu0 0
    %1579 = vmatpush1.bf16.msra.mxu0 0
    %1580 = vmatprep.subr.bf16.mxu0 0
    %1581 = vmatpush1.bf16.msra.mxu0 0
    %1582 = vmatprep.subr.bf16.mxu0 0
    %1583 = vmatpush1.bf16.msra.mxu0 0
    %1584 = vmatprep.subr.bf16.mxu0 0
    %1585 = vmatpush1.bf16.msra.mxu0 0
    %1586 = vmatprep.subr.bf16.mxu0 0
    %1587 = vmatpush1.bf16.msra.mxu0 0
    %1588 = vmatprep.subr.bf16.mxu0 0
    %1589 = vmatpush1.bf16.msra.mxu0 0
    %1590 = vmatprep.subr.bf16.mxu0 0
    %1591 = vmatpush1.bf16.msra.mxu0 0
    %1592 = vmatprep.subr.bf16.mxu0 0
    %1593 = vmatpush1.bf16.msra.mxu0 0
    %1594 = vmatprep.subr.bf16.mxu0 0
    %1595 = vmatpush1.bf16.msra.mxu0 0
    %1596 = vmatprep.mubr.bf16.mxu0 0
    %1597 = vmatmul.mubr.bf16.gmra.mrb[0].mxu0 %v1562
    %v1598 = vpop.f32.mrb[0].mxu0
    %v1599 = vadd.f32 %v1558, %v1598
    %v1600 = vpop.f32.mrb[0].mxu0
    %v1601 = vpop.f32.mrb[0].mxu0
    %v1602 = vadd.f32 %v1558, %v1601
    %v1603 = vpop.f32.mrb[0].mxu0
    %1604 = vdwg.mxu0
    %v1605 = vadd.f32 %v1599, %v1462
    %v1606 = vadd.f32 %v1602, %v1463
    %v1607 = vld [vmem:[%s14] sm:$0x1]
    %v1608 = vld [vmem:[%s15] sm:$0x1]
    %v1609 = vsel %vm226, %v1605, 0.0
    %1610 = vadd.xlane.f32.xlu0 %v1609
    %v1611 = vpop.xlane.xlu0 %1610
    %v1612 = vsel %vm226, %v1606, 0.0
    %1613 = vadd.xlane.f32.xlu0 %v1612
    %v1614 = vpop.xlane.xlu0 %1613
    %v1615 = vmul.f32 %v1611, %v233
    %v1616 = vmul.f32 %v1614, %v233
    %v1617 = vsub.f32 %v1605, %v1615
    %v1618 = vsub.f32 %v1606, %v1616
    %v1619 = vmul.f32 %v1617, %v1617
    %v1620 = vmul.f32 %v1618, %v1618
    %v1621 = vsel %vm226, %v1619, 0.0
    %1622 = vadd.xlane.f32.xlu0 %v1621
    %v1623 = vpop.xlane.xlu0 %1622
    %v1624 = vsel %vm226, %v1620, 0.0
    %1625 = vadd.xlane.f32.xlu0 %v1624
    %v1626 = vpop.xlane.xlu0 %1625
    %v1627 = vmul.f32 %v1623, %v233
    %v1628 = vmul.f32 %v1626, %v233
    %v1629 = vadd.f32 %v1627, 1e-12
    %v1630 = vadd.f32 %v1628, 1e-12
    %v1631 = vrsqrt.pop %v1629
    %v1632 = vrsqrt.pop %v1630
    %v1633 = vmul.f32 %v1617, %v1631
    %v1634 = vmul.f32 %v1618, %v1632
    %v1636 = vlaneseq
    %v1637 = vshrl.u32 %v1636, 7
    %v1638 = vsub.s32 0, %v1637
    %v1639 = vrot.slane %v1607, %v1638
    %v1641 = vmul.f32 %v1633, %v1639
    %v1642 = vmul.f32 %v1634, %v1639
    %v1644 = vlaneseq
    %v1645 = vshrl.u32 %v1644, 7
    %v1646 = vsub.s32 0, %v1645
    %v1647 = vrot.slane %v1608, %v1646
    %v1649 = vadd.f32 %v1641, %v1647
    %v1650 = vadd.f32 %v1642, %v1647
    %1652 = vrot.lane.b32.xlu0 %v1650, 32
    %v1653 = vpop.permute.xlu0 %1652
    %v1655 = vsel %vm226, %v1649, %v1653
    %s1656 = scalar_lea.vmem %s4, 32
    %v1657 = vld [vmem:[%s1656] sm:$0xff]
    %v1658 = vld [vmem:[%s1656 + $0x8] sm:$0xff]
    %v1659 = vld [vmem:[%s1656 + $0x10] sm:$0xff]
    %v1660 = vld [vmem:[%s1656 + $0x18] sm:$0xff]
    %v1661 = vpack.c.bf16 %v1650, %v1649
    %v1662 = vpack.c.bf16 %v1658, %v1657
    %v1663 = vpack.c.bf16 %v1660, %v1659
    %s1664 = scalar_lea.vmem [#allocation8], 1
    %v1665 = vld [vmem:[%s1664] sm:$0x1]
    %v1667 = vlaneseq
    %v1668 = vshrl.u32 %v1667, 7
    %v1669 = vsub.s32 0, %v1668
    %v1670 = vrot.slane %v1665, %v1669
    %v1673 = vsel %vm226, %v1661, 0
    %1675 = vmatprep.subr.bf16.mxu0 0
    %1676 = vmatpush1.bf16.msra.mxu0 %v1662
    %1677 = vmatprep.subr.bf16.mxu0 0
    %1678 = vmatpush1.bf16.msra.mxu0 %v1663
    %1679 = vmatprep.subr.bf16.mxu0 0
    %1680 = vmatpush1.bf16.msra.mxu0 0
    %1681 = vmatprep.subr.bf16.mxu0 0
    %1682 = vmatpush1.bf16.msra.mxu0 0
    %1683 = vmatprep.subr.bf16.mxu0 0
    %1684 = vmatpush1.bf16.msra.mxu0 0
    %1685 = vmatprep.subr.bf16.mxu0 0
    %1686 = vmatpush1.bf16.msra.mxu0 0
    %1687 = vmatprep.subr.bf16.mxu0 0
    %1688 = vmatpush1.bf16.msra.mxu0 0
    %1689 = vmatprep.subr.bf16.mxu0 0
    %1690 = vmatpush1.bf16.msra.mxu0 0
    %1691 = vmatprep.subr.bf16.mxu0 0
    %1692 = vmatpush1.bf16.msra.mxu0 0
    %1693 = vmatprep.subr.bf16.mxu0 0
    %1694 = vmatpush1.bf16.msra.mxu0 0
    %1695 = vmatprep.subr.bf16.mxu0 0
    %1696 = vmatpush1.bf16.msra.mxu0 0
    %1697 = vmatprep.subr.bf16.mxu0 0
    %1698 = vmatpush1.bf16.msra.mxu0 0
    %1699 = vmatprep.subr.bf16.mxu0 0
    %1700 = vmatpush1.bf16.msra.mxu0 0
    %1701 = vmatprep.subr.bf16.mxu0 0
    %1702 = vmatpush1.bf16.msra.mxu0 0
    %1703 = vmatprep.subr.bf16.mxu0 0
    %1704 = vmatpush1.bf16.msra.mxu0 0
    %1705 = vmatprep.subr.bf16.mxu0 0
    %1706 = vmatpush1.bf16.msra.mxu0 0
    %1707 = vmatprep.mubr.bf16.mxu0 0
    %1708 = vmatmul.mubr.bf16.gmra.mrb[0].mxu0 %v1673
    %v1709 = vpop.f32.mrb[0].mxu0
    %v1710 = vadd.f32 %v1670, %v1709
    %v1711 = vpop.f32.mrb[0].mxu0
    %v1712 = vpop.f32.mrb[0].mxu0
    %v1713 = vadd.f32 %v1670, %v1712
    %v1714 = vpop.f32.mrb[0].mxu0
    %1715 = vdwg.mxu0
    %1718 = vrot.lane.b32.xlu0 %v1710, 120
    %v1719 = vpop.permute.xlu0 %1718
    %1720 = vrot.lane.b32.xlu0 %v1713, 120
    %v1721 = vpop.permute.xlu0 %1720
    %1724 = vrot.lane.b32.xlu0 %v1710, 112
    %v1725 = vpop.permute.xlu0 %1724
    %1726 = vrot.lane.b32.xlu0 %v1713, 112
    %v1727 = vpop.permute.xlu0 %1726
    %1730 = vrot.lane.b32.xlu0 %v1710, 104
    %v1731 = vpop.permute.xlu0 %1730
    %1732 = vrot.lane.b32.xlu0 %v1713, 104
    %v1733 = vpop.permute.xlu0 %1732
    %v1736 = vpack.c.bf16 %v1710, %v1710
    %v1737 = vpack.c.bf16 %v1713, %v1713
    %v1738 = vpack.c.bf16 %v1719, %v1719
    %v1739 = vpack.c.bf16 %v1721, %v1721
    %v1740 = vpack.c.bf16 %v1725, %v1725
    %v1741 = vpack.c.bf16 %v1727, %v1727
    %v1742 = vpack.c.bf16 %v1731, %v1731
    %v1743 = vpack.c.bf16 %v1733, %v1733
    %1745 = vrot.lane.b32.xlu0 %v1736, 96
    %v1746 = vpop.permute.xlu0 %1745
    %v1748 = vsel %vm359, %v1736, 0
    %v1751 = vsel %vm359, %v1746, 0
    %1753 = vmatprep.subr.bf16.mxu0 0
    %1754 = vmatpush1.bf16.xpose.msra.mxu0 %v1751
    %1755 = vmatprep.subr.bf16.mxu0 0
    %1756 = vmatpush1.bf16.xpose.msra.mxu0 0
    %1757 = vmatprep.subr.bf16.mxu0 0
    %1758 = vmatpush1.bf16.xpose.msra.mxu0 0
    %1759 = vmatprep.subr.bf16.mxu0 0
    %1760 = vmatpush1.bf16.xpose.msra.mxu0 0
    %1761 = vmatprep.subr.bf16.mxu0 0
    %1762 = vmatpush1.bf16.xpose.msra.mxu0 0
    %1763 = vmatprep.subr.bf16.mxu0 0
    %1764 = vmatpush1.bf16.xpose.msra.mxu0 0
    %1765 = vmatprep.subr.bf16.mxu0 0
    %1766 = vmatpush1.bf16.xpose.msra.mxu0 0
    %1767 = vmatprep.subr.bf16.mxu0 0
    %1768 = vmatpush1.bf16.xpose.msra.mxu0 0
    %1769 = vmatprep.subr.bf16.mxu0 0
    %1770 = vmatpush1.bf16.xpose.msra.mxu0 0
    %1771 = vmatprep.subr.bf16.mxu0 0
    %1772 = vmatpush1.bf16.xpose.msra.mxu0 0
    %1773 = vmatprep.subr.bf16.mxu0 0
    %1774 = vmatpush1.bf16.xpose.msra.mxu0 0
    %1775 = vmatprep.subr.bf16.mxu0 0
    %1776 = vmatpush1.bf16.xpose.msra.mxu0 0
    %1777 = vmatprep.subr.bf16.mxu0 0
    %1778 = vmatpush1.bf16.xpose.msra.mxu0 0
    %1779 = vmatprep.subr.bf16.mxu0 0
    %1780 = vmatpush1.bf16.xpose.msra.mxu0 0
    %1781 = vmatprep.subr.bf16.mxu0 0
    %1782 = vmatpush1.bf16.xpose.msra.mxu0 0
    %1783 = vmatprep.subr.bf16.mxu0 0
    %1784 = vmatpush1.bf16.xpose.msra.mxu0 0
    %1785 = vmatprep.mubr.bf16.mxu0 0
    %1786 = vmatmul.mubr.bf16.gmra.mrb[0].mxu0 %v1748
    %v1787 = vpop.f32.mrb[0].mxu0
    %v1788 = vadd.f32 0.0, %v1787
    %v1789 = vpop.f32.mrb[0].mxu0
    %v1790 = vpop.f32.mrb[0].mxu0
    %v1791 = vpop.f32.mrb[0].mxu0
    %1792 = vdwg.mxu0
    %1794 = vrot.lane.b32.xlu0 %v1737, 96
    %v1795 = vpop.permute.xlu0 %1794
    %v1797 = vsel %vm359, %v1737, 0
    %v1800 = vsel %vm359, %v1795, 0
    %1802 = vmatprep.subr.bf16.mxu0 0
    %1803 = vmatpush1.bf16.xpose.msra.mxu0 %v1800
    %1804 = vmatprep.subr.bf16.mxu0 0
    %1805 = vmatpush1.bf16.xpose.msra.mxu0 0
    %1806 = vmatprep.subr.bf16.mxu0 0
    %1807 = vmatpush1.bf16.xpose.msra.mxu0 0
    %1808 = vmatprep.subr.bf16.mxu0 0
    %1809 = vmatpush1.bf16.xpose.msra.mxu0 0
    %1810 = vmatprep.subr.bf16.mxu0 0
    %1811 = vmatpush1.bf16.xpose.msra.mxu0 0
    %1812 = vmatprep.subr.bf16.mxu0 0
    %1813 = vmatpush1.bf16.xpose.msra.mxu0 0
    %1814 = vmatprep.subr.bf16.mxu0 0
    %1815 = vmatpush1.bf16.xpose.msra.mxu0 0
    %1816 = vmatprep.subr.bf16.mxu0 0
    %1817 = vmatpush1.bf16.xpose.msra.mxu0 0
    %1818 = vmatprep.subr.bf16.mxu0 0
    %1819 = vmatpush1.bf16.xpose.msra.mxu0 0
    %1820 = vmatprep.subr.bf16.mxu0 0
    %1821 = vmatpush1.bf16.xpose.msra.mxu0 0
    %1822 = vmatprep.subr.bf16.mxu0 0
    %1823 = vmatpush1.bf16.xpose.msra.mxu0 0
    %1824 = vmatprep.subr.bf16.mxu0 0
    %1825 = vmatpush1.bf16.xpose.msra.mxu0 0
    %1826 = vmatprep.subr.bf16.mxu0 0
    %1827 = vmatpush1.bf16.xpose.msra.mxu0 0
    %1828 = vmatprep.subr.bf16.mxu0 0
    %1829 = vmatpush1.bf16.xpose.msra.mxu0 0
    %1830 = vmatprep.subr.bf16.mxu0 0
    %1831 = vmatpush1.bf16.xpose.msra.mxu0 0
    %1832 = vmatprep.subr.bf16.mxu0 0
    %1833 = vmatpush1.bf16.xpose.msra.mxu0 0
    %1834 = vmatprep.mubr.bf16.mxu0 0
    %1835 = vmatmul.mubr.bf16.gmra.mrb[0].mxu0 %v1797
    %v1836 = vpop.f32.mrb[0].mxu0
    %v1837 = vadd.f32 0.0, %v1836
    %v1838 = vpop.f32.mrb[0].mxu0
    %v1839 = vpop.f32.mrb[0].mxu0
    %v1840 = vpop.f32.mrb[0].mxu0
    %1841 = vdwg.mxu0
    %1843 = vrot.lane.b32.xlu0 %v1738, 96
    %v1844 = vpop.permute.xlu0 %1843
    %v1846 = vsel %vm359, %v1738, 0
    %v1849 = vsel %vm359, %v1844, 0
    %1851 = vmatprep.subr.bf16.mxu0 0
    %1852 = vmatpush1.bf16.xpose.msra.mxu0 %v1849
    %1853 = vmatprep.subr.bf16.mxu0 0
    %1854 = vmatpush1.bf16.xpose.msra.mxu0 0
    %1855 = vmatprep.subr.bf16.mxu0 0
    %1856 = vmatpush1.bf16.xpose.msra.mxu0 0
    %1857 = vmatprep.subr.bf16.mxu0 0
    %1858 = vmatpush1.bf16.xpose.msra.mxu0 0
    %1859 = vmatprep.subr.bf16.mxu0 0
    %1860 = vmatpush1.bf16.xpose.msra.mxu0 0
    %1861 = vmatprep.subr.bf16.mxu0 0
    %1862 = vmatpush1.bf16.xpose.msra.mxu0 0
    %1863 = vmatprep.subr.bf16.mxu0 0
    %1864 = vmatpush1.bf16.xpose.msra.mxu0 0
    %1865 = vmatprep.subr.bf16.mxu0 0
    %1866 = vmatpush1.bf16.xpose.msra.mxu0 0
    %1867 = vmatprep.subr.bf16.mxu0 0
    %1868 = vmatpush1.bf16.xpose.msra.mxu0 0
    %1869 = vmatprep.subr.bf16.mxu0 0
    %1870 = vmatpush1.bf16.xpose.msra.mxu0 0
    %1871 = vmatprep.subr.bf16.mxu0 0
    %1872 = vmatpush1.bf16.xpose.msra.mxu0 0
    %1873 = vmatprep.subr.bf16.mxu0 0
    %1874 = vmatpush1.bf16.xpose.msra.mxu0 0
    %1875 = vmatprep.subr.bf16.mxu0 0
    %1876 = vmatpush1.bf16.xpose.msra.mxu0 0
    %1877 = vmatprep.subr.bf16.mxu0 0
    %1878 = vmatpush1.bf16.xpose.msra.mxu0 0
    %1879 = vmatprep.subr.bf16.mxu0 0
    %1880 = vmatpush1.bf16.xpose.msra.mxu0 0
    %1881 = vmatprep.subr.bf16.mxu0 0
    %1882 = vmatpush1.bf16.xpose.msra.mxu0 0
    %1883 = vmatprep.mubr.bf16.mxu0 0
    %1884 = vmatmul.mubr.bf16.gmra.mrb[0].mxu0 %v1846
    %v1885 = vpop.f32.mrb[0].mxu0
    %v1886 = vadd.f32 0.0, %v1885
    %v1887 = vpop.f32.mrb[0].mxu0
    %v1888 = vpop.f32.mrb[0].mxu0
    %v1889 = vpop.f32.mrb[0].mxu0
    %1890 = vdwg.mxu0
    %1892 = vrot.lane.b32.xlu0 %v1739, 96
    %v1893 = vpop.permute.xlu0 %1892
    %v1895 = vsel %vm359, %v1739, 0
    %v1898 = vsel %vm359, %v1893, 0
    %1900 = vmatprep.subr.bf16.mxu0 0
    %1901 = vmatpush1.bf16.xpose.msra.mxu0 %v1898
    %1902 = vmatprep.subr.bf16.mxu0 0
    %1903 = vmatpush1.bf16.xpose.msra.mxu0 0
    %1904 = vmatprep.subr.bf16.mxu0 0
    %1905 = vmatpush1.bf16.xpose.msra.mxu0 0
    %1906 = vmatprep.subr.bf16.mxu0 0
    %1907 = vmatpush1.bf16.xpose.msra.mxu0 0
    %1908 = vmatprep.subr.bf16.mxu0 0
    %1909 = vmatpush1.bf16.xpose.msra.mxu0 0
    %1910 = vmatprep.subr.bf16.mxu0 0
    %1911 = vmatpush1.bf16.xpose.msra.mxu0 0
    %1912 = vmatprep.subr.bf16.mxu0 0
    %1913 = vmatpush1.bf16.xpose.msra.mxu0 0
    %1914 = vmatprep.subr.bf16.mxu0 0
    %1915 = vmatpush1.bf16.xpose.msra.mxu0 0
    %1916 = vmatprep.subr.bf16.mxu0 0
    %1917 = vmatpush1.bf16.xpose.msra.mxu0 0
    %1918 = vmatprep.subr.bf16.mxu0 0
    %1919 = vmatpush1.bf16.xpose.msra.mxu0 0
    %1920 = vmatprep.subr.bf16.mxu0 0
    %1921 = vmatpush1.bf16.xpose.msra.mxu0 0
    %1922 = vmatprep.subr.bf16.mxu0 0
    %1923 = vmatpush1.bf16.xpose.msra.mxu0 0
    %1924 = vmatprep.subr.bf16.mxu0 0
    %1925 = vmatpush1.bf16.xpose.msra.mxu0 0
    %1926 = vmatprep.subr.bf16.mxu0 0
    %1927 = vmatpush1.bf16.xpose.msra.mxu0 0
    %1928 = vmatprep.subr.bf16.mxu0 0
    %1929 = vmatpush1.bf16.xpose.msra.mxu0 0
    %1930 = vmatprep.subr.bf16.mxu0 0
    %1931 = vmatpush1.bf16.xpose.msra.mxu0 0
    %1932 = vmatprep.mubr.bf16.mxu0 0
    %1933 = vmatmul.mubr.bf16.gmra.mrb[0].mxu0 %v1895
    %v1934 = vpop.f32.mrb[0].mxu0
    %v1935 = vadd.f32 0.0, %v1934
    %v1936 = vpop.f32.mrb[0].mxu0
    %v1937 = vpop.f32.mrb[0].mxu0
    %v1938 = vpop.f32.mrb[0].mxu0
    %1939 = vdwg.mxu0
    %1941 = vrot.lane.b32.xlu0 %v1740, 96
    %v1942 = vpop.permute.xlu0 %1941
    %v1944 = vsel %vm359, %v1740, 0
    %v1947 = vsel %vm359, %v1942, 0
    %1949 = vmatprep.subr.bf16.mxu0 0
    %1950 = vmatpush1.bf16.xpose.msra.mxu0 %v1947
    %1951 = vmatprep.subr.bf16.mxu0 0
    %1952 = vmatpush1.bf16.xpose.msra.mxu0 0
    %1953 = vmatprep.subr.bf16.mxu0 0
    %1954 = vmatpush1.bf16.xpose.msra.mxu0 0
    %1955 = vmatprep.subr.bf16.mxu0 0
    %1956 = vmatpush1.bf16.xpose.msra.mxu0 0
    %1957 = vmatprep.subr.bf16.mxu0 0
    %1958 = vmatpush1.bf16.xpose.msra.mxu0 0
    %1959 = vmatprep.subr.bf16.mxu0 0
    %1960 = vmatpush1.bf16.xpose.msra.mxu0 0
    %1961 = vmatprep.subr.bf16.mxu0 0
    %1962 = vmatpush1.bf16.xpose.msra.mxu0 0
    %1963 = vmatprep.subr.bf16.mxu0 0
    %1964 = vmatpush1.bf16.xpose.msra.mxu0 0
    %1965 = vmatprep.subr.bf16.mxu0 0
    %1966 = vmatpush1.bf16.xpose.msra.mxu0 0
    %1967 = vmatprep.subr.bf16.mxu0 0
    %1968 = vmatpush1.bf16.xpose.msra.mxu0 0
    %1969 = vmatprep.subr.bf16.mxu0 0
    %1970 = vmatpush1.bf16.xpose.msra.mxu0 0
    %1971 = vmatprep.subr.bf16.mxu0 0
    %1972 = vmatpush1.bf16.xpose.msra.mxu0 0
    %1973 = vmatprep.subr.bf16.mxu0 0
    %1974 = vmatpush1.bf16.xpose.msra.mxu0 0
    %1975 = vmatprep.subr.bf16.mxu0 0
    %1976 = vmatpush1.bf16.xpose.msra.mxu0 0
    %1977 = vmatprep.subr.bf16.mxu0 0
    %1978 = vmatpush1.bf16.xpose.msra.mxu0 0
    %1979 = vmatprep.subr.bf16.mxu0 0
    %1980 = vmatpush1.bf16.xpose.msra.mxu0 0
    %1981 = vmatprep.mubr.bf16.mxu0 0
    %1982 = vmatmul.mubr.bf16.gmra.mrb[0].mxu0 %v1944
    %v1983 = vpop.f32.mrb[0].mxu0
    %v1984 = vadd.f32 0.0, %v1983
    %v1985 = vpop.f32.mrb[0].mxu0
    %v1986 = vpop.f32.mrb[0].mxu0
    %v1987 = vpop.f32.mrb[0].mxu0
    %1988 = vdwg.mxu0
    %1990 = vrot.lane.b32.xlu0 %v1741, 96
    %v1991 = vpop.permute.xlu0 %1990
    %v1993 = vsel %vm359, %v1741, 0
    %v1996 = vsel %vm359, %v1991, 0
    %1998 = vmatprep.subr.bf16.mxu0 0
    %1999 = vmatpush1.bf16.xpose.msra.mxu0 %v1996
    %2000 = vmatprep.subr.bf16.mxu0 0
    %2001 = vmatpush1.bf16.xpose.msra.mxu0 0
    %2002 = vmatprep.subr.bf16.mxu0 0
    %2003 = vmatpush1.bf16.xpose.msra.mxu0 0
    %2004 = vmatprep.subr.bf16.mxu0 0
    %2005 = vmatpush1.bf16.xpose.msra.mxu0 0
    %2006 = vmatprep.subr.bf16.mxu0 0
    %2007 = vmatpush1.bf16.xpose.msra.mxu0 0
    %2008 = vmatprep.subr.bf16.mxu0 0
    %2009 = vmatpush1.bf16.xpose.msra.mxu0 0
    %2010 = vmatprep.subr.bf16.mxu0 0
    %2011 = vmatpush1.bf16.xpose.msra.mxu0 0
    %2012 = vmatprep.subr.bf16.mxu0 0
    %2013 = vmatpush1.bf16.xpose.msra.mxu0 0
    %2014 = vmatprep.subr.bf16.mxu0 0
    %2015 = vmatpush1.bf16.xpose.msra.mxu0 0
    %2016 = vmatprep.subr.bf16.mxu0 0
    %2017 = vmatpush1.bf16.xpose.msra.mxu0 0
    %2018 = vmatprep.subr.bf16.mxu0 0
    %2019 = vmatpush1.bf16.xpose.msra.mxu0 0
    %2020 = vmatprep.subr.bf16.mxu0 0
    %2021 = vmatpush1.bf16.xpose.msra.mxu0 0
    %2022 = vmatprep.subr.bf16.mxu0 0
    %2023 = vmatpush1.bf16.xpose.msra.mxu0 0
    %2024 = vmatprep.subr.bf16.mxu0 0
    %2025 = vmatpush1.bf16.xpose.msra.mxu0 0
    %2026 = vmatprep.subr.bf16.mxu0 0
    %2027 = vmatpush1.bf16.xpose.msra.mxu0 0
    %2028 = vmatprep.subr.bf16.mxu0 0
    %2029 = vmatpush1.bf16.xpose.msra.mxu0 0
    %2030 = vmatprep.mubr.bf16.mxu0 0
    %2031 = vmatmul.mubr.bf16.gmra.mrb[0].mxu0 %v1993
    %v2032 = vpop.f32.mrb[0].mxu0
    %v2033 = vadd.f32 0.0, %v2032
    %v2034 = vpop.f32.mrb[0].mxu0
    %v2035 = vpop.f32.mrb[0].mxu0
    %v2036 = vpop.f32.mrb[0].mxu0
    %2037 = vdwg.mxu0
    %2039 = vrot.lane.b32.xlu0 %v1742, 96
    %v2040 = vpop.permute.xlu0 %2039
    %v2042 = vsel %vm359, %v1742, 0
    %v2045 = vsel %vm359, %v2040, 0
    %2047 = vmatprep.subr.bf16.mxu0 0
    %2048 = vmatpush1.bf16.xpose.msra.mxu0 %v2045
    %2049 = vmatprep.subr.bf16.mxu0 0
    %2050 = vmatpush1.bf16.xpose.msra.mxu0 0
    %2051 = vmatprep.subr.bf16.mxu0 0
    %2052 = vmatpush1.bf16.xpose.msra.mxu0 0
    %2053 = vmatprep.subr.bf16.mxu0 0
    %2054 = vmatpush1.bf16.xpose.msra.mxu0 0
    %2055 = vmatprep.subr.bf16.mxu0 0
    %2056 = vmatpush1.bf16.xpose.msra.mxu0 0
    %2057 = vmatprep.subr.bf16.mxu0 0
    %2058 = vmatpush1.bf16.xpose.msra.mxu0 0
    %2059 = vmatprep.subr.bf16.mxu0 0
    %2060 = vmatpush1.bf16.xpose.msra.mxu0 0
    %2061 = vmatprep.subr.bf16.mxu0 0
    %2062 = vmatpush1.bf16.xpose.msra.mxu0 0
    %2063 = vmatprep.subr.bf16.mxu0 0
    %2064 = vmatpush1.bf16.xpose.msra.mxu0 0
    %2065 = vmatprep.subr.bf16.mxu0 0
    %2066 = vmatpush1.bf16.xpose.msra.mxu0 0
    %2067 = vmatprep.subr.bf16.mxu0 0
    %2068 = vmatpush1.bf16.xpose.msra.mxu0 0
    %2069 = vmatprep.subr.bf16.mxu0 0
    %2070 = vmatpush1.bf16.xpose.msra.mxu0 0
    %2071 = vmatprep.subr.bf16.mxu0 0
    %2072 = vmatpush1.bf16.xpose.msra.mxu0 0
    %2073 = vmatprep.subr.bf16.mxu0 0
    %2074 = vmatpush1.bf16.xpose.msra.mxu0 0
    %2075 = vmatprep.subr.bf16.mxu0 0
    %2076 = vmatpush1.bf16.xpose.msra.mxu0 0
    %2077 = vmatprep.subr.bf16.mxu0 0
    %2078 = vmatpush1.bf16.xpose.msra.mxu0 0
    %2079 = vmatprep.mubr.bf16.mxu0 0
    %2080 = vmatmul.mubr.bf16.gmra.mrb[0].mxu0 %v2042
    %v2081 = vpop.f32.mrb[0].mxu0
    %v2082 = vadd.f32 0.0, %v2081
    %v2083 = vpop.f32.mrb[0].mxu0
    %v2084 = vpop.f32.mrb[0].mxu0
    %v2085 = vpop.f32.mrb[0].mxu0
    %2086 = vdwg.mxu0
    %2088 = vrot.lane.b32.xlu0 %v1743, 96
    %v2089 = vpop.permute.xlu0 %2088
    %v2091 = vsel %vm359, %v1743, 0
    %v2094 = vsel %vm359, %v2089, 0
    %2096 = vmatprep.subr.bf16.mxu0 0
    %2097 = vmatpush1.bf16.xpose.msra.mxu0 %v2094
    %2098 = vmatprep.subr.bf16.mxu0 0
    %2099 = vmatpush1.bf16.xpose.msra.mxu0 0
    %2100 = vmatprep.subr.bf16.mxu0 0
    %2101 = vmatpush1.bf16.xpose.msra.mxu0 0
    %2102 = vmatprep.subr.bf16.mxu0 0
    %2103 = vmatpush1.bf16.xpose.msra.mxu0 0
    %2104 = vmatprep.subr.bf16.mxu0 0
    %2105 = vmatpush1.bf16.xpose.msra.mxu0 0
    %2106 = vmatprep.subr.bf16.mxu0 0
    %2107 = vmatpush1.bf16.xpose.msra.mxu0 0
    %2108 = vmatprep.subr.bf16.mxu0 0
    %2109 = vmatpush1.bf16.xpose.msra.mxu0 0
    %2110 = vmatprep.subr.bf16.mxu0 0
    %2111 = vmatpush1.bf16.xpose.msra.mxu0 0
    %2112 = vmatprep.subr.bf16.mxu0 0
    %2113 = vmatpush1.bf16.xpose.msra.mxu0 0
    %2114 = vmatprep.subr.bf16.mxu0 0
    %2115 = vmatpush1.bf16.xpose.msra.mxu0 0
    %2116 = vmatprep.subr.bf16.mxu0 0
    %2117 = vmatpush1.bf16.xpose.msra.mxu0 0
    %2118 = vmatprep.subr.bf16.mxu0 0
    %2119 = vmatpush1.bf16.xpose.msra.mxu0 0
    %2120 = vmatprep.subr.bf16.mxu0 0
    %2121 = vmatpush1.bf16.xpose.msra.mxu0 0
    %2122 = vmatprep.subr.bf16.mxu0 0
    %2123 = vmatpush1.bf16.xpose.msra.mxu0 0
    %2124 = vmatprep.subr.bf16.mxu0 0
    %2125 = vmatpush1.bf16.xpose.msra.mxu0 0
    %2126 = vmatprep.subr.bf16.mxu0 0
    %2127 = vmatpush1.bf16.xpose.msra.mxu0 0
    %2128 = vmatprep.mubr.bf16.mxu0 0
    %2129 = vmatmul.mubr.bf16.gmra.mrb[0].mxu0 %v2091
    %v2130 = vpop.f32.mrb[0].mxu0
    %v2131 = vadd.f32 0.0, %v2130
    %v2132 = vpop.f32.mrb[0].mxu0
    %v2133 = vpop.f32.mrb[0].mxu0
    %v2134 = vpop.f32.mrb[0].mxu0
    %2135 = vdwg.mxu0
    %v2136 = vmul.f32 %v1788, 0.35355338
    %v2137 = vmul.f32 %v1837, 0.35355338
    %v2138 = vmul.f32 %v1886, 0.35355338
    %v2139 = vmul.f32 %v1935, 0.35355338
    %v2140 = vmul.f32 %v1984, 0.35355338
    %v2141 = vmul.f32 %v2033, 0.35355338
    %v2142 = vmul.f32 %v2082, 0.35355338
    %v2143 = vmul.f32 %v2131, 0.35355338
    %v2144 = vadd.f32 %v2136, %v760
    %v2145 = vadd.f32 %v2137, %v764
    %v2146 = vadd.f32 %v2138, %v768
    %v2147 = vadd.f32 %v2139, %v772
    %v2148 = vadd.f32 %v2140, %v776
    %v2149 = vadd.f32 %v2141, %v780
    %v2150 = vadd.f32 %v2142, %v784
    %v2151 = vadd.f32 %v2143, %v788
    %v2152 = vsel %vm359, %v2144, -inf
    %2153 = vmax.xlane.f32.xlu0 %v2152
    %v2154 = vpop.xlane.xlu0 %2153
    %v2155 = vsel %vm359, %v2145, -inf
    %2156 = vmax.xlane.f32.xlu0 %v2155
    %v2157 = vpop.xlane.xlu0 %2156
    %v2158 = vsel %vm359, %v2146, -inf
    %2159 = vmax.xlane.f32.xlu0 %v2158
    %v2160 = vpop.xlane.xlu0 %2159
    %v2161 = vsel %vm359, %v2147, -inf
    %2162 = vmax.xlane.f32.xlu0 %v2161
    %v2163 = vpop.xlane.xlu0 %2162
    %v2164 = vsel %vm359, %v2148, -inf
    %2165 = vmax.xlane.f32.xlu0 %v2164
    %v2166 = vpop.xlane.xlu0 %2165
    %v2167 = vsel %vm359, %v2149, -inf
    %2168 = vmax.xlane.f32.xlu0 %v2167
    %v2169 = vpop.xlane.xlu0 %2168
    %v2170 = vsel %vm359, %v2150, -inf
    %2171 = vmax.xlane.f32.xlu0 %v2170
    %v2172 = vpop.xlane.xlu0 %2171
    %v2173 = vsel %vm359, %v2151, -inf
    %2174 = vmax.xlane.f32.xlu0 %v2173
    %v2175 = vpop.xlane.xlu0 %2174
    %v2176 = vsub.f32 %v2144, %v2154
    %v2177 = vsub.f32 %v2145, %v2157
    %v2178 = vsub.f32 %v2146, %v2160
    %v2179 = vsub.f32 %v2147, %v2163
    %v2180 = vsub.f32 %v2148, %v2166
    %v2181 = vsub.f32 %v2149, %v2169
    %v2182 = vsub.f32 %v2150, %v2172
    %v2183 = vsub.f32 %v2151, %v2175
    %v2184 = vmul.f32 %v2176, 1.442695
    %v2185 = vpow.pop %v2184
    %v2186 = vmul.f32 %v2177, 1.442695
    %v2187 = vpow.pop %v2186
    %v2188 = vmul.f32 %v2178, 1.442695
    %v2189 = vpow.pop %v2188
    %v2190 = vmul.f32 %v2179, 1.442695
    %v2191 = vpow.pop %v2190
    %v2192 = vmul.f32 %v2180, 1.442695
    %v2193 = vpow.pop %v2192
    %v2194 = vmul.f32 %v2181, 1.442695
    %v2195 = vpow.pop %v2194
    %v2196 = vmul.f32 %v2182, 1.442695
    %v2197 = vpow.pop %v2196
    %v2198 = vmul.f32 %v2183, 1.442695
    %v2199 = vpow.pop %v2198
    %v2200 = vsel %vm359, %v2185, 0.0
    %2201 = vadd.xlane.f32.xlu0 %v2200
    %v2202 = vpop.xlane.xlu0 %2201
    %v2203 = vsel %vm359, %v2187, 0.0
    %2204 = vadd.xlane.f32.xlu0 %v2203
    %v2205 = vpop.xlane.xlu0 %2204
    %v2206 = vsel %vm359, %v2189, 0.0
    %2207 = vadd.xlane.f32.xlu0 %v2206
    %v2208 = vpop.xlane.xlu0 %2207
    %v2209 = vsel %vm359, %v2191, 0.0
    %2210 = vadd.xlane.f32.xlu0 %v2209
    %v2211 = vpop.xlane.xlu0 %2210
    %v2212 = vsel %vm359, %v2193, 0.0
    %2213 = vadd.xlane.f32.xlu0 %v2212
    %v2214 = vpop.xlane.xlu0 %2213
    %v2215 = vsel %vm359, %v2195, 0.0
    %2216 = vadd.xlane.f32.xlu0 %v2215
    %v2217 = vpop.xlane.xlu0 %2216
    %v2218 = vsel %vm359, %v2197, 0.0
    %2219 = vadd.xlane.f32.xlu0 %v2218
    %v2220 = vpop.xlane.xlu0 %2219
    %v2221 = vsel %vm359, %v2199, 0.0
    %2222 = vadd.xlane.f32.xlu0 %v2221
    %v2223 = vpop.xlane.xlu0 %2222
    %v2224 = vrcp.pop %v2202
    %v2225 = vrcp.pop %v2205
    %v2226 = vrcp.pop %v2208
    %v2227 = vrcp.pop %v2211
    %v2228 = vrcp.pop %v2214
    %v2229 = vrcp.pop %v2217
    %v2230 = vrcp.pop %v2220
    %v2231 = vrcp.pop %v2223
    %v2232 = vmul.f32 %v2185, %v2224
    %v2233 = vmul.f32 %v2187, %v2225
    %v2234 = vmul.f32 %v2189, %v2226
    %v2235 = vmul.f32 %v2191, %v2227
    %v2236 = vmul.f32 %v2193, %v2228
    %v2237 = vmul.f32 %v2195, %v2229
    %v2238 = vmul.f32 %v2197, %v2230
    %v2239 = vmul.f32 %v2199, %v2231
    %2241 = vrot.lane.b32.xlu0 %v2233, 8
    %v2242 = vpop.permute.xlu0 %2241
    %2245 = vrot.lane.b32.xlu0 %v2234, 16
    %v2246 = vpop.permute.xlu0 %2245
    %2249 = vrot.lane.b32.xlu0 %v2235, 24
    %v2250 = vpop.permute.xlu0 %2249
    %2253 = vrot.lane.b32.xlu0 %v2236, 32
    %v2254 = vpop.permute.xlu0 %2253
    %2257 = vrot.lane.b32.xlu0 %v2237, 40
    %v2258 = vpop.permute.xlu0 %2257
    %2261 = vrot.lane.b32.xlu0 %v2238, 48
    %v2262 = vpop.permute.xlu0 %2261
    %2265 = vrot.lane.b32.xlu0 %v2239, 56
    %v2266 = vpop.permute.xlu0 %2265
    %v2268 = vsel %vm359, %v2232, %v2242
    %v2269 = vsel %vm922, %v2268, %v2246
    %v2270 = vsel %vm924, %v2269, %v2250
    %v2271 = vsel %vm226, %v2270, %v2254
    %v2272 = vsel %vm927, %v2271, %v2258
    %v2273 = vsel %vm929, %v2272, %v2262
    %v2274 = vsel %vm931, %v2273, %v2266
    %v2275 = vpack.c.bf16 %v2232, %v2232
    %v2276 = vpack.c.bf16 %v2233, %v2233
    %v2277 = vpack.c.bf16 %v2234, %v2234
    %v2278 = vpack.c.bf16 %v2235, %v2235
    %v2279 = vpack.c.bf16 %v2236, %v2236
    %v2280 = vpack.c.bf16 %v2237, %v2237
    %v2281 = vpack.c.bf16 %v2238, %v2238
    %v2282 = vpack.c.bf16 %v2239, %v2239
    %2283 = vrot.lane.b32.xlu0 %v1736, 64
    %v2284 = vpop.permute.xlu0 %2283
    %v2286 = vsel %vm359, %v2275, 0
    %v2289 = vsel %vm168, %v2284, 0
    %2291 = vmatprep.subr.bf16.mxu0 0
    %2292 = vmatpush1.bf16.msra.mxu0 %v2289
    %2293 = vmatprep.subr.bf16.mxu0 0
    %2294 = vmatpush1.bf16.msra.mxu0 0
    %2295 = vmatprep.subr.bf16.mxu0 0
    %2296 = vmatpush1.bf16.msra.mxu0 0
    %2297 = vmatprep.subr.bf16.mxu0 0
    %2298 = vmatpush1.bf16.msra.mxu0 0
    %2299 = vmatprep.subr.bf16.mxu0 0
    %2300 = vmatpush1.bf16.msra.mxu0 0
    %2301 = vmatprep.subr.bf16.mxu0 0
    %2302 = vmatpush1.bf16.msra.mxu0 0
    %2303 = vmatprep.subr.bf16.mxu0 0
    %2304 = vmatpush1.bf16.msra.mxu0 0
    %2305 = vmatprep.subr.bf16.mxu0 0
    %2306 = vmatpush1.bf16.msra.mxu0 0
    %2307 = vmatprep.subr.bf16.mxu0 0
    %2308 = vmatpush1.bf16.msra.mxu0 0
    %2309 = vmatprep.subr.bf16.mxu0 0
    %2310 = vmatpush1.bf16.msra.mxu0 0
    %2311 = vmatprep.subr.bf16.mxu0 0
    %2312 = vmatpush1.bf16.msra.mxu0 0
    %2313 = vmatprep.subr.bf16.mxu0 0
    %2314 = vmatpush1.bf16.msra.mxu0 0
    %2315 = vmatprep.subr.bf16.mxu0 0
    %2316 = vmatpush1.bf16.msra.mxu0 0
    %2317 = vmatprep.subr.bf16.mxu0 0
    %2318 = vmatpush1.bf16.msra.mxu0 0
    %2319 = vmatprep.subr.bf16.mxu0 0
    %2320 = vmatpush1.bf16.msra.mxu0 0
    %2321 = vmatprep.subr.bf16.mxu0 0
    %2322 = vmatpush1.bf16.msra.mxu0 0
    %2323 = vmatprep.mubr.bf16.mxu0 0
    %2324 = vmatmul.mubr.bf16.gmra.mrb[0].mxu0 %v2286
    %v2325 = vpop.f32.mrb[0].mxu0
    %v2326 = vadd.f32 0.0, %v2325
    %v2327 = vpop.f32.mrb[0].mxu0
    %v2328 = vpop.f32.mrb[0].mxu0
    %v2329 = vpop.f32.mrb[0].mxu0
    %2330 = vdwg.mxu0
    %2331 = vrot.lane.b32.xlu0 %v1737, 64
    %v2332 = vpop.permute.xlu0 %2331
    %v2334 = vsel %vm359, %v2276, 0
    %v2337 = vsel %vm168, %v2332, 0
    %2339 = vmatprep.subr.bf16.mxu0 0
    %2340 = vmatpush1.bf16.msra.mxu0 %v2337
    %2341 = vmatprep.subr.bf16.mxu0 0
    %2342 = vmatpush1.bf16.msra.mxu0 0
    %2343 = vmatprep.subr.bf16.mxu0 0
    %2344 = vmatpush1.bf16.msra.mxu0 0
    %2345 = vmatprep.subr.bf16.mxu0 0
    %2346 = vmatpush1.bf16.msra.mxu0 0
    %2347 = vmatprep.subr.bf16.mxu0 0
    %2348 = vmatpush1.bf16.msra.mxu0 0
    %2349 = vmatprep.subr.bf16.mxu0 0
    %2350 = vmatpush1.bf16.msra.mxu0 0
    %2351 = vmatprep.subr.bf16.mxu0 0
    %2352 = vmatpush1.bf16.msra.mxu0 0
    %2353 = vmatprep.subr.bf16.mxu0 0
    %2354 = vmatpush1.bf16.msra.mxu0 0
    %2355 = vmatprep.subr.bf16.mxu0 0
    %2356 = vmatpush1.bf16.msra.mxu0 0
    %2357 = vmatprep.subr.bf16.mxu0 0
    %2358 = vmatpush1.bf16.msra.mxu0 0
    %2359 = vmatprep.subr.bf16.mxu0 0
    %2360 = vmatpush1.bf16.msra.mxu0 0
    %2361 = vmatprep.subr.bf16.mxu0 0
    %2362 = vmatpush1.bf16.msra.mxu0 0
    %2363 = vmatprep.subr.bf16.mxu0 0
    %2364 = vmatpush1.bf16.msra.mxu0 0
    %2365 = vmatprep.subr.bf16.mxu0 0
    %2366 = vmatpush1.bf16.msra.mxu0 0
    %2367 = vmatprep.subr.bf16.mxu0 0
    %2368 = vmatpush1.bf16.msra.mxu0 0
    %2369 = vmatprep.subr.bf16.mxu0 0
    %2370 = vmatpush1.bf16.msra.mxu0 0
    %2371 = vmatprep.mubr.bf16.mxu0 0
    %2372 = vmatmul.mubr.bf16.gmra.mrb[0].mxu0 %v2334
    %v2373 = vpop.f32.mrb[0].mxu0
    %v2374 = vadd.f32 0.0, %v2373
    %v2375 = vpop.f32.mrb[0].mxu0
    %v2376 = vpop.f32.mrb[0].mxu0
    %v2377 = vpop.f32.mrb[0].mxu0
    %2378 = vdwg.mxu0
    %2379 = vrot.lane.b32.xlu0 %v1738, 64
    %v2380 = vpop.permute.xlu0 %2379
    %v2382 = vsel %vm359, %v2277, 0
    %v2385 = vsel %vm168, %v2380, 0
    %2387 = vmatprep.subr.bf16.mxu0 0
    %2388 = vmatpush1.bf16.msra.mxu0 %v2385
    %2389 = vmatprep.subr.bf16.mxu0 0
    %2390 = vmatpush1.bf16.msra.mxu0 0
    %2391 = vmatprep.subr.bf16.mxu0 0
    %2392 = vmatpush1.bf16.msra.mxu0 0
    %2393 = vmatprep.subr.bf16.mxu0 0
    %2394 = vmatpush1.bf16.msra.mxu0 0
    %2395 = vmatprep.subr.bf16.mxu0 0
    %2396 = vmatpush1.bf16.msra.mxu0 0
    %2397 = vmatprep.subr.bf16.mxu0 0
    %2398 = vmatpush1.bf16.msra.mxu0 0
    %2399 = vmatprep.subr.bf16.mxu0 0
    %2400 = vmatpush1.bf16.msra.mxu0 0
    %2401 = vmatprep.subr.bf16.mxu0 0
    %2402 = vmatpush1.bf16.msra.mxu0 0
    %2403 = vmatprep.subr.bf16.mxu0 0
    %2404 = vmatpush1.bf16.msra.mxu0 0
    %2405 = vmatprep.subr.bf16.mxu0 0
    %2406 = vmatpush1.bf16.msra.mxu0 0
    %2407 = vmatprep.subr.bf16.mxu0 0
    %2408 = vmatpush1.bf16.msra.mxu0 0
    %2409 = vmatprep.subr.bf16.mxu0 0
    %2410 = vmatpush1.bf16.msra.mxu0 0
    %2411 = vmatprep.subr.bf16.mxu0 0
    %2412 = vmatpush1.bf16.msra.mxu0 0
    %2413 = vmatprep.subr.bf16.mxu0 0
    %2414 = vmatpush1.bf16.msra.mxu0 0
    %2415 = vmatprep.subr.bf16.mxu0 0
    %2416 = vmatpush1.bf16.msra.mxu0 0
    %2417 = vmatprep.subr.bf16.mxu0 0
    %2418 = vmatpush1.bf16.msra.mxu0 0
    %2419 = vmatprep.mubr.bf16.mxu0 0
    %2420 = vmatmul.mubr.bf16.gmra.mrb[0].mxu0 %v2382
    %v2421 = vpop.f32.mrb[0].mxu0
    %v2422 = vadd.f32 0.0, %v2421
    %v2423 = vpop.f32.mrb[0].mxu0
    %v2424 = vpop.f32.mrb[0].mxu0
    %v2425 = vpop.f32.mrb[0].mxu0
    %2426 = vdwg.mxu0
    %2427 = vrot.lane.b32.xlu0 %v1739, 64
    %v2428 = vpop.permute.xlu0 %2427
    %v2430 = vsel %vm359, %v2278, 0
    %v2433 = vsel %vm168, %v2428, 0
    %2435 = vmatprep.subr.bf16.mxu0 0
    %2436 = vmatpush1.bf16.msra.mxu0 %v2433
    %2437 = vmatprep.subr.bf16.mxu0 0
    %2438 = vmatpush1.bf16.msra.mxu0 0
    %2439 = vmatprep.subr.bf16.mxu0 0
    %2440 = vmatpush1.bf16.msra.mxu0 0
    %2441 = vmatprep.subr.bf16.mxu0 0
    %2442 = vmatpush1.bf16.msra.mxu0 0
    %2443 = vmatprep.subr.bf16.mxu0 0
    %2444 = vmatpush1.bf16.msra.mxu0 0
    %2445 = vmatprep.subr.bf16.mxu0 0
    %2446 = vmatpush1.bf16.msra.mxu0 0
    %2447 = vmatprep.subr.bf16.mxu0 0
    %2448 = vmatpush1.bf16.msra.mxu0 0
    %2449 = vmatprep.subr.bf16.mxu0 0
    %2450 = vmatpush1.bf16.msra.mxu0 0
    %2451 = vmatprep.subr.bf16.mxu0 0
    %2452 = vmatpush1.bf16.msra.mxu0 0
    %2453 = vmatprep.subr.bf16.mxu0 0
    %2454 = vmatpush1.bf16.msra.mxu0 0
    %2455 = vmatprep.subr.bf16.mxu0 0
    %2456 = vmatpush1.bf16.msra.mxu0 0
    %2457 = vmatprep.subr.bf16.mxu0 0
    %2458 = vmatpush1.bf16.msra.mxu0 0
    %2459 = vmatprep.subr.bf16.mxu0 0
    %2460 = vmatpush1.bf16.msra.mxu0 0
    %2461 = vmatprep.subr.bf16.mxu0 0
    %2462 = vmatpush1.bf16.msra.mxu0 0
    %2463 = vmatprep.subr.bf16.mxu0 0
    %2464 = vmatpush1.bf16.msra.mxu0 0
    %2465 = vmatprep.subr.bf16.mxu0 0
    %2466 = vmatpush1.bf16.msra.mxu0 0
    %2467 = vmatprep.mubr.bf16.mxu0 0
    %2468 = vmatmul.mubr.bf16.gmra.mrb[0].mxu0 %v2430
    %v2469 = vpop.f32.mrb[0].mxu0
    %v2470 = vadd.f32 0.0, %v2469
    %v2471 = vpop.f32.mrb[0].mxu0
    %v2472 = vpop.f32.mrb[0].mxu0
    %v2473 = vpop.f32.mrb[0].mxu0
    %2474 = vdwg.mxu0
    %2475 = vrot.lane.b32.xlu0 %v1740, 64
    %v2476 = vpop.permute.xlu0 %2475
    %v2478 = vsel %vm359, %v2279, 0
    %v2481 = vsel %vm168, %v2476, 0
    %2483 = vmatprep.subr.bf16.mxu0 0
    %2484 = vmatpush1.bf16.msra.mxu0 %v2481
    %2485 = vmatprep.subr.bf16.mxu0 0
    %2486 = vmatpush1.bf16.msra.mxu0 0
    %2487 = vmatprep.subr.bf16.mxu0 0
    %2488 = vmatpush1.bf16.msra.mxu0 0
    %2489 = vmatprep.subr.bf16.mxu0 0
    %2490 = vmatpush1.bf16.msra.mxu0 0
    %2491 = vmatprep.subr.bf16.mxu0 0
    %2492 = vmatpush1.bf16.msra.mxu0 0
    %2493 = vmatprep.subr.bf16.mxu0 0
    %2494 = vmatpush1.bf16.msra.mxu0 0
    %2495 = vmatprep.subr.bf16.mxu0 0
    %2496 = vmatpush1.bf16.msra.mxu0 0
    %2497 = vmatprep.subr.bf16.mxu0 0
    %2498 = vmatpush1.bf16.msra.mxu0 0
    %2499 = vmatprep.subr.bf16.mxu0 0
    %2500 = vmatpush1.bf16.msra.mxu0 0
    %2501 = vmatprep.subr.bf16.mxu0 0
    %2502 = vmatpush1.bf16.msra.mxu0 0
    %2503 = vmatprep.subr.bf16.mxu0 0
    %2504 = vmatpush1.bf16.msra.mxu0 0
    %2505 = vmatprep.subr.bf16.mxu0 0
    %2506 = vmatpush1.bf16.msra.mxu0 0
    %2507 = vmatprep.subr.bf16.mxu0 0
    %2508 = vmatpush1.bf16.msra.mxu0 0
    %2509 = vmatprep.subr.bf16.mxu0 0
    %2510 = vmatpush1.bf16.msra.mxu0 0
    %2511 = vmatprep.subr.bf16.mxu0 0
    %2512 = vmatpush1.bf16.msra.mxu0 0
    %2513 = vmatprep.subr.bf16.mxu0 0
    %2514 = vmatpush1.bf16.msra.mxu0 0
    %2515 = vmatprep.mubr.bf16.mxu0 0
    %2516 = vmatmul.mubr.bf16.gmra.mrb[0].mxu0 %v2478
    %v2517 = vpop.f32.mrb[0].mxu0
    %v2518 = vadd.f32 0.0, %v2517
    %v2519 = vpop.f32.mrb[0].mxu0
    %v2520 = vpop.f32.mrb[0].mxu0
    %v2521 = vpop.f32.mrb[0].mxu0
    %2522 = vdwg.mxu0
    %2523 = vrot.lane.b32.xlu0 %v1741, 64
    %v2524 = vpop.permute.xlu0 %2523
    %v2526 = vsel %vm359, %v2280, 0
    %v2529 = vsel %vm168, %v2524, 0
    %2531 = vmatprep.subr.bf16.mxu0 0
    %2532 = vmatpush1.bf16.msra.mxu0 %v2529
    %2533 = vmatprep.subr.bf16.mxu0 0
    %2534 = vmatpush1.bf16.msra.mxu0 0
    %2535 = vmatprep.subr.bf16.mxu0 0
    %2536 = vmatpush1.bf16.msra.mxu0 0
    %2537 = vmatprep.subr.bf16.mxu0 0
    %2538 = vmatpush1.bf16.msra.mxu0 0
    %2539 = vmatprep.subr.bf16.mxu0 0
    %2540 = vmatpush1.bf16.msra.mxu0 0
    %2541 = vmatprep.subr.bf16.mxu0 0
    %2542 = vmatpush1.bf16.msra.mxu0 0
    %2543 = vmatprep.subr.bf16.mxu0 0
    %2544 = vmatpush1.bf16.msra.mxu0 0
    %2545 = vmatprep.subr.bf16.mxu0 0
    %2546 = vmatpush1.bf16.msra.mxu0 0
    %2547 = vmatprep.subr.bf16.mxu0 0
    %2548 = vmatpush1.bf16.msra.mxu0 0
    %2549 = vmatprep.subr.bf16.mxu0 0
    %2550 = vmatpush1.bf16.msra.mxu0 0
    %2551 = vmatprep.subr.bf16.mxu0 0
    %2552 = vmatpush1.bf16.msra.mxu0 0
    %2553 = vmatprep.subr.bf16.mxu0 0
    %2554 = vmatpush1.bf16.msra.mxu0 0
    %2555 = vmatprep.subr.bf16.mxu0 0
    %2556 = vmatpush1.bf16.msra.mxu0 0
    %2557 = vmatprep.subr.bf16.mxu0 0
    %2558 = vmatpush1.bf16.msra.mxu0 0
    %2559 = vmatprep.subr.bf16.mxu0 0
    %2560 = vmatpush1.bf16.msra.mxu0 0
    %2561 = vmatprep.subr.bf16.mxu0 0
    %2562 = vmatpush1.bf16.msra.mxu0 0
    %2563 = vmatprep.mubr.bf16.mxu0 0
    %2564 = vmatmul.mubr.bf16.gmra.mrb[0].mxu0 %v2526
    %v2565 = vpop.f32.mrb[0].mxu0
    %v2566 = vadd.f32 0.0, %v2565
    %v2567 = vpop.f32.mrb[0].mxu0
    %v2568 = vpop.f32.mrb[0].mxu0
    %v2569 = vpop.f32.mrb[0].mxu0
    %2570 = vdwg.mxu0
    %2571 = vrot.lane.b32.xlu0 %v1742, 64
    %v2572 = vpop.permute.xlu0 %2571
    %v2574 = vsel %vm359, %v2281, 0
    %v2577 = vsel %vm168, %v2572, 0
    %2579 = vmatprep.subr.bf16.mxu0 0
    %2580 = vmatpush1.bf16.msra.mxu0 %v2577
    %2581 = vmatprep.subr.bf16.mxu0 0
    %2582 = vmatpush1.bf16.msra.mxu0 0
    %2583 = vmatprep.subr.bf16.mxu0 0
    %2584 = vmatpush1.bf16.msra.mxu0 0
    %2585 = vmatprep.subr.bf16.mxu0 0
    %2586 = vmatpush1.bf16.msra.mxu0 0
    %2587 = vmatprep.subr.bf16.mxu0 0
    %2588 = vmatpush1.bf16.msra.mxu0 0
    %2589 = vmatprep.subr.bf16.mxu0 0
    %2590 = vmatpush1.bf16.msra.mxu0 0
    %2591 = vmatprep.subr.bf16.mxu0 0
    %2592 = vmatpush1.bf16.msra.mxu0 0
    %2593 = vmatprep.subr.bf16.mxu0 0
    %2594 = vmatpush1.bf16.msra.mxu0 0
    %2595 = vmatprep.subr.bf16.mxu0 0
    %2596 = vmatpush1.bf16.msra.mxu0 0
    %2597 = vmatprep.subr.bf16.mxu0 0
    %2598 = vmatpush1.bf16.msra.mxu0 0
    %2599 = vmatprep.subr.bf16.mxu0 0
    %2600 = vmatpush1.bf16.msra.mxu0 0
    %2601 = vmatprep.subr.bf16.mxu0 0
    %2602 = vmatpush1.bf16.msra.mxu0 0
    %2603 = vmatprep.subr.bf16.mxu0 0
    %2604 = vmatpush1.bf16.msra.mxu0 0
    %2605 = vmatprep.subr.bf16.mxu0 0
    %2606 = vmatpush1.bf16.msra.mxu0 0
    %2607 = vmatprep.subr.bf16.mxu0 0
    %2608 = vmatpush1.bf16.msra.mxu0 0
    %2609 = vmatprep.subr.bf16.mxu0 0
    %2610 = vmatpush1.bf16.msra.mxu0 0
    %2611 = vmatprep.mubr.bf16.mxu0 0
    %2612 = vmatmul.mubr.bf16.gmra.mrb[0].mxu0 %v2574
    %v2613 = vpop.f32.mrb[0].mxu0
    %v2614 = vadd.f32 0.0, %v2613
    %v2615 = vpop.f32.mrb[0].mxu0
    %v2616 = vpop.f32.mrb[0].mxu0
    %v2617 = vpop.f32.mrb[0].mxu0
    %2618 = vdwg.mxu0
    %2619 = vrot.lane.b32.xlu0 %v1743, 64
    %v2620 = vpop.permute.xlu0 %2619
    %v2622 = vsel %vm359, %v2282, 0
    %v2625 = vsel %vm168, %v2620, 0
    %2627 = vmatprep.subr.bf16.mxu0 0
    %2628 = vmatpush1.bf16.msra.mxu0 %v2625
    %2629 = vmatprep.subr.bf16.mxu0 0
    %2630 = vmatpush1.bf16.msra.mxu0 0
    %2631 = vmatprep.subr.bf16.mxu0 0
    %2632 = vmatpush1.bf16.msra.mxu0 0
    %2633 = vmatprep.subr.bf16.mxu0 0
    %2634 = vmatpush1.bf16.msra.mxu0 0
    %2635 = vmatprep.subr.bf16.mxu0 0
    %2636 = vmatpush1.bf16.msra.mxu0 0
    %2637 = vmatprep.subr.bf16.mxu0 0
    %2638 = vmatpush1.bf16.msra.mxu0 0
    %2639 = vmatprep.subr.bf16.mxu0 0
    %2640 = vmatpush1.bf16.msra.mxu0 0
    %2641 = vmatprep.subr.bf16.mxu0 0
    %2642 = vmatpush1.bf16.msra.mxu0 0
    %2643 = vmatprep.subr.bf16.mxu0 0
    %2644 = vmatpush1.bf16.msra.mxu0 0
    %2645 = vmatprep.subr.bf16.mxu0 0
    %2646 = vmatpush1.bf16.msra.mxu0 0
    %2647 = vmatprep.subr.bf16.mxu0 0
    %2648 = vmatpush1.bf16.msra.mxu0 0
    %2649 = vmatprep.subr.bf16.mxu0 0
    %2650 = vmatpush1.bf16.msra.mxu0 0
    %2651 = vmatprep.subr.bf16.mxu0 0
    %2652 = vmatpush1.bf16.msra.mxu0 0
    %2653 = vmatprep.subr.bf16.mxu0 0
    %2654 = vmatpush1.bf16.msra.mxu0 0
    %2655 = vmatprep.subr.bf16.mxu0 0
    %2656 = vmatpush1.bf16.msra.mxu0 0
    %2657 = vmatprep.subr.bf16.mxu0 0
    %2658 = vmatpush1.bf16.msra.mxu0 0
    %2659 = vmatprep.mubr.bf16.mxu0 0
    %2660 = vmatmul.mubr.bf16.gmra.mrb[0].mxu0 %v2622
    %v2661 = vpop.f32.mrb[0].mxu0
    %v2662 = vadd.f32 0.0, %v2661
    %v2663 = vpop.f32.mrb[0].mxu0
    %v2664 = vpop.f32.mrb[0].mxu0
    %v2665 = vpop.f32.mrb[0].mxu0
    %2666 = vdwg.mxu0
    %2669 = vrot.lane.b32.xlu0 %v2422, 8
    %v2670 = vpop.permute.xlu0 %2669
    %2671 = vrot.lane.b32.xlu0 %v2470, 8
    %v2672 = vpop.permute.xlu0 %2671
    %2677 = vrot.lane.b32.xlu0 %v2518, 16
    %v2678 = vpop.permute.xlu0 %2677
    %2679 = vrot.lane.b32.xlu0 %v2566, 16
    %v2680 = vpop.permute.xlu0 %2679
    %2685 = vrot.lane.b32.xlu0 %v2614, 24
    %v2686 = vpop.permute.xlu0 %2685
    %2687 = vrot.lane.b32.xlu0 %v2662, 24
    %v2688 = vpop.permute.xlu0 %2687
    %v2691 = vsel %vm359, %v2326, %v2670
    %v2692 = vsel %vm359, %v2374, %v2672
    %v2693 = vsel %vm922, %v2691, %v2678
    %v2694 = vsel %vm922, %v2692, %v2680
    %v2695 = vsel %vm924, %v2693, %v2686
    %v2696 = vsel %vm924, %v2694, %v2688
    %s2697 = scalar_lea.vmem %s6, 32
    %v2698 = vld [vmem:[%s2697] sm:$0xff]
    %v2699 = vld [vmem:[%s2697 + $0x8] sm:$0xff]
    %v2700 = vld [vmem:[%s2697 + $0x10] sm:$0xff]
    %v2701 = vld [vmem:[%s2697 + $0x18] sm:$0xff]
    %v2702 = vpack.c.bf16 %v2696, %v2695
    %v2703 = vpack.c.bf16 %v2699, %v2698
    %v2704 = vpack.c.bf16 %v2701, %v2700
    %s2705 = scalar_lea.vmem [#allocation10], 1
    %v2706 = vld [vmem:[%s2705] sm:$0x1]
    %v2708 = vlaneseq
    %v2709 = vshrl.u32 %v2708, 7
    %v2710 = vsub.s32 0, %v2709
    %v2711 = vrot.slane %v2706, %v2710
    %v2714 = vsel %vm226, %v2702, 0
    %2716 = vmatprep.subr.bf16.mxu0 0
    %2717 = vmatpush1.bf16.msra.mxu0 %v2703
    %2718 = vmatprep.subr.bf16.mxu0 0
    %2719 = vmatpush1.bf16.msra.mxu0 %v2704
    %2720 = vmatprep.subr.bf16.mxu0 0
    %2721 = vmatpush1.bf16.msra.mxu0 0
    %2722 = vmatprep.subr.bf16.mxu0 0
    %2723 = vmatpush1.bf16.msra.mxu0 0
    %2724 = vmatprep.subr.bf16.mxu0 0
    %2725 = vmatpush1.bf16.msra.mxu0 0
    %2726 = vmatprep.subr.bf16.mxu0 0
    %2727 = vmatpush1.bf16.msra.mxu0 0
    %2728 = vmatprep.subr.bf16.mxu0 0
    %2729 = vmatpush1.bf16.msra.mxu0 0
    %2730 = vmatprep.subr.bf16.mxu0 0
    %2731 = vmatpush1.bf16.msra.mxu0 0
    %2732 = vmatprep.subr.bf16.mxu0 0
    %2733 = vmatpush1.bf16.msra.mxu0 0
    %2734 = vmatprep.subr.bf16.mxu0 0
    %2735 = vmatpush1.bf16.msra.mxu0 0
    %2736 = vmatprep.subr.bf16.mxu0 0
    %2737 = vmatpush1.bf16.msra.mxu0 0
    %2738 = vmatprep.subr.bf16.mxu0 0
    %2739 = vmatpush1.bf16.msra.mxu0 0
    %2740 = vmatprep.subr.bf16.mxu0 0
    %2741 = vmatpush1.bf16.msra.mxu0 0
    %2742 = vmatprep.subr.bf16.mxu0 0
    %2743 = vmatpush1.bf16.msra.mxu0 0
    %2744 = vmatprep.subr.bf16.mxu0 0
    %2745 = vmatpush1.bf16.msra.mxu0 0
    %2746 = vmatprep.subr.bf16.mxu0 0
    %2747 = vmatpush1.bf16.msra.mxu0 0
    %2748 = vmatprep.mubr.bf16.mxu0 0
    %2749 = vmatmul.mubr.bf16.gmra.mrb[0].mxu0 %v2714
    %v2750 = vpop.f32.mrb[0].mxu0
    %v2751 = vadd.f32 %v2711, %v2750
    %v2752 = vpop.f32.mrb[0].mxu0
    %v2753 = vpop.f32.mrb[0].mxu0
    %v2754 = vadd.f32 %v2711, %v2753
    %v2755 = vpop.f32.mrb[0].mxu0
    %2756 = vdwg.mxu0
    %2758 = vrot.lane.b32.xlu0 %v2754, 32
    %v2759 = vpop.permute.xlu0 %2758
    %v2761 = vsel %vm226, %v2751, %v2759
    %v2762 = vadd.f32 %v2751, %v1649
    %v2763 = vadd.f32 %v2754, %v1650
    %s2764 = scalar_lea.vmem [#allocation11], 1
    %v2765 = vld [vmem:[%s2764] sm:$0x1]
    %s2766 = scalar_lea.vmem [#allocation13], 1
    %v2767 = vld [vmem:[%s2766] sm:$0x1]
    %v2768 = vsel %vm226, %v2762, 0.0
    %2769 = vadd.xlane.f32.xlu0 %v2768
    %v2770 = vpop.xlane.xlu0 %2769
    %v2771 = vsel %vm226, %v2763, 0.0
    %2772 = vadd.xlane.f32.xlu0 %v2771
    %v2773 = vpop.xlane.xlu0 %2772
    %v2774 = vmul.f32 %v2770, %v233
    %v2775 = vmul.f32 %v2773, %v233
    %v2776 = vsub.f32 %v2762, %v2774
    %v2777 = vsub.f32 %v2763, %v2775
    %v2778 = vmul.f32 %v2776, %v2776
    %v2779 = vmul.f32 %v2777, %v2777
    %v2780 = vsel %vm226, %v2778, 0.0
    %2781 = vadd.xlane.f32.xlu0 %v2780
    %v2782 = vpop.xlane.xlu0 %2781
    %v2783 = vsel %vm226, %v2779, 0.0
    %2784 = vadd.xlane.f32.xlu0 %v2783
    %v2785 = vpop.xlane.xlu0 %2784
    %v2786 = vmul.f32 %v2782, %v233
    %v2787 = vmul.f32 %v2785, %v233
    %v2788 = vadd.f32 %v2786, 1e-12
    %v2789 = vadd.f32 %v2787, 1e-12
    %v2790 = vrsqrt.pop %v2788
    %v2791 = vrsqrt.pop %v2789
    %v2792 = vmul.f32 %v2776, %v2790
    %v2793 = vmul.f32 %v2777, %v2791
    %v2795 = vlaneseq
    %v2796 = vshrl.u32 %v2795, 7
    %v2797 = vsub.s32 0, %v2796
    %v2798 = vrot.slane %v2765, %v2797
    %v2800 = vmul.f32 %v2792, %v2798
    %v2801 = vmul.f32 %v2793, %v2798
    %v2803 = vlaneseq
    %v2804 = vshrl.u32 %v2803, 7
    %v2805 = vsub.s32 0, %v2804
    %v2806 = vrot.slane %v2767, %v2805
    %v2808 = vadd.f32 %v2800, %v2806
    %v2809 = vadd.f32 %v2801, %v2806
    %s2810 = scalar_lea.vmem %s10, 32
    %v2811 = vld [vmem:[%s2810] sm:$0xff]
    %v2812 = vld [vmem:[%s2810 + $0x8] sm:$0xff]
    %v2813 = vld [vmem:[%s2810 + $0x10] sm:$0xff]
    %v2814 = vld [vmem:[%s2810 + $0x18] sm:$0xff]
    %v2815 = vpack.c.bf16 %v2809, %v2808
    %v2816 = vpack.c.bf16 %v2812, %v2811
    %v2817 = vpack.c.bf16 %v2814, %v2813
    %s2818 = scalar_lea.vmem %s11, 1
    %v2819 = vld [vmem:[%s2818] sm:$0x1]
    %v2821 = vlaneseq
    %v2822 = vshrl.u32 %v2821, 7
    %v2823 = vsub.s32 0, %v2822
    %v2824 = vrot.slane %v2819, %v2823
    %v2827 = vsel %vm226, %v2815, 0
    %2829 = vmatprep.subr.bf16.mxu0 0
    %2830 = vmatpush1.bf16.msra.mxu0 %v2816
    %2831 = vmatprep.subr.bf16.mxu0 0
    %2832 = vmatpush1.bf16.msra.mxu0 %v2817
    %2833 = vmatprep.subr.bf16.mxu0 0
    %2834 = vmatpush1.bf16.msra.mxu0 0
    %2835 = vmatprep.subr.bf16.mxu0 0
    %2836 = vmatpush1.bf16.msra.mxu0 0
    %2837 = vmatprep.subr.bf16.mxu0 0
    %2838 = vmatpush1.bf16.msra.mxu0 0
    %2839 = vmatprep.subr.bf16.mxu0 0
    %2840 = vmatpush1.bf16.msra.mxu0 0
    %2841 = vmatprep.subr.bf16.mxu0 0
    %2842 = vmatpush1.bf16.msra.mxu0 0
    %2843 = vmatprep.subr.bf16.mxu0 0
    %2844 = vmatpush1.bf16.msra.mxu0 0
    %2845 = vmatprep.subr.bf16.mxu0 0
    %2846 = vmatpush1.bf16.msra.mxu0 0
    %2847 = vmatprep.subr.bf16.mxu0 0
    %2848 = vmatpush1.bf16.msra.mxu0 0
    %2849 = vmatprep.subr.bf16.mxu0 0
    %2850 = vmatpush1.bf16.msra.mxu0 0
    %2851 = vmatprep.subr.bf16.mxu0 0
    %2852 = vmatpush1.bf16.msra.mxu0 0
    %2853 = vmatprep.subr.bf16.mxu0 0
    %2854 = vmatpush1.bf16.msra.mxu0 0
    %2855 = vmatprep.subr.bf16.mxu0 0
    %2856 = vmatpush1.bf16.msra.mxu0 0
    %2857 = vmatprep.subr.bf16.mxu0 0
    %2858 = vmatpush1.bf16.msra.mxu0 0
    %2859 = vmatprep.subr.bf16.mxu0 0
    %2860 = vmatpush1.bf16.msra.mxu0 0
    %2861 = vmatprep.mubr.bf16.mxu0 0
    %2862 = vmatmul.mubr.bf16.gmra.mrb[0].mxu0 %v2827
    %v2863 = vpop.f32.mrb[0].mxu0
    %v2864 = vadd.f32 %v2824, %v2863
    %v2865 = vpop.f32.mrb[0].mxu0
    %v2866 = vpop.f32.mrb[0].mxu0
    %v2867 = vadd.f32 %v2824, %v2866
    %v2868 = vpop.f32.mrb[0].mxu0
    %2869 = vdwg.mxu0
    %v2870 = vmul.f32 %v2864, 0.5
    %v2871 = vmul.f32 %v2867, 0.5
    %v2872 = vmul.f32 %v2864, 0.044715
    %v2873 = vmul.f32 %v2867, 0.044715
    %v2874 = vmul.f32 %v2872, %v2864
    %v2875 = vmul.f32 %v2873, %v2867
    %v2876 = vmul.f32 %v2874, %v2864
    %v2877 = vmul.f32 %v2875, %v2867
    %v2878 = vadd.f32 %v2864, %v2876
    %v2879 = vadd.f32 %v2867, %v2877
    %v2880 = vmul.f32 %v2878, 0.7978846
    %v2881 = vmul.f32 %v2879, 0.7978846
    %v2882 = vtanh.pop %v2880
    %v2883 = vtanh.pop %v2881
    %v2884 = vadd.f32 %v2882, 1.0
    %v2885 = vadd.f32 %v2883, 1.0
    %v2886 = vmul.f32 %v2870, %v2884
    %v2887 = vmul.f32 %v2871, %v2885
    %s2888 = scalar_lea.vmem %s12, 64
    %v2889 = vld [vmem:[%s2888] sm:$0xff]
    %v2890 = vld [vmem:[%s2888 + $0x8] sm:$0xff]
    %v2891 = vld [vmem:[%s2888 + $0x10] sm:$0xff]
    %v2892 = vld [vmem:[%s2888 + $0x18] sm:$0xff]
    %v2893 = vld [vmem:[%s2888 + $0x20] sm:$0xff]
    %v2894 = vld [vmem:[%s2888 + $0x28] sm:$0xff]
    %v2895 = vld [vmem:[%s2888 + $0x30] sm:$0xff]
    %v2896 = vld [vmem:[%s2888 + $0x38] sm:$0xff]
    %v2897 = vpack.c.bf16 %v2887, %v2886
    %v2898 = vpack.c.bf16 %v2890, %v2889
    %v2899 = vpack.c.bf16 %v2892, %v2891
    %v2900 = vpack.c.bf16 %v2894, %v2893
    %v2901 = vpack.c.bf16 %v2896, %v2895
    %s2902 = scalar_lea.vmem %s13, 1
    %v2903 = vld [vmem:[%s2902] sm:$0x1]
    %v2905 = vlaneseq
    %v2906 = vshrl.u32 %v2905, 7
    %v2907 = vsub.s32 0, %v2906
    %v2908 = vrot.slane %v2903, %v2907
    %v2911 = vsel %vm1560, %v2897, 0
    %2913 = vmatprep.subr.bf16.mxu0 0
    %2914 = vmatpush1.bf16.msra.mxu0 %v2898
    %2915 = vmatprep.subr.bf16.mxu0 0
    %2916 = vmatpush1.bf16.msra.mxu0 %v2899
    %2917 = vmatprep.subr.bf16.mxu0 0
    %2918 = vmatpush1.bf16.msra.mxu0 %v2900
    %2919 = vmatprep.subr.bf16.mxu0 0
    %2920 = vmatpush1.bf16.msra.mxu0 %v2901
    %2921 = vmatprep.subr.bf16.mxu0 0
    %2922 = vmatpush1.bf16.msra.mxu0 0
    %2923 = vmatprep.subr.bf16.mxu0 0
    %2924 = vmatpush1.bf16.msra.mxu0 0
    %2925 = vmatprep.subr.bf16.mxu0 0
    %2926 = vmatpush1.bf16.msra.mxu0 0
    %2927 = vmatprep.subr.bf16.mxu0 0
    %2928 = vmatpush1.bf16.msra.mxu0 0
    %2929 = vmatprep.subr.bf16.mxu0 0
    %2930 = vmatpush1.bf16.msra.mxu0 0
    %2931 = vmatprep.subr.bf16.mxu0 0
    %2932 = vmatpush1.bf16.msra.mxu0 0
    %2933 = vmatprep.subr.bf16.mxu0 0
    %2934 = vmatpush1.bf16.msra.mxu0 0
    %2935 = vmatprep.subr.bf16.mxu0 0
    %2936 = vmatpush1.bf16.msra.mxu0 0
    %2937 = vmatprep.subr.bf16.mxu0 0
    %2938 = vmatpush1.bf16.msra.mxu0 0
    %2939 = vmatprep.subr.bf16.mxu0 0
    %2940 = vmatpush1.bf16.msra.mxu0 0
    %2941 = vmatprep.subr.bf16.mxu0 0
    %2942 = vmatpush1.bf16.msra.mxu0 0
    %2943 = vmatprep.subr.bf16.mxu0 0
    %2944 = vmatpush1.bf16.msra.mxu0 0
    %2945 = vmatprep.mubr.bf16.mxu0 0
    %2946 = vmatmul.mubr.bf16.gmra.mrb[0].mxu0 %v2911
    %v2947 = vpop.f32.mrb[0].mxu0
    %v2948 = vadd.f32 %v2908, %v2947
    %v2949 = vpop.f32.mrb[0].mxu0
    %v2950 = vpop.f32.mrb[0].mxu0
    %v2951 = vadd.f32 %v2908, %v2950
    %v2952 = vpop.f32.mrb[0].mxu0
    %2953 = vdwg.mxu0
    %v2954 = vadd.f32 %v2948, %v2808
    %v2955 = vadd.f32 %v2951, %v2809
    %s2956 = scalar_lea.vmem %s14, 1
    %v2957 = vld [vmem:[%s2956] sm:$0x1]
    %s2958 = scalar_lea.vmem %s15, 1
    %v2959 = vld [vmem:[%s2958] sm:$0x1]
    %v2960 = vsel %vm226, %v2954, 0.0
    %2961 = vadd.xlane.f32.xlu0 %v2960
    %v2962 = vpop.xlane.xlu0 %2961
    %v2963 = vsel %vm226, %v2955, 0.0
    %2964 = vadd.xlane.f32.xlu0 %v2963
    %v2965 = vpop.xlane.xlu0 %2964
    %v2966 = vmul.f32 %v2962, %v233
    %v2967 = vmul.f32 %v2965, %v233
    %v2968 = vsub.f32 %v2954, %v2966
    %v2969 = vsub.f32 %v2955, %v2967
    %v2970 = vmul.f32 %v2968, %v2968
    %v2971 = vmul.f32 %v2969, %v2969
    %v2972 = vsel %vm226, %v2970, 0.0
    %2973 = vadd.xlane.f32.xlu0 %v2972
    %v2974 = vpop.xlane.xlu0 %2973
    %v2975 = vsel %vm226, %v2971, 0.0
    %2976 = vadd.xlane.f32.xlu0 %v2975
    %v2977 = vpop.xlane.xlu0 %2976
    %v2978 = vmul.f32 %v2974, %v233
    %v2979 = vmul.f32 %v2977, %v233
    %v2980 = vadd.f32 %v2978, 1e-12
    %v2981 = vadd.f32 %v2979, 1e-12
    %v2982 = vrsqrt.pop %v2980
    %v2983 = vrsqrt.pop %v2981
    %v2984 = vmul.f32 %v2968, %v2982
    %v2985 = vmul.f32 %v2969, %v2983
    %v2987 = vlaneseq
    %v2988 = vshrl.u32 %v2987, 7
    %v2989 = vsub.s32 0, %v2988
    %v2990 = vrot.slane %v2957, %v2989
    %v2992 = vmul.f32 %v2984, %v2990
    %v2993 = vmul.f32 %v2985, %v2990
    %v2995 = vlaneseq
    %v2996 = vshrl.u32 %v2995, 7
    %v2997 = vsub.s32 0, %v2996
    %v2998 = vrot.slane %v2959, %v2997
    %v3000 = vadd.f32 %v2992, %v2998
    %v3001 = vadd.f32 %v2993, %v2998
    %3003 = vrot.lane.b32.xlu0 %v3001, 32
    %v3004 = vpop.permute.xlu0 %3003
    %v3006 = vsel %vm226, %v3000, %v3004
    %3008 = vrot.lane.b32.xlu0 %v3006, 64
    %v3009 = vpop.permute.xlu0 %3008
    %v3011 = vsel %vm1560, %v1655, %v3009
    %3012 = vst [vmem:[#allocation14] sm:$0xff] %v3011
    %3014 = vrot.lane.b32.xlu0 %v2274, 64
    %v3015 = vpop.permute.xlu0 %3014
    %v3017 = vsel %vm1560, %v932, %v3015
    %3018 = vst [vmem:[#allocation15] sm:$0xff] %v3017
    %3020 = vrot.lane.b32.xlu0 %v2761, 64
    %v3021 = vpop.permute.xlu0 %3020
    %v3023 = vsel %vm1560, %v1417, %v3021
    %3024 = vst [vmem:[#allocation17] sm:$0xff] %v3023
    %v3025 = vld [vmem:[%s16] sm:$0xff]
    %v3026 = vld [vmem:[%s16 + $0x8] sm:$0xff]
    %v3027 = vld [vmem:[%s16 + $0x10] sm:$0xff]
    %v3028 = vld [vmem:[%s16 + $0x18] sm:$0xff]
    %v3029 = vpack.c.bf16 %v3001, %v3000
    %v3030 = vpack.c.bf16 %v3026, %v3025
    %v3031 = vpack.c.bf16 %v3028, %v3027
    %v3032 = vld [vmem:[%s17] sm:$0x1]
    %v3034 = vlaneseq
    %v3035 = vshrl.u32 %v3034, 7
    %v3036 = vsub.s32 0, %v3035
    %v3037 = vrot.slane %v3032, %v3036
    %v3040 = vsel %vm226, %v3029, 0
    %3042 = vmatprep.subr.bf16.mxu0 0
    %3043 = vmatpush1.bf16.msra.mxu0 %v3030
    %3044 = vmatprep.subr.bf16.mxu0 0
    %3045 = vmatpush1.bf16.msra.mxu0 %v3031
    %3046 = vmatprep.subr.bf16.mxu0 0
    %3047 = vmatpush1.bf16.msra.mxu0 0
    %3048 = vmatprep.subr.bf16.mxu0 0
    %3049 = vmatpush1.bf16.msra.mxu0 0
    %3050 = vmatprep.subr.bf16.mxu0 0
    %3051 = vmatpush1.bf16.msra.mxu0 0
    %3052 = vmatprep.subr.bf16.mxu0 0
    %3053 = vmatpush1.bf16.msra.mxu0 0
    %3054 = vmatprep.subr.bf16.mxu0 0
    %3055 = vmatpush1.bf16.msra.mxu0 0
    %3056 = vmatprep.subr.bf16.mxu0 0
    %3057 = vmatpush1.bf16.msra.mxu0 0
    %3058 = vmatprep.subr.bf16.mxu0 0
    %3059 = vmatpush1.bf16.msra.mxu0 0
    %3060 = vmatprep.subr.bf16.mxu0 0
    %3061 = vmatpush1.bf16.msra.mxu0 0
    %3062 = vmatprep.subr.bf16.mxu0 0
    %3063 = vmatpush1.bf16.msra.mxu0 0
    %3064 = vmatprep.subr.bf16.mxu0 0
    %3065 = vmatpush1.bf16.msra.mxu0 0
    %3066 = vmatprep.subr.bf16.mxu0 0
    %3067 = vmatpush1.bf16.msra.mxu0 0
    %3068 = vmatprep.subr.bf16.mxu0 0
    %3069 = vmatpush1.bf16.msra.mxu0 0
    %3070 = vmatprep.subr.bf16.mxu0 0
    %3071 = vmatpush1.bf16.msra.mxu0 0
    %3072 = vmatprep.subr.bf16.mxu0 0
    %3073 = vmatpush1.bf16.msra.mxu0 0
    %3074 = vmatprep.mubr.bf16.mxu0 0
    %3075 = vmatmul.mubr.bf16.gmra.mrb[0].mxu0 %v3040
    %v3076 = vpop.f32.mrb[0].mxu0
    %v3077 = vadd.f32 %v3037, %v3076
    %v3078 = vpop.f32.mrb[0].mxu0
    %v3079 = vpop.f32.mrb[0].mxu0
    %v3080 = vadd.f32 %v3037, %v3079
    %v3081 = vpop.f32.mrb[0].mxu0
    %3082 = vdwg.mxu0
    %3083 = vst [vmem:[#allocation18] sm:$0xff] %v3077
    %3084 = vst [vmem:[#allocation18 + $0x8] sm:$0xff] %v3080
    // Predicated region
    $region102: #{tpu_custom_call.1} parent=1 // pred_check
      _
    $region103: #{tpu_custom_call.1} parent=1 // pred_check_branch
      %3086 = sbr.rel (0) target = $region105
    $region104: #{tpu_custom_call.1} parent=1 // pred_region
      %s3088 = ssub.s32 128, 128
      %3089 = vsyncadd [#allocation4], %s3088
      %s3091 = sshll.u32 [#allocation14], 4
      %s3092 = int_to_ptr.vmem [resolvable:$true] %s3091
      %3094 = dma.vmem_to_hbm [thread:$0]  %s3092, 128, %s18, [#allocation4]
    $region105: #{tpu_custom_call.1} parent=1 // pred_fallthru
      _
    // Predicated region
    $region106: #{tpu_custom_call.1} parent=1 // pred_check
      _
    $region107: #{tpu_custom_call.1} parent=1 // pred_check_branch
      %3096 = sbr.rel (0) target = $region109
    $region108: #{tpu_custom_call.1} parent=1 // pred_region
      %s3098 = ssub.s32 128, 128
      %3099 = vsyncadd [#allocation16], %s3098
      %s3101 = sshll.u32 [#allocation15], 4
      %s3102 = int_to_ptr.vmem [resolvable:$true] %s3101
      %3104 = dma.vmem_to_hbm [thread:$0]  %s3102, 128, %s19, [#allocation16]
    $region109: #{tpu_custom_call.1} parent=1 // pred_fallthru
      _
    // Predicated region
    $region110: #{tpu_custom_call.1} parent=1 // pred_check
      _
    $region111: #{tpu_custom_call.1} parent=1 // pred_check_branch
      %3106 = sbr.rel (0) target = $region113
    $region112: #{tpu_custom_call.1} parent=1 // pred_region
      %s3108 = ssub.s32 128, 128
      %3109 = vsyncadd [#allocation16], %s3108
      %s3111 = sshll.u32 [#allocation17], 4
      %s3112 = int_to_ptr.vmem [resolvable:$true] %s3111
      %3114 = dma.vmem_to_hbm [thread:$0]  %s3112, 128, %s20, [#allocation16]
    $region113: #{tpu_custom_call.1} parent=1 // pred_fallthru
      _
    // Predicated region
    $region114: #{tpu_custom_call.1} parent=1 // pred_check
      _
    $region115: #{tpu_custom_call.1} parent=1 // pred_check_branch
      %3116 = sbr.rel (0) target = $region117
    $region116: #{tpu_custom_call.1} parent=1 // pred_region
      %s3118 = ssub.s32 256, 256
      %3119 = vsyncadd [#allocation19], %s3118
      %s3120 = sshll.u32 [#allocation18], 4
      %s3121 = int_to_ptr.vmem [resolvable:$true] %s3120
      %3126 = dma.vmem_to_hbm [thread:$0]  %s3121, 256, %s21, [#allocation19], 128, 128, 8
    $region117: #{tpu_custom_call.1} parent=1 // pred_fallthru
      _
    // Predicated region
    $region118: #{tpu_custom_call.1} parent=1 // pred_check
      _
    $region119: #{tpu_custom_call.1} parent=1 // pred_check_branch
      %3128 = sbr.rel (0) target = $region121
    $region120: #{tpu_custom_call.1} parent=1 // pred_region
      %3129 = dma.done [#allocation4], 128
    $region121: #{tpu_custom_call.1} parent=1 // pred_fallthru
      _
    // Predicated region
    $region122: #{tpu_custom_call.1} parent=1 // pred_check
      _
    $region123: #{tpu_custom_call.1} parent=1 // pred_check_branch
      %3131 = sbr.rel (0) target = $region125
    $region124: #{tpu_custom_call.1} parent=1 // pred_region
      %3132 = dma.done [#allocation16], 128
    $region125: #{tpu_custom_call.1} parent=1 // pred_fallthru
      _
    // Predicated region
    $region126: #{tpu_custom_call.1} parent=1 // pred_check
      _
    $region127: #{tpu_custom_call.1} parent=1 // pred_check_branch
      %3134 = sbr.rel (0) target = $region129
    $region128: #{tpu_custom_call.1} parent=1 // pred_region
      %3135 = dma.done [#allocation16], 128
    $region129: #{tpu_custom_call.1} parent=1 // pred_fallthru
      _
    // Predicated region
    $region130: #{tpu_custom_call.1} parent=1 // pred_check
      _
    $region131: #{tpu_custom_call.1} parent=1 // pred_check_branch
      %3137 = sbr.rel (0) target = $region133
    $region132: #{tpu_custom_call.1} parent=1 // pred_region
      %3138 = dma.done [#allocation19], 256
    $region133: #{tpu_custom_call.1} parent=1 // pred_fallthru
      _
    %3139 = vsyncpa [#allocation3], 1
    %3140 = vsyncpa [#allocation6], 1
    %3141 = vsyncpa [#allocation9], 1
    %3142 = vsyncpa [#allocation12], 1
    %3143 = vsyncpa [#allocation4], 1
    %3144 = vsyncpa [#allocation16], 1
    %3145 = vsyncpa [#allocation19], 1

</llo_original>
